<compile_context>
chip_gen: v5e
topology: v5e:2x2
jax: 0.10.0
libtpu: 0.0.40
codegen_flags: <defaults>
</compile_context>

<pallas_src>
import functools

import numpy as np
import jax
import jax.numpy as jnp
from jax.experimental import pallas as pl
from jax.experimental.pallas import tpu as pltpu

EPS = 1e-5


# --------------------------------------------------------------------------
# In-kernel helper: build im2col patches (M, 9*C) in a VMEM scratch buffer
# from a zero-padded (Hp, Wp, C) activation scratch, optionally strided.
# The cast to the matmul operand dtype is fused into the store.
# --------------------------------------------------------------------------
def _im2col_to_scratch(src_ref, dst_ref, hs, ws, c, stride):
    k = 0
    for dh in range(3):
        for dw in range(3):
            if stride == 1:
                t = src_ref[dh:dh + hs, dw:dw + ws, :]
            else:
                t = src_ref[pl.ds(dh, hs, stride), pl.ds(dw, ws, stride), :]
            dst_ref[:, k * c:(k + 1) * c] = (
                t.reshape(hs * ws, c).astype(dst_ref.dtype))
            k += 1


# --------------------------------------------------------------------------
# In-kernel helper: zero only the 1-pixel halo of a (h+2, w+2, c) padded
# scratch buffer.  The interior is fully overwritten every grid step, so
# zeroing the whole buffer each step is dead vst work.
# --------------------------------------------------------------------------
def _zero_halo(ref, h, w, c):
    zrow = jnp.zeros((1, w + 2, c), ref.dtype)
    ref[0:1, :, :] = zrow
    ref[h + 1:h + 2, :, :] = zrow
    zcol = jnp.zeros((h + 2, 1, c), ref.dtype)
    ref[:, 0:1, :] = zcol
    ref[:, w + 1:w + 2, :] = zcol


# --------------------------------------------------------------------------
# Fused ResNet-block kernel (one batch element per grid step)
# --------------------------------------------------------------------------
def _resnet_block_kernel(x_ref, s1_ref, b1_ref, w1_ref,
                         s2_ref, b2_ref, w2_ref,
                         wsc_ref, bsc_ref, sew1_ref, sew2_ref,
                         o_ref,
                         a1p_ref, a2p_ref, p1_ref, p2_ref,
                         *, stride):
    _, H, W, Cin = x_ref.shape
    _, Hs, Ws, Cout = o_ref.shape
    cdt = w1_ref.dtype                      # matmul operand dtype (bf16/f32)

    # ---- BN1 + ReLU fused with zero-pad halo into VMEM scratch -----------
    x = x_ref[0]                                              # (H, W, Cin) f32
    a1 = jnp.maximum(x * s1_ref[0] + b1_ref[0], 0.0)
    _zero_halo(a1p_ref, H, W, Cin)
    a1p_ref[1:H + 1, 1:W + 1, :] = a1

    # ---- conv1: 3x3, stride s, as ONE matmul with K = 9*Cin --------------
    _im2col_to_scratch(a1p_ref, p1_ref, Hs, Ws, Cin, stride)
    c1 = jnp.dot(p1_ref[...], w1_ref[...],
                 preferred_element_type=jnp.float32)

    # ---- BN2 + ReLU + pad (conv1 bias pre-folded into b2_eff) ------------
    a2 = jnp.maximum(c1.reshape(Hs, Ws, Cout) * s2_ref[0] + b2_ref[0], 0.0)
    _zero_halo(a2p_ref, Hs, Ws, Cout)
    a2p_ref[1:Hs + 1, 1:Ws + 1, :] = a2

    # ---- conv2: 3x3, stride 1, as ONE matmul with K = 9*Cout --------------
    _im2col_to_scratch(a2p_ref, p2_ref, Hs, Ws, Cout, 1)
    c2 = jnp.dot(p2_ref[...], w2_ref[...],
                 preferred_element_type=jnp.float32)

    # ---- shortcut: 1x1 strided conv, BN + conv2 bias folded into w/b ------
    if stride == 1:
        xs = x.reshape(Hs * Ws, Cin)
    else:
        xs = x_ref[:, pl.ds(0, Hs, stride),
                   pl.ds(0, Ws, stride), :].reshape(Hs * Ws, Cin)
    sc = jnp.dot(xs.astype(cdt), wsc_ref[...],
                 preferred_element_type=jnp.float32) + bsc_ref[0]

    # ---- residual add + squeeze-excitation --------------------------------
    z = c2 + sc                                               # (Hs*Ws, Cout) f32
    pooled = jnp.sum(z, axis=0, keepdims=True) * (1.0 / (Hs * Ws))   # (1, Cout)
    h = jnp.maximum(jnp.dot(pooled, sew1_ref[...],
                            preferred_element_type=jnp.float32), 0.0)
    t = jnp.dot(h, sew2_ref[...], preferred_element_type=jnp.float32)
    t = jnp.clip(t, -30.0, 30.0)
    g = pl.reciprocal(1.0 + jnp.exp(-t), approx=True)         # sigmoid via EUP
    o_ref[...] = (z * g).reshape(1, Hs, Ws, Cout).astype(o_ref.dtype)


# --------------------------------------------------------------------------
# Wrapper: parameter folding + pallas_call
# --------------------------------------------------------------------------
def _fold_bn(g, b, m, v):
    scale = g / jnp.sqrt(v + EPS)
    return scale, b - m * scale


def resnet_block_forward(x_nchw, p, stride, compute_dtype=jnp.bfloat16):
    x = jnp.transpose(x_nchw, (0, 2, 3, 1)).astype(jnp.float32)    # NHWC
    N, H, W, Cin = x.shape
    Cout = p['conv1_w'].shape[0]
    Cr = p['se_fc1'].shape[0]
    Hs = (H - 1) // stride + 1
    Ws = (W - 1) // stride + 1

    s1, b1 = _fold_bn(p['bn1_g'], p['bn1_b'], p['bn1_m'], p['bn1_v'])
    s2, b2 = _fold_bn(p['bn2_g'], p['bn2_b'], p['bn2_m'], p['bn2_v'])
    ssc, bsc = _fold_bn(p['bnsc_g'], p['bnsc_b'], p['bnsc_m'], p['bnsc_v'])

    # Fold conv biases into neighbouring affine params:
    #   BN2(conv1_raw + cb1) = conv1_raw * s2 + (cb1 * s2 + b2)
    #   z = conv2_raw + cb2 + BN_sc(conv_sc_raw + cbsc)
    #     = conv2_raw + x@wsc_folded + (cbsc*ssc + bsc + cb2)
    b2_eff = s2 * p['conv1_b'] + b2
    bsc_eff = p['convsc_b'] * ssc + bsc + p['conv2_b']

    # conv weights in im2col layout, cast to the matmul operand dtype
    w1 = jnp.transpose(p['conv1_w'], (2, 3, 1, 0)).reshape(9 * Cin, Cout)
    w2 = jnp.transpose(p['conv2_w'], (2, 3, 1, 0)).reshape(9 * Cout, Cout)
    w1 = w1.astype(compute_dtype)
    w2 = w2.astype(compute_dtype)
    wsc = (p['convsc_w'][:, :, 0, 0].T * ssc[None, :]).astype(compute_dtype)
    sew1 = p['se_fc1'].T.astype(jnp.float32)      # (Cout, Cr)
    sew2 = p['se_fc2'].T.astype(jnp.float32)      # (Cr, Cout)

    r2 = lambda a: a.reshape(1, -1).astype(jnp.float32)

    def full(shape):
        return pl.BlockSpec(shape, lambda n: (0,) * len(shape))

    # Explicit VMEM budget (double-buffered blocks + persistent scratch),
    # clamped to v7x's 64 MiB physical VMEM.
    def nbytes(shape, dt):
        return int(np.prod(shape)) * jnp.dtype(dt).itemsize

    block_bytes = (
        nbytes((1, H, W, Cin), jnp.float32)
        + 2 * nbytes((1, Cin), jnp.float32)
        + 3 * nbytes((1, Cout), jnp.float32)
        + nbytes((9 * Cin, Cout), compute_dtype)
        + nbytes((9 * Cout, Cout), compute_dtype)
        + nbytes((Cin, Cout), compute_dtype)
        + nbytes((Cout, Cr), jnp.float32) + nbytes((Cr, Cout), jnp.float32)
        + nbytes((1, Hs, Ws, Cout), jnp.float32))
    scratch_bytes = (
        nbytes((H + 2, W + 2, Cin), jnp.float32)
        + nbytes((Hs + 2, Ws + 2, Cout), jnp.float32)
        + nbytes((Hs * Ws, 9 * Cin), compute_dtype)
        + nbytes((Hs * Ws, 9 * Cout), compute_dtype))
    vmem_limit = int(min(max(2 * block_bytes + scratch_bytes + (8 << 20),
                             32 << 20), 64 << 20))

    kernel = functools.partial(_resnet_block_kernel, stride=stride)

    y = pl.pallas_call(
        kernel,
        out_shape=jax.ShapeDtypeStruct((N, Hs, Ws, Cout), jnp.float32),
        grid=(N,),
        in_specs=[
            pl.BlockSpec((1, H, W, Cin), lambda n: (n, 0, 0, 0)),
            full((1, Cin)), full((1, Cin)),                 # BN1 scale/bias
            full((9 * Cin, Cout)),                          # conv1 w
            full((1, Cout)), full((1, Cout)),               # BN2 scale / bias(+conv1 b)
            full((9 * Cout, Cout)),                         # conv2 w
            full((Cin, Cout)), full((1, Cout)),             # shortcut w / b (BN+conv2 b)
            full((Cout, Cr)), full((Cr, Cout)),             # SE fc1/fc2
        ],
        out_specs=pl.BlockSpec((1, Hs, Ws, Cout), lambda n: (n, 0, 0, 0)),
        scratch_shapes=[
            pltpu.VMEM((H + 2, W + 2, Cin), jnp.float32),     # padded BN1 act
            pltpu.VMEM((Hs + 2, Ws + 2, Cout), jnp.float32),  # padded BN2 act
            pltpu.VMEM((Hs * Ws, 9 * Cin), compute_dtype),    # im2col patches 1
            pltpu.VMEM((Hs * Ws, 9 * Cout), compute_dtype),   # im2col patches 2
        ],
        compiler_params=pltpu.CompilerParams(
            dimension_semantics=("parallel",),
            vmem_limit_bytes=vmem_limit),
    )(x, r2(s1), r2(b1), w1,
      r2(s2), r2(b2_eff), w2,
      wsc, r2(bsc_eff), sew1, sew2)

    return jnp.transpose(y, (0, 3, 1, 2))                    # back to NCHW


# --------------------------------------------------------------------------
# Parameter init (deterministic)
# --------------------------------------------------------------------------
def init_params(key, in_c, out_c, r=8):
    ks = jax.random.split(key, 24)
    nrm = lambda k, shape, s=0.1: jax.random.normal(k, shape, jnp.float32) * s
    uni = lambda k, shape: jax.random.uniform(k, shape, jnp.float32, 0.5, 1.5)
    return {
        'bn1_g': uni(ks[0], (in_c,)),  'bn1_b': nrm(ks[1], (in_c,)),
        'bn1_m': nrm(ks[2], (in_c,)),  'bn1_v': uni(ks[3], (in_c,)),
        'conv1_w': nrm(ks[4], (out_c, in_c, 3, 3), 0.2),
        'conv1_b': nrm(ks[5], (out_c,)),
        'bn2_g': uni(ks[6], (out_c,)), 'bn2_b': nrm(ks[7], (out_c,)),
        'bn2_m': nrm(ks[8], (out_c,)), 'bn2_v': uni(ks[9], (out_c,)),
        'conv2_w': nrm(ks[10], (out_c, out_c, 3, 3), 0.2),
        'conv2_b': nrm(ks[11], (out_c,)),
        'convsc_w': nrm(ks[12], (out_c, in_c, 1, 1), 0.2),
        'convsc_b': nrm(ks[13], (out_c,)),
        'bnsc_g': uni(ks[14], (out_c,)), 'bnsc_b': nrm(ks[15], (out_c,)),
        'bnsc_m': nrm(ks[16], (out_c,)), 'bnsc_v': uni(ks[17], (out_c,)),
        'se_fc1': nrm(ks[18], (out_c // r, out_c), 0.3),
        'se_fc2': nrm(ks[19], (out_c, out_c // r), 0.3),
    }


# --------------------------------------------------------------------------
# Pure-JAX reference (NCHW, mirrors the PyTorch module in eval mode).
# Conv operands are cast to the same compute dtype as the kernel so the
# comparison isolates implementation error rather than bf16 rounding.
# --------------------------------------------------------------------------
def reference_forward(x, p, stride, compute_dtype=jnp.float32):
    def bn(x, g, b, m, v):
        sh = (1, -1, 1, 1)
        return ((x - m.reshape(sh)) / jnp.sqrt(v.reshape(sh) + EPS)
                * g.reshape(sh) + b.reshape(sh))

    def conv(x, w, b, s, pad):
        y = jax.lax.conv_general_dilated(
            x.astype(compute_dtype), w.astype(compute_dtype), (s, s),
            ((pad, pad), (pad, pad)),
            dimension_numbers=('NCHW', 'OIHW', 'NCHW'),
            preferred_element_type=jnp.float32)
        return y + b.reshape(1, -1, 1, 1)

    h = jax.nn.relu(bn(x, p['bn1_g'], p['bn1_b'], p['bn1_m'], p['bn1_v']))
    h = conv(h, p['conv1_w'], p['conv1_b'], stride, 1)
    h = jax.nn.relu(bn(h, p['bn2_g'], p['bn2_b'], p['bn2_m'], p['bn2_v']))
    h = conv(h, p['conv2_w'], p['conv2_b'], 1, 1)
    s = conv(x, p['convsc_w'], p['convsc_b'], stride, 0)
    s = bn(s, p['bnsc_g'], p['bnsc_b'], p['bnsc_m'], p['bnsc_v'])
    z = h + s
    pooled = jnp.mean(z, axis=(2, 3))
    a = jax.nn.relu(pooled @ p['se_fc1'].T)
    g = jax.nn.sigmoid(a @ p['se_fc2'].T)
    return z * g[:, :, None, None]


# --------------------------------------------------------------------------
if __name__ == "__main__":
    key = jax.random.PRNGKey(0)
    kx, kp = jax.random.split(key)

    N, in_c, out_c, H, W = 2, 8, 16, 16, 16
    x = jax.random.normal(kx, (N, in_c, H, W), jnp.float32)
    params = init_params(kp, in_c, out_c)

    for stride in (1, 2):
        for cdt in (jnp.float32, jnp.bfloat16):
            y = jax.block_until_ready(
                resnet_block_forward(x, params, stride, compute_dtype=cdt))
            y_ref = reference_forward(x, params, stride, compute_dtype=cdt)
            assert y.shape == y_ref.shape, (y.shape, y_ref.shape)
            assert np.allclose(np.asarray(y), np.asarray(y_ref),
                               atol=1e-2, rtol=2e-2), \
                f"mismatch at stride={stride}, dtype={cdt}"

    print("KERNEL_OK")
</pallas_src>

<mosaic_0001>
module attributes {stable_mosaic.version = 11 : i64} {
  func.func @_resnet_block_kernel(%arg0: i32, %arg1: memref<1x16x16x8xf32, #tpu.memory_space<vmem>>, %arg2: memref<1x8xf32, #tpu.memory_space<vmem>>, %arg3: memref<1x8xf32, #tpu.memory_space<vmem>>, %arg4: memref<72x16xf32, #tpu.memory_space<vmem>>, %arg5: memref<1x16xf32, #tpu.memory_space<vmem>>, %arg6: memref<1x16xf32, #tpu.memory_space<vmem>>, %arg7: memref<144x16xf32, #tpu.memory_space<vmem>>, %arg8: memref<8x16xf32, #tpu.memory_space<vmem>>, %arg9: memref<1x16xf32, #tpu.memory_space<vmem>>, %arg10: memref<16x2xf32, #tpu.memory_space<vmem>>, %arg11: memref<2x16xf32, #tpu.memory_space<vmem>>, %arg12: memref<1x16x16x16xf32, #tpu.memory_space<vmem>>, %arg13: memref<18x18x8xf32, #tpu.memory_space<vmem>>, %arg14: memref<18x18x16xf32, #tpu.memory_space<vmem>>, %arg15: memref<256x72xf32, #tpu.memory_space<vmem>>, %arg16: memref<256x144xf32, #tpu.memory_space<vmem>>) attributes {dimension_semantics = [#tpu.dimension_semantics<parallel>], iteration_bounds = array<i64: 2>, scalar_prefetch = 0 : i64, scratch_operands = 4 : i64, tpu.core_type = #tpu.core_type<tc>, window_params = [{transform_indices = @transform_0, window_bounds = array<i64: 1, 16, 16, 8>}, {pipeline_mode = #tpu.pipeline_mode<synchronous>, transform_indices = @transform_1, window_bounds = array<i64: 1, 8>}, {pipeline_mode = #tpu.pipeline_mode<synchronous>, transform_indices = @transform_2, window_bounds = array<i64: 1, 8>}, {pipeline_mode = #tpu.pipeline_mode<synchronous>, transform_indices = @transform_3, window_bounds = array<i64: 72, 16>}, {pipeline_mode = #tpu.pipeline_mode<synchronous>, transform_indices = @transform_4, window_bounds = array<i64: 1, 16>}, {pipeline_mode = #tpu.pipeline_mode<synchronous>, transform_indices = @transform_5, window_bounds = array<i64: 1, 16>}, {pipeline_mode = #tpu.pipeline_mode<synchronous>, transform_indices = @transform_6, window_bounds = array<i64: 144, 16>}, {pipeline_mode = #tpu.pipeline_mode<synchronous>, transform_indices = @transform_7, window_bounds = array<i64: 8, 16>}, {pipeline_mode = #tpu.pipeline_mode<synchronous>, transform_indices = @transform_8, window_bounds = array<i64: 1, 16>}, {pipeline_mode = #tpu.pipeline_mode<synchronous>, transform_indices = @transform_9, window_bounds = array<i64: 16, 2>}, {pipeline_mode = #tpu.pipeline_mode<synchronous>, transform_indices = @transform_10, window_bounds = array<i64: 2, 16>}, {transform_indices = @transform_11, window_bounds = array<i64: 1, 16, 16, 16>}]} {
    %c0 = arith.constant 0 : index
    %c0_0 = arith.constant 0 : index
    %c0_1 = arith.constant 0 : index
    %c0_2 = arith.constant 0 : index
    %0 = vector.load %arg1[%c0, %c0_0, %c0_1, %c0_2] : memref<1x16x16x8xf32, #tpu.memory_space<vmem>>, vector<1x16x16x8xf32>
    %1 = vector.shape_cast %0 : vector<1x16x16x8xf32> to vector<16x16x8xf32>
    %c0_3 = arith.constant 0 : index
    %c0_4 = arith.constant 0 : index
    %2 = vector.load %arg2[%c0_3, %c0_4] : memref<1x8xf32, #tpu.memory_space<vmem>>, vector<1x8xf32>
    %3 = vector.shape_cast %2 : vector<1x8xf32> to vector<8xf32>
    %4 = vector.shape_cast %3 : vector<8xf32> to vector<1x1x8xf32>
    %5 = vector.broadcast %4 : vector<1x1x8xf32> to vector<16x16x8xf32>
    %6 = arith.mulf %1, %5 : vector<16x16x8xf32>
    %c0_5 = arith.constant 0 : index
    %c0_6 = arith.constant 0 : index
    %7 = vector.load %arg3[%c0_5, %c0_6] : memref<1x8xf32, #tpu.memory_space<vmem>>, vector<1x8xf32>
    %8 = vector.shape_cast %7 : vector<1x8xf32> to vector<8xf32>
    %9 = vector.shape_cast %8 : vector<8xf32> to vector<1x1x8xf32>
    %10 = vector.broadcast %9 : vector<1x1x8xf32> to vector<16x16x8xf32>
    %11 = arith.addf %6, %10 : vector<16x16x8xf32>
    %cst = arith.constant 0.000000e+00 : f32
    %12 = vector.broadcast %cst : f32 to vector<16x16x8xf32>
    %13 = arith.maximumf %11, %12 : vector<16x16x8xf32>
    %cst_7 = arith.constant 0.000000e+00 : f32
    %14 = vector.broadcast %cst_7 : f32 to vector<1x18x8xf32>
    %c0_8 = arith.constant 0 : index
    %c0_9 = arith.constant 0 : index
    %c0_10 = arith.constant 0 : index
    %15 = vector.load %arg13[%c0_8, %c0_9, %c0_10] : memref<18x18x8xf32, #tpu.memory_space<vmem>>, vector<1x18x8xf32>
    tpu.vector_store %arg13[%c0_8, %c0_9, %c0_10], %14 {strides = array<i32>} : memref<18x18x8xf32, #tpu.memory_space<vmem>>, vector<1x18x8xf32>,
    %c17 = arith.constant 17 : index
    %c0_11 = arith.constant 0 : index
    %c0_12 = arith.constant 0 : index
    %16 = vector.load %arg13[%c17, %c0_11, %c0_12] : memref<18x18x8xf32, #tpu.memory_space<vmem>>, vector<1x18x8xf32>
    tpu.vector_store %arg13[%c17, %c0_11, %c0_12], %14 {strides = array<i32>} : memref<18x18x8xf32, #tpu.memory_space<vmem>>, vector<1x18x8xf32>,
    %cst_13 = arith.constant 0.000000e+00 : f32
    %17 = vector.broadcast %cst_13 : f32 to vector<18x1x8xf32>
    %c0_14 = arith.constant 0 : index
    %c0_15 = arith.constant 0 : index
    %c0_16 = arith.constant 0 : index
    %18 = vector.load %arg13[%c0_14, %c0_15, %c0_16] : memref<18x18x8xf32, #tpu.memory_space<vmem>>, vector<18x1x8xf32>
    tpu.vector_store %arg13[%c0_14, %c0_15, %c0_16], %17 {strides = array<i32>} : memref<18x18x8xf32, #tpu.memory_space<vmem>>, vector<18x1x8xf32>,
    %c0_17 = arith.constant 0 : index
    %c17_18 = arith.constant 17 : index
    %c0_19 = arith.constant 0 : index
    %19 = vector.load %arg13[%c0_17, %c17_18, %c0_19] : memref<18x18x8xf32, #tpu.memory_space<vmem>>, vector<18x1x8xf32>
    tpu.vector_store %arg13[%c0_17, %c17_18, %c0_19], %17 {strides = array<i32>} : memref<18x18x8xf32, #tpu.memory_space<vmem>>, vector<18x1x8xf32>,
    %c1 = arith.constant 1 : index
    %c1_20 = arith.constant 1 : index
    %c0_21 = arith.constant 0 : index
    %20 = vector.load %arg13[%c1, %c1_20, %c0_21] : memref<18x18x8xf32, #tpu.memory_space<vmem>>, vector<16x16x8xf32>
    tpu.vector_store %arg13[%c1, %c1_20, %c0_21], %13 {strides = array<i32>} : memref<18x18x8xf32, #tpu.memory_space<vmem>>, vector<16x16x8xf32>,
    %c0_22 = arith.constant 0 : index
    %c0_23 = arith.constant 0 : index
    %c0_24 = arith.constant 0 : index
    %21 = vector.load %arg13[%c0_22, %c0_23, %c0_24] : memref<18x18x8xf32, #tpu.memory_space<vmem>>, vector<16x16x8xf32>
    %22 = vector.shape_cast %21 : vector<16x16x8xf32> to vector<256x8xf32>
    %c0_25 = arith.constant 0 : index
    %c0_26 = arith.constant 0 : index
    %23 = vector.load %arg15[%c0_25, %c0_26] : memref<256x72xf32, #tpu.memory_space<vmem>>, vector<256x8xf32>
    tpu.vector_store %arg15[%c0_25, %c0_26], %22 {strides = array<i32>} : memref<256x72xf32, #tpu.memory_space<vmem>>, vector<256x8xf32>,
    %c0_27 = arith.constant 0 : index
    %c1_28 = arith.constant 1 : index
    %c0_29 = arith.constant 0 : index
    %24 = vector.load %arg13[%c0_27, %c1_28, %c0_29] : memref<18x18x8xf32, #tpu.memory_space<vmem>>, vector<16x16x8xf32>
    %25 = vector.shape_cast %24 : vector<16x16x8xf32> to vector<256x8xf32>
    %c0_30 = arith.constant 0 : index
    %c8 = arith.constant 8 : index
    %26 = vector.load %arg15[%c0_30, %c8] : memref<256x72xf32, #tpu.memory_space<vmem>>, vector<256x8xf32>
    tpu.vector_store %arg15[%c0_30, %c8], %25 {strides = array<i32>} : memref<256x72xf32, #tpu.memory_space<vmem>>, vector<256x8xf32>,
    %c0_31 = arith.constant 0 : index
    %c2 = arith.constant 2 : index
    %c0_32 = arith.constant 0 : index
    %27 = vector.load %arg13[%c0_31, %c2, %c0_32] : memref<18x18x8xf32, #tpu.memory_space<vmem>>, vector<16x16x8xf32>
    %28 = vector.shape_cast %27 : vector<16x16x8xf32> to vector<256x8xf32>
    %c0_33 = arith.constant 0 : index
    %c16 = arith.constant 16 : index
    %29 = vector.load %arg15[%c0_33, %c16] : memref<256x72xf32, #tpu.memory_space<vmem>>, vector<256x8xf32>
    tpu.vector_store %arg15[%c0_33, %c16], %28 {strides = array<i32>} : memref<256x72xf32, #tpu.memory_space<vmem>>, vector<256x8xf32>,
    %c1_34 = arith.constant 1 : index
    %c0_35 = arith.constant 0 : index
    %c0_36 = arith.constant 0 : index
    %30 = vector.load %arg13[%c1_34, %c0_35, %c0_36] : memref<18x18x8xf32, #tpu.memory_space<vmem>>, vector<16x16x8xf32>
    %31 = vector.shape_cast %30 : vector<16x16x8xf32> to vector<256x8xf32>
    %c0_37 = arith.constant 0 : index
    %c24 = arith.constant 24 : index
    %32 = vector.load %arg15[%c0_37, %c24] : memref<256x72xf32, #tpu.memory_space<vmem>>, vector<256x8xf32>
    tpu.vector_store %arg15[%c0_37, %c24], %31 {strides = array<i32>} : memref<256x72xf32, #tpu.memory_space<vmem>>, vector<256x8xf32>,
    %c1_38 = arith.constant 1 : index
    %c1_39 = arith.constant 1 : index
    %c0_40 = arith.constant 0 : index
    %33 = vector.load %arg13[%c1_38, %c1_39, %c0_40] : memref<18x18x8xf32, #tpu.memory_space<vmem>>, vector<16x16x8xf32>
    %34 = vector.shape_cast %33 : vector<16x16x8xf32> to vector<256x8xf32>
    %c0_41 = arith.constant 0 : index
    %c32 = arith.constant 32 : index
    %35 = vector.load %arg15[%c0_41, %c32] : memref<256x72xf32, #tpu.memory_space<vmem>>, vector<256x8xf32>
    tpu.vector_store %arg15[%c0_41, %c32], %34 {strides = array<i32>} : memref<256x72xf32, #tpu.memory_space<vmem>>, vector<256x8xf32>,
    %c1_42 = arith.constant 1 : index
    %c2_43 = arith.constant 2 : index
    %c0_44 = arith.constant 0 : index
    %36 = vector.load %arg13[%c1_42, %c2_43, %c0_44] : memref<18x18x8xf32, #tpu.memory_space<vmem>>, vector<16x16x8xf32>
    %37 = vector.shape_cast %36 : vector<16x16x8xf32> to vector<256x8xf32>
    %c0_45 = arith.constant 0 : index
    %c40 = arith.constant 40 : index
    %38 = vector.load %arg15[%c0_45, %c40] : memref<256x72xf32, #tpu.memory_space<vmem>>, vector<256x8xf32>
    tpu.vector_store %arg15[%c0_45, %c40], %37 {strides = array<i32>} : memref<256x72xf32, #tpu.memory_space<vmem>>, vector<256x8xf32>,
    %c2_46 = arith.constant 2 : index
    %c0_47 = arith.constant 0 : index
    %c0_48 = arith.constant 0 : index
    %39 = vector.load %arg13[%c2_46, %c0_47, %c0_48] : memref<18x18x8xf32, #tpu.memory_space<vmem>>, vector<16x16x8xf32>
    %40 = vector.shape_cast %39 : vector<16x16x8xf32> to vector<256x8xf32>
    %c0_49 = arith.constant 0 : index
    %c48 = arith.constant 48 : index
    %41 = vector.load %arg15[%c0_49, %c48] : memref<256x72xf32, #tpu.memory_space<vmem>>, vector<256x8xf32>
    tpu.vector_store %arg15[%c0_49, %c48], %40 {strides = array<i32>} : memref<256x72xf32, #tpu.memory_space<vmem>>, vector<256x8xf32>,
    %c2_50 = arith.constant 2 : index
    %c1_51 = arith.constant 1 : index
    %c0_52 = arith.constant 0 : index
    %42 = vector.load %arg13[%c2_50, %c1_51, %c0_52] : memref<18x18x8xf32, #tpu.memory_space<vmem>>, vector<16x16x8xf32>
    %43 = vector.shape_cast %42 : vector<16x16x8xf32> to vector<256x8xf32>
    %c0_53 = arith.constant 0 : index
    %c56 = arith.constant 56 : index
    %44 = vector.load %arg15[%c0_53, %c56] : memref<256x72xf32, #tpu.memory_space<vmem>>, vector<256x8xf32>
    tpu.vector_store %arg15[%c0_53, %c56], %43 {strides = array<i32>} : memref<256x72xf32, #tpu.memory_space<vmem>>, vector<256x8xf32>,
    %c2_54 = arith.constant 2 : index
    %c2_55 = arith.constant 2 : index
    %c0_56 = arith.constant 0 : index
    %45 = vector.load %arg13[%c2_54, %c2_55, %c0_56] : memref<18x18x8xf32, #tpu.memory_space<vmem>>, vector<16x16x8xf32>
    %46 = vector.shape_cast %45 : vector<16x16x8xf32> to vector<256x8xf32>
    %c0_57 = arith.constant 0 : index
    %c64 = arith.constant 64 : index
    %47 = vector.load %arg15[%c0_57, %c64] : memref<256x72xf32, #tpu.memory_space<vmem>>, vector<256x8xf32>
    tpu.vector_store %arg15[%c0_57, %c64], %46 {strides = array<i32>} : memref<256x72xf32, #tpu.memory_space<vmem>>, vector<256x8xf32>,
    %c0_58 = arith.constant 0 : index
    %c0_59 = arith.constant 0 : index
    %48 = vector.load %arg15[%c0_58, %c0_59] : memref<256x72xf32, #tpu.memory_space<vmem>>, vector<256x72xf32>
    %c0_60 = arith.constant 0 : index
    %c0_61 = arith.constant 0 : index
    %49 = vector.load %arg4[%c0_60, %c0_61] : memref<72x16xf32, #tpu.memory_space<vmem>>, vector<72x16xf32>
    %cst_62 = arith.constant dense<0.000000e+00> : vector<256x16xf32>
    %50 = tpu.matmul %48, %49, %cst_62 {dimension_numbers = #tpu.dot_dimension_numbers<[1], [0], [0], [1], [0, 0, 1, 1], [], []>} : vector<256x72xf32>, vector<72x16xf32>, vector<256x16xf32> -> vector<256x16xf32>
    %51 = vector.shape_cast %50 : vector<256x16xf32> to vector<16x16x16xf32>
    %c0_63 = arith.constant 0 : index
    %c0_64 = arith.constant 0 : index
    %52 = vector.load %arg5[%c0_63, %c0_64] : memref<1x16xf32, #tpu.memory_space<vmem>>, vector<1x16xf32>
    %53 = vector.shape_cast %52 : vector<1x16xf32> to vector<16xf32>
    %54 = vector.shape_cast %53 : vector<16xf32> to vector<1x1x16xf32>
    %55 = vector.broadcast %54 : vector<1x1x16xf32> to vector<16x16x16xf32>
    %56 = arith.mulf %51, %55 : vector<16x16x16xf32>
    %c0_65 = arith.constant 0 : index
    %c0_66 = arith.constant 0 : index
    %57 = vector.load %arg6[%c0_65, %c0_66] : memref<1x16xf32, #tpu.memory_space<vmem>>, vector<1x16xf32>
    %58 = vector.shape_cast %57 : vector<1x16xf32> to vector<16xf32>
    %59 = vector.shape_cast %58 : vector<16xf32> to vector<1x1x16xf32>
    %60 = vector.broadcast %59 : vector<1x1x16xf32> to vector<16x16x16xf32>
    %61 = arith.addf %56, %60 : vector<16x16x16xf32>
    %cst_67 = arith.constant 0.000000e+00 : f32
    %62 = vector.broadcast %cst_67 : f32 to vector<16x16x16xf32>
    %63 = arith.maximumf %61, %62 : vector<16x16x16xf32>
    %cst_68 = arith.constant 0.000000e+00 : f32
    %64 = vector.broadcast %cst_68 : f32 to vector<1x18x16xf32>
    %c0_69 = arith.constant 0 : index
    %c0_70 = arith.constant 0 : index
    %c0_71 = arith.constant 0 : index
    %65 = vector.load %arg14[%c0_69, %c0_70, %c0_71] : memref<18x18x16xf32, #tpu.memory_space<vmem>>, vector<1x18x16xf32>
    tpu.vector_store %arg14[%c0_69, %c0_70, %c0_71], %64 {strides = array<i32>} : memref<18x18x16xf32, #tpu.memory_space<vmem>>, vector<1x18x16xf32>,
    %c17_72 = arith.constant 17 : index
    %c0_73 = arith.constant 0 : index
    %c0_74 = arith.constant 0 : index
    %66 = vector.load %arg14[%c17_72, %c0_73, %c0_74] : memref<18x18x16xf32, #tpu.memory_space<vmem>>, vector<1x18x16xf32>
    tpu.vector_store %arg14[%c17_72, %c0_73, %c0_74], %64 {strides = array<i32>} : memref<18x18x16xf32, #tpu.memory_space<vmem>>, vector<1x18x16xf32>,
    %cst_75 = arith.constant 0.000000e+00 : f32
    %67 = vector.broadcast %cst_75 : f32 to vector<18x1x16xf32>
    %c0_76 = arith.constant 0 : index
    %c0_77 = arith.constant 0 : index
    %c0_78 = arith.constant 0 : index
    %68 = vector.load %arg14[%c0_76, %c0_77, %c0_78] : memref<18x18x16xf32, #tpu.memory_space<vmem>>, vector<18x1x16xf32>
    tpu.vector_store %arg14[%c0_76, %c0_77, %c0_78], %67 {strides = array<i32>} : memref<18x18x16xf32, #tpu.memory_space<vmem>>, vector<18x1x16xf32>,
    %c0_79 = arith.constant 0 : index
    %c17_80 = arith.constant 17 : index
    %c0_81 = arith.constant 0 : index
    %69 = vector.load %arg14[%c0_79, %c17_80, %c0_81] : memref<18x18x16xf32, #tpu.memory_space<vmem>>, vector<18x1x16xf32>
    tpu.vector_store %arg14[%c0_79, %c17_80, %c0_81], %67 {strides = array<i32>} : memref<18x18x16xf32, #tpu.memory_space<vmem>>, vector<18x1x16xf32>,
    %c1_82 = arith.constant 1 : index
    %c1_83 = arith.constant 1 : index
    %c0_84 = arith.constant 0 : index
    %70 = vector.load %arg14[%c1_82, %c1_83, %c0_84] : memref<18x18x16xf32, #tpu.memory_space<vmem>>, vector<16x16x16xf32>
    tpu.vector_store %arg14[%c1_82, %c1_83, %c0_84], %63 {strides = array<i32>} : memref<18x18x16xf32, #tpu.memory_space<vmem>>, vector<16x16x16xf32>,
    %c0_85 = arith.constant 0 : index
    %c0_86 = arith.constant 0 : index
    %c0_87 = arith.constant 0 : index
    %71 = vector.load %arg14[%c0_85, %c0_86, %c0_87] : memref<18x18x16xf32, #tpu.memory_space<vmem>>, vector<16x16x16xf32>
    %72 = vector.shape_cast %71 : vector<16x16x16xf32> to vector<256x16xf32>
    %c0_88 = arith.constant 0 : index
    %c0_89 = arith.constant 0 : index
    %73 = vector.load %arg16[%c0_88, %c0_89] : memref<256x144xf32, #tpu.memory_space<vmem>>, vector<256x16xf32>
    tpu.vector_store %arg16[%c0_88, %c0_89], %72 {strides = array<i32>} : memref<256x144xf32, #tpu.memory_space<vmem>>, vector<256x16xf32>,
    %c0_90 = arith.constant 0 : index
    %c1_91 = arith.constant 1 : index
    %c0_92 = arith.constant 0 : index
    %74 = vector.load %arg14[%c0_90, %c1_91, %c0_92] : memref<18x18x16xf32, #tpu.memory_space<vmem>>, vector<16x16x16xf32>
    %75 = vector.shape_cast %74 : vector<16x16x16xf32> to vector<256x16xf32>
    %c0_93 = arith.constant 0 : index
    %c16_94 = arith.constant 16 : index
    %76 = vector.load %arg16[%c0_93, %c16_94] : memref<256x144xf32, #tpu.memory_space<vmem>>, vector<256x16xf32>
    tpu.vector_store %arg16[%c0_93, %c16_94], %75 {strides = array<i32>} : memref<256x144xf32, #tpu.memory_space<vmem>>, vector<256x16xf32>,
    %c0_95 = arith.constant 0 : index
    %c2_96 = arith.constant 2 : index
    %c0_97 = arith.constant 0 : index
    %77 = vector.load %arg14[%c0_95, %c2_96, %c0_97] : memref<18x18x16xf32, #tpu.memory_space<vmem>>, vector<16x16x16xf32>
    %78 = vector.shape_cast %77 : vector<16x16x16xf32> to vector<256x16xf32>
    %c0_98 = arith.constant 0 : index
    %c32_99 = arith.constant 32 : index
    %79 = vector.load %arg16[%c0_98, %c32_99] : memref<256x144xf32, #tpu.memory_space<vmem>>, vector<256x16xf32>
    tpu.vector_store %arg16[%c0_98, %c32_99], %78 {strides = array<i32>} : memref<256x144xf32, #tpu.memory_space<vmem>>, vector<256x16xf32>,
    %c1_100 = arith.constant 1 : index
    %c0_101 = arith.constant 0 : index
    %c0_102 = arith.constant 0 : index
    %80 = vector.load %arg14[%c1_100, %c0_101, %c0_102] : memref<18x18x16xf32, #tpu.memory_space<vmem>>, vector<16x16x16xf32>
    %81 = vector.shape_cast %80 : vector<16x16x16xf32> to vector<256x16xf32>
    %c0_103 = arith.constant 0 : index
    %c48_104 = arith.constant 48 : index
    %82 = vector.load %arg16[%c0_103, %c48_104] : memref<256x144xf32, #tpu.memory_space<vmem>>, vector<256x16xf32>
    tpu.vector_store %arg16[%c0_103, %c48_104], %81 {strides = array<i32>} : memref<256x144xf32, #tpu.memory_space<vmem>>, vector<256x16xf32>,
    %c1_105 = arith.constant 1 : index
    %c1_106 = arith.constant 1 : index
    %c0_107 = arith.constant 0 : index
    %83 = vector.load %arg14[%c1_105, %c1_106, %c0_107] : memref<18x18x16xf32, #tpu.memory_space<vmem>>, vector<16x16x16xf32>
    %84 = vector.shape_cast %83 : vector<16x16x16xf32> to vector<256x16xf32>
    %c0_108 = arith.constant 0 : index
    %c64_109 = arith.constant 64 : index
    %85 = vector.load %arg16[%c0_108, %c64_109] : memref<256x144xf32, #tpu.memory_space<vmem>>, vector<256x16xf32>
    tpu.vector_store %arg16[%c0_108, %c64_109], %84 {strides = array<i32>} : memref<256x144xf32, #tpu.memory_space<vmem>>, vector<256x16xf32>,
    %c1_110 = arith.constant 1 : index
    %c2_111 = arith.constant 2 : index
    %c0_112 = arith.constant 0 : index
    %86 = vector.load %arg14[%c1_110, %c2_111, %c0_112] : memref<18x18x16xf32, #tpu.memory_space<vmem>>, vector<16x16x16xf32>
    %87 = vector.shape_cast %86 : vector<16x16x16xf32> to vector<256x16xf32>
    %c0_113 = arith.constant 0 : index
    %c80 = arith.constant 80 : index
    %88 = vector.load %arg16[%c0_113, %c80] : memref<256x144xf32, #tpu.memory_space<vmem>>, vector<256x16xf32>
    tpu.vector_store %arg16[%c0_113, %c80], %87 {strides = array<i32>} : memref<256x144xf32, #tpu.memory_space<vmem>>, vector<256x16xf32>,
    %c2_114 = arith.constant 2 : index
    %c0_115 = arith.constant 0 : index
    %c0_116 = arith.constant 0 : index
    %89 = vector.load %arg14[%c2_114, %c0_115, %c0_116] : memref<18x18x16xf32, #tpu.memory_space<vmem>>, vector<16x16x16xf32>
    %90 = vector.shape_cast %89 : vector<16x16x16xf32> to vector<256x16xf32>
    %c0_117 = arith.constant 0 : index
    %c96 = arith.constant 96 : index
    %91 = vector.load %arg16[%c0_117, %c96] : memref<256x144xf32, #tpu.memory_space<vmem>>, vector<256x16xf32>
    tpu.vector_store %arg16[%c0_117, %c96], %90 {strides = array<i32>} : memref<256x144xf32, #tpu.memory_space<vmem>>, vector<256x16xf32>,
    %c2_118 = arith.constant 2 : index
    %c1_119 = arith.constant 1 : index
    %c0_120 = arith.constant 0 : index
    %92 = vector.load %arg14[%c2_118, %c1_119, %c0_120] : memref<18x18x16xf32, #tpu.memory_space<vmem>>, vector<16x16x16xf32>
    %93 = vector.shape_cast %92 : vector<16x16x16xf32> to vector<256x16xf32>
    %c0_121 = arith.constant 0 : index
    %c112 = arith.constant 112 : index
    %94 = vector.load %arg16[%c0_121, %c112] : memref<256x144xf32, #tpu.memory_space<vmem>>, vector<256x16xf32>
    tpu.vector_store %arg16[%c0_121, %c112], %93 {strides = array<i32>} : memref<256x144xf32, #tpu.memory_space<vmem>>, vector<256x16xf32>,
    %c2_122 = arith.constant 2 : index
    %c2_123 = arith.constant 2 : index
    %c0_124 = arith.constant 0 : index
    %95 = vector.load %arg14[%c2_122, %c2_123, %c0_124] : memref<18x18x16xf32, #tpu.memory_space<vmem>>, vector<16x16x16xf32>
    %96 = vector.shape_cast %95 : vector<16x16x16xf32> to vector<256x16xf32>
    %c0_125 = arith.constant 0 : index
    %c128 = arith.constant 128 : index
    %97 = vector.load %arg16[%c0_125, %c128] : memref<256x144xf32, #tpu.memory_space<vmem>>, vector<256x16xf32>
    tpu.vector_store %arg16[%c0_125, %c128], %96 {strides = array<i32>} : memref<256x144xf32, #tpu.memory_space<vmem>>, vector<256x16xf32>,
    %c0_126 = arith.constant 0 : index
    %c0_127 = arith.constant 0 : index
    %98 = vector.load %arg16[%c0_126, %c0_127] : memref<256x144xf32, #tpu.memory_space<vmem>>, vector<256x144xf32>
    %c0_128 = arith.constant 0 : index
    %c0_129 = arith.constant 0 : index
    %99 = vector.load %arg7[%c0_128, %c0_129] : memref<144x16xf32, #tpu.memory_space<vmem>>, vector<144x16xf32>
    %cst_130 = arith.constant dense<0.000000e+00> : vector<256x16xf32>
    %100 = tpu.matmul %98, %99, %cst_130 {dimension_numbers = #tpu.dot_dimension_numbers<[1], [0], [0], [1], [0, 0, 1, 1], [], []>} : vector<256x144xf32>, vector<144x16xf32>, vector<256x16xf32> -> vector<256x16xf32>
    %101 = vector.shape_cast %1 : vector<16x16x8xf32> to vector<256x8xf32>
    %c0_131 = arith.constant 0 : index
    %c0_132 = arith.constant 0 : index
    %102 = vector.load %arg8[%c0_131, %c0_132] : memref<8x16xf32, #tpu.memory_space<vmem>>, vector<8x16xf32>
    %cst_133 = arith.constant dense<0.000000e+00> : vector<256x16xf32>
    %103 = tpu.matmul %101, %102, %cst_133 {dimension_numbers = #tpu.dot_dimension_numbers<[1], [0], [0], [1], [0, 0, 1, 1], [], []>} : vector<256x8xf32>, vector<8x16xf32>, vector<256x16xf32> -> vector<256x16xf32>
    %c0_134 = arith.constant 0 : index
    %c0_135 = arith.constant 0 : index
    %104 = vector.load %arg9[%c0_134, %c0_135] : memref<1x16xf32, #tpu.memory_space<vmem>>, vector<1x16xf32>
    %105 = vector.shape_cast %104 : vector<1x16xf32> to vector<16xf32>
    %106 = vector.shape_cast %105 : vector<16xf32> to vector<1x16xf32>
    %107 = vector.broadcast %106 : vector<1x16xf32> to vector<256x16xf32>
    %108 = arith.addf %103, %107 : vector<256x16xf32>
    %109 = arith.addf %100, %108 : vector<256x16xf32>
    %cst_136 = arith.constant dense<0.000000e+00> : vector<16xf32>
    %110 = vector.multi_reduction <add>, %109, %cst_136 [0] : vector<256x16xf32> to vector<16xf32>
    %111 = vector.shape_cast %110 : vector<16xf32> to vector<1x16xf32>
    %cst_137 = arith.constant 3.906250e-03 : f32
    %112 = vector.broadcast %cst_137 : f32 to vector<1x16xf32>
    %113 = arith.mulf %111, %112 : vector<1x16xf32>
    %c0_138 = arith.constant 0 : index
    %c0_139 = arith.constant 0 : index
    %114 = vector.load %arg10[%c0_138, %c0_139] : memref<16x2xf32, #tpu.memory_space<vmem>>, vector<16x2xf32>
    %cst_140 = arith.constant dense<0.000000e+00> : vector<1x2xf32>
    %115 = tpu.matmul %113, %114, %cst_140 {dimension_numbers = #tpu.dot_dimension_numbers<[1], [0], [0], [1], [0, 0, 1, 1], [], []>} : vector<1x16xf32>, vector<16x2xf32>, vector<1x2xf32> -> vector<1x2xf32>
    %cst_141 = arith.constant 0.000000e+00 : f32
    %116 = vector.broadcast %cst_141 : f32 to vector<1x2xf32>
    %117 = arith.maximumf %115, %116 : vector<1x2xf32>
    %c0_142 = arith.constant 0 : index
    %c0_143 = arith.constant 0 : index
    %118 = vector.load %arg11[%c0_142, %c0_143] : memref<2x16xf32, #tpu.memory_space<vmem>>, vector<2x16xf32>
    %cst_144 = arith.constant dense<0.000000e+00> : vector<1x16xf32>
    %119 = tpu.matmul %117, %118, %cst_144 {dimension_numbers = #tpu.dot_dimension_numbers<[1], [0], [0], [1], [0, 0, 1, 1], [], []>} : vector<1x2xf32>, vector<2x16xf32>, vector<1x16xf32> -> vector<1x16xf32>
    %cst_145 = arith.constant -3.000000e+01 : f32
    %cst_146 = arith.constant 3.000000e+01 : f32
    %120 = vector.broadcast %cst_145 : f32 to vector<1x16xf32>
    %121 = arith.maximumf %120, %119 : vector<1x16xf32>
    %122 = vector.broadcast %cst_146 : f32 to vector<1x16xf32>
    %123 = arith.minimumf %122, %121 : vector<1x16xf32>
    %cst_147 = arith.constant 0.000000e+00 : f32
    %124 = vector.broadcast %cst_147 : f32 to vector<1x16xf32>
    %125 = arith.subf %124, %123 : vector<1x16xf32>
    %126 = math.exp %125 : vector<1x16xf32>
    %cst_148 = arith.constant 1.000000e+00 : f32
    %127 = vector.broadcast %cst_148 : f32 to vector<1x16xf32>
    %128 = arith.addf %127, %126 : vector<1x16xf32>
    %129 = tpu.reciprocal %128 {approx = true} : vector<1x16xf32> -> vector<1x16xf32>
    %130 = vector.broadcast %129 : vector<1x16xf32> to vector<256x16xf32>
    %131 = arith.mulf %109, %130 : vector<256x16xf32>
    %132 = vector.shape_cast %131 : vector<256x16xf32> to vector<1x16x16x16xf32>
    %c0_149 = arith.constant 0 : index
    %c0_150 = arith.constant 0 : index
    %c0_151 = arith.constant 0 : index
    %c0_152 = arith.constant 0 : index
    %133 = vector.load %arg12[%c0_149, %c0_150, %c0_151, %c0_152] : memref<1x16x16x16xf32, #tpu.memory_space<vmem>>, vector<1x16x16x16xf32>
    tpu.vector_store %arg12[%c0_149, %c0_150, %c0_151, %c0_152], %132 {strides = array<i32>} : memref<1x16x16x16xf32, #tpu.memory_space<vmem>>, vector<1x16x16x16xf32>,
    return
  }
  func.func @transform_0(%arg0: i32) -> (i32, i32, i32, i32) {
    %c0_i32 = arith.constant 0 : i32
    %c0_i32_0 = arith.constant 0 : i32
    %c0_i32_1 = arith.constant 0 : i32
    %c0_i32_2 = arith.constant 0 : i32
    return %arg0, %c0_i32, %c0_i32_0, %c0_i32_1 : i32, i32, i32, i32
  }
  func.func @transform_1(%arg0: i32) -> (i32, i32) {
    %c0_i32 = arith.constant 0 : i32
    %c0_i32_0 = arith.constant 0 : i32
    %c0_i32_1 = arith.constant 0 : i32
    return %c0_i32, %c0_i32_0 : i32, i32
  }
  func.func @transform_2(%arg0: i32) -> (i32, i32) {
    %c0_i32 = arith.constant 0 : i32
    %c0_i32_0 = arith.constant 0 : i32
    %c0_i32_1 = arith.constant 0 : i32
    return %c0_i32, %c0_i32_0 : i32, i32
  }
  func.func @transform_3(%arg0: i32) -> (i32, i32) {
    %c0_i32 = arith.constant 0 : i32
    %c0_i32_0 = arith.constant 0 : i32
    %c0_i32_1 = arith.constant 0 : i32
    return %c0_i32, %c0_i32_0 : i32, i32
  }
  func.func @transform_4(%arg0: i32) -> (i32, i32) {
    %c0_i32 = arith.constant 0 : i32
    %c0_i32_0 = arith.constant 0 : i32
    %c0_i32_1 = arith.constant 0 : i32
    return %c0_i32, %c0_i32_0 : i32, i32
  }
  func.func @transform_5(%arg0: i32) -> (i32, i32) {
    %c0_i32 = arith.constant 0 : i32
    %c0_i32_0 = arith.constant 0 : i32
    %c0_i32_1 = arith.constant 0 : i32
    return %c0_i32, %c0_i32_0 : i32, i32
  }
  func.func @transform_6(%arg0: i32) -> (i32, i32) {
    %c0_i32 = arith.constant 0 : i32
    %c0_i32_0 = arith.constant 0 : i32
    %c0_i32_1 = arith.constant 0 : i32
    return %c0_i32, %c0_i32_0 : i32, i32
  }
  func.func @transform_7(%arg0: i32) -> (i32, i32) {
    %c0_i32 = arith.constant 0 : i32
    %c0_i32_0 = arith.constant 0 : i32
    %c0_i32_1 = arith.constant 0 : i32
    return %c0_i32, %c0_i32_0 : i32, i32
  }
  func.func @transform_8(%arg0: i32) -> (i32, i32) {
    %c0_i32 = arith.constant 0 : i32
    %c0_i32_0 = arith.constant 0 : i32
    %c0_i32_1 = arith.constant 0 : i32
    return %c0_i32, %c0_i32_0 : i32, i32
  }
  func.func @transform_9(%arg0: i32) -> (i32, i32) {
    %c0_i32 = arith.constant 0 : i32
    %c0_i32_0 = arith.constant 0 : i32
    %c0_i32_1 = arith.constant 0 : i32
    return %c0_i32, %c0_i32_0 : i32, i32
  }
  func.func @transform_10(%arg0: i32) -> (i32, i32) {
    %c0_i32 = arith.constant 0 : i32
    %c0_i32_0 = arith.constant 0 : i32
    %c0_i32_1 = arith.constant 0 : i32
    return %c0_i32, %c0_i32_0 : i32, i32
  }
  func.func @transform_11(%arg0: i32) -> (i32, i32, i32, i32) {
    %c0_i32 = arith.constant 0 : i32
    %c0_i32_0 = arith.constant 0 : i32
    %c0_i32_1 = arith.constant 0 : i32
    %c0_i32_2 = arith.constant 0 : i32
    return %arg0, %c0_i32, %c0_i32_0, %c0_i32_1 : i32, i32, i32, i32
  }
}

</mosaic_0001>

<llo_original>
// kernel: tpu_custom_call.1
$region0: #{tpu_custom_call.1}
  #allocation0 [shape = 'u32[]', space=smem, size = 0x4, offset = 0x4, fixed_abs, tag = 'smem constant byte address 0x4 - core index']
  #allocation1 [shape = 'u32[72,128]{1,0:T(1,128)}', space=vmem, size = 0x9000, scoped, tag = 'internal scratch']
  #allocation2 [shape = 'f32[18,18,8]{2,1,0:T(8,128)}', space=vmem, size = 0x36000, scoped, tag = 'scratch operand']
  #allocation3 [shape = 'f32[18,18,16]{2,1,0:T(8,128)}', space=vmem, size = 0x36000, scoped, tag = 'scratch operand']
  #allocation4 [shape = 'f32[256,72]{1,0:T(8,128)}', space=vmem, size = 0x20000, scoped, tag = 'scratch operand']
  #allocation5 [shape = 'f32[256,144]{1,0:T(8,128)}', space=vmem, size = 0x40000, scoped, tag = 'scratch operand']
  %s0 = inlined_call_operand.vmem [shape: f32[2,16,16,8], index: 0, kind: input, shape index: {}]
  %s1 = inlined_call_operand.vmem [shape: f32[1,8], index: 1, kind: input, shape index: {}]
  %s2 = inlined_call_operand.vmem [shape: f32[1,8], index: 2, kind: input, shape index: {}]
  %s3 = inlined_call_operand.vmem [shape: f32[72,16], index: 3, kind: input, shape index: {}]
  %s4 = inlined_call_operand.vmem [shape: f32[1,16], index: 4, kind: input, shape index: {}]
  %s5 = inlined_call_operand.vmem [shape: f32[1,16], index: 5, kind: input, shape index: {}]
  %s6 = inlined_call_operand.vmem [shape: f32[144,16], index: 6, kind: input, shape index: {}]
  %s7 = inlined_call_operand.vmem [shape: f32[8,16], index: 7, kind: input, shape index: {}]
  %s8 = inlined_call_operand.vmem [shape: f32[1,16], index: 8, kind: input, shape index: {}]
  %s9 = inlined_call_operand.vmem [shape: f32[16,2], index: 9, kind: input, shape index: {}]
  %s10 = inlined_call_operand.vmem [shape: f32[2,16], index: 10, kind: input, shape index: {}]
  %s11 = inlined_call_operand.hbm [shape: f32[2,16,16,16], index: 11, kind: output, shape index: {}]
  %s12 = sld [smem:[#allocation0]]
  $region77: #{tpu_custom_call.1} parent=0
    _
  %s14 = ssub.s32 1, %s12
  %s15 = scalar_select 0, %s14, %s12
  $region1: #{tpu_custom_call.1} parent=0
    #allocation6 [shape = 'u8[262144]{0}', space=vmem, size = 0x40000, scoped, tag = 'output window, operand 0']
    #allocation7 [shape = 's32[2]{0}', space=sflag, size = 0x8, scoped, tag = 'scoped memory for tpu_custom_call.1']
    %16 = vsyncpa [#allocation7], 0
    %s17 = scalar_lea.sflag [#allocation7], 1
    %18 = vsyncpa %s17, 0
    loop: start=0, step=1, limit=4
    $region2: #{tpu_custom_call.1} parent=1 // loop_pre_header
      _
    $region3: #{tpu_custom_call.1} parent=1 // loop_header
      %s20 = sphi 0, %s24
      %p21 = scmp.ge.s32.totalorder %s20, 4
      %s30 = sphi 0, %s32
      %s33 = sphi 0, %s30
      %s34 = sphi 0, %s33
      %s50 = sphi 0, %s34
      %s54 = sphi 0, %s54
      %s56 = sphi 0, %s54
      %s57 = sphi 0, %s56
      %s71 = sphi 0, %s57
      %s75 = sphi 0, %s75
      %s77 = sphi 0, %s75
      %s78 = sphi 0, %s77
      %s92 = sphi 0, %s78
      %s96 = sphi 0, %s96
      %s98 = sphi 0, %s96
      %s99 = sphi 0, %s98
      %s113 = sphi 0, %s99
      %s117 = sphi 0, %s117
      %s119 = sphi 0, %s117
      %s120 = sphi 0, %s119
      %s134 = sphi 0, %s120
      %s138 = sphi 0, %s138
      %s140 = sphi 0, %s138
      %s141 = sphi 0, %s140
      %s155 = sphi 0, %s141
      %s159 = sphi 0, %s159
      %s161 = sphi 0, %s159
      %s162 = sphi 0, %s161
      %s176 = sphi 0, %s162
      %s180 = sphi 0, %s180
      %s182 = sphi 0, %s180
      %s183 = sphi 0, %s182
      %s197 = sphi 0, %s183
      %s201 = sphi 0, %s201
      %s203 = sphi 0, %s201
      %s204 = sphi 0, %s203
      %s218 = sphi 0, %s204
      %s222 = sphi 0, %s222
      %s224 = sphi 0, %s222
      %s225 = sphi 0, %s224
      %s239 = sphi 0, %s225
      %s243 = sphi 0, %s243
      %s245 = sphi 0, %s243
      %s246 = sphi 0, %s245
      %s260 = sphi 0, %s246
      %s266 = sphi 0, %s268
      %s269 = sphi 0, %s266
      %s270 = sphi 0, %s269
      %s286 = sphi 0, %s270
    $region4: #{tpu_custom_call.1} parent=1 // loop_header_branch
      %23 = sbr.rel (%p21) target = $region8
    $region5: #{tpu_custom_call.1} parent=1 // loop_body
      %s25 = ssub.s32 %s20, 1
      %s26 = ssub.s32 %s20, 2
      %s27 = sadd.s32 %s20, 1
      %s28 = ssub.s32 %s20, %s27
      %p29 = scmp.eq.s32.totalorder %s28, 0
      %s31 = sadd.s32 %s30, 1
      %s32 = scalar_select %p29, %s30, %s31
      %p35 = pneg %p29
      %p36 = scmp.eq.s32.totalorder %s20, 1
      %p37 = por %p35, %p36
      %p38 = scmp.ne.s32.totalorder %s30, %s33
      %p39 = scmp.eq.s32.totalorder %s20, 0
      %p40 = por %p38, %p39
      %p41 = scmp.ne.s32.totalorder %s30, %s33
      %p42 = scmp.eq.s32.totalorder %s25, 1
      %p43 = por %p41, %p42
      %p44 = scmp.ne.s32.totalorder %s33, %s34
      %p45 = scmp.eq.s32.totalorder %s25, 0
      %p46 = por %p44, %p45
      %p47 = scmp.ne.s32.totalorder %s33, %s34
      %p48 = scmp.eq.s32.totalorder %s26, 1
      %p49 = por %p47, %p48
      %p51 = scmp.ne.s32.totalorder %s34, %s50
      %p52 = scmp.eq.s32.totalorder %s26, 0
      %p53 = por %p51, %p52
      %s55 = sadd.s32 %s54, 1
      %p58 = scmp.eq.s32.totalorder %s20, 1
      %p59 = scmp.ne.s32.totalorder %s54, %s56
      %p60 = scmp.eq.s32.totalorder %s20, 0
      %p61 = por %p59, %p60
      %p62 = scmp.ne.s32.totalorder %s54, %s56
      %p63 = scmp.eq.s32.totalorder %s25, 1
      %p64 = por %p62, %p63
      %p65 = scmp.ne.s32.totalorder %s56, %s57
      %p66 = scmp.eq.s32.totalorder %s25, 0
      %p67 = por %p65, %p66
      %p68 = scmp.ne.s32.totalorder %s56, %s57
      %p69 = scmp.eq.s32.totalorder %s26, 1
      %p70 = por %p68, %p69
      %p72 = scmp.ne.s32.totalorder %s57, %s71
      %p73 = scmp.eq.s32.totalorder %s26, 0
      %p74 = por %p72, %p73
      %s76 = sadd.s32 %s75, 1
      %p79 = scmp.eq.s32.totalorder %s20, 1
      %p80 = scmp.ne.s32.totalorder %s75, %s77
      %p81 = scmp.eq.s32.totalorder %s20, 0
      %p82 = por %p80, %p81
      %p83 = scmp.ne.s32.totalorder %s75, %s77
      %p84 = scmp.eq.s32.totalorder %s25, 1
      %p85 = por %p83, %p84
      %p86 = scmp.ne.s32.totalorder %s77, %s78
      %p87 = scmp.eq.s32.totalorder %s25, 0
      %p88 = por %p86, %p87
      %p89 = scmp.ne.s32.totalorder %s77, %s78
      %p90 = scmp.eq.s32.totalorder %s26, 1
      %p91 = por %p89, %p90
      %p93 = scmp.ne.s32.totalorder %s78, %s92
      %p94 = scmp.eq.s32.totalorder %s26, 0
      %p95 = por %p93, %p94
      %s97 = sadd.s32 %s96, 1
      %p100 = scmp.eq.s32.totalorder %s20, 1
      %p101 = scmp.ne.s32.totalorder %s96, %s98
      %p102 = scmp.eq.s32.totalorder %s20, 0
      %p103 = por %p101, %p102
      %p104 = scmp.ne.s32.totalorder %s96, %s98
      %p105 = scmp.eq.s32.totalorder %s25, 1
      %p106 = por %p104, %p105
      %p107 = scmp.ne.s32.totalorder %s98, %s99
      %p108 = scmp.eq.s32.totalorder %s25, 0
      %p109 = por %p107, %p108
      %p110 = scmp.ne.s32.totalorder %s98, %s99
      %p111 = scmp.eq.s32.totalorder %s26, 1
      %p112 = por %p110, %p111
      %p114 = scmp.ne.s32.totalorder %s99, %s113
      %p115 = scmp.eq.s32.totalorder %s26, 0
      %p116 = por %p114, %p115
      %s118 = sadd.s32 %s117, 1
      %p121 = scmp.eq.s32.totalorder %s20, 1
      %p122 = scmp.ne.s32.totalorder %s117, %s119
      %p123 = scmp.eq.s32.totalorder %s20, 0
      %p124 = por %p122, %p123
      %p125 = scmp.ne.s32.totalorder %s117, %s119
      %p126 = scmp.eq.s32.totalorder %s25, 1
      %p127 = por %p125, %p126
      %p128 = scmp.ne.s32.totalorder %s119, %s120
      %p129 = scmp.eq.s32.totalorder %s25, 0
      %p130 = por %p128, %p129
      %p131 = scmp.ne.s32.totalorder %s119, %s120
      %p132 = scmp.eq.s32.totalorder %s26, 1
      %p133 = por %p131, %p132
      %p135 = scmp.ne.s32.totalorder %s120, %s134
      %p136 = scmp.eq.s32.totalorder %s26, 0
      %p137 = por %p135, %p136
      %s139 = sadd.s32 %s138, 1
      %p142 = scmp.eq.s32.totalorder %s20, 1
      %p143 = scmp.ne.s32.totalorder %s138, %s140
      %p144 = scmp.eq.s32.totalorder %s20, 0
      %p145 = por %p143, %p144
      %p146 = scmp.ne.s32.totalorder %s138, %s140
      %p147 = scmp.eq.s32.totalorder %s25, 1
      %p148 = por %p146, %p147
      %p149 = scmp.ne.s32.totalorder %s140, %s141
      %p150 = scmp.eq.s32.totalorder %s25, 0
      %p151 = por %p149, %p150
      %p152 = scmp.ne.s32.totalorder %s140, %s141
      %p153 = scmp.eq.s32.totalorder %s26, 1
      %p154 = por %p152, %p153
      %p156 = scmp.ne.s32.totalorder %s141, %s155
      %p157 = scmp.eq.s32.totalorder %s26, 0
      %p158 = por %p156, %p157
      %s160 = sadd.s32 %s159, 1
      %p163 = scmp.eq.s32.totalorder %s20, 1
      %p164 = scmp.ne.s32.totalorder %s159, %s161
      %p165 = scmp.eq.s32.totalorder %s20, 0
      %p166 = por %p164, %p165
      %p167 = scmp.ne.s32.totalorder %s159, %s161
      %p168 = scmp.eq.s32.totalorder %s25, 1
      %p169 = por %p167, %p168
      %p170 = scmp.ne.s32.totalorder %s161, %s162
      %p171 = scmp.eq.s32.totalorder %s25, 0
      %p172 = por %p170, %p171
      %p173 = scmp.ne.s32.totalorder %s161, %s162
      %p174 = scmp.eq.s32.totalorder %s26, 1
      %p175 = por %p173, %p174
      %p177 = scmp.ne.s32.totalorder %s162, %s176
      %p178 = scmp.eq.s32.totalorder %s26, 0
      %p179 = por %p177, %p178
      %s181 = sadd.s32 %s180, 1
      %p184 = scmp.eq.s32.totalorder %s20, 1
      %p185 = scmp.ne.s32.totalorder %s180, %s182
      %p186 = scmp.eq.s32.totalorder %s20, 0
      %p187 = por %p185, %p186
      %p188 = scmp.ne.s32.totalorder %s180, %s182
      %p189 = scmp.eq.s32.totalorder %s25, 1
      %p190 = por %p188, %p189
      %p191 = scmp.ne.s32.totalorder %s182, %s183
      %p192 = scmp.eq.s32.totalorder %s25, 0
      %p193 = por %p191, %p192
      %p194 = scmp.ne.s32.totalorder %s182, %s183
      %p195 = scmp.eq.s32.totalorder %s26, 1
      %p196 = por %p194, %p195
      %p198 = scmp.ne.s32.totalorder %s183, %s197
      %p199 = scmp.eq.s32.totalorder %s26, 0
      %p200 = por %p198, %p199
      %s202 = sadd.s32 %s201, 1
      %p205 = scmp.eq.s32.totalorder %s20, 1
      %p206 = scmp.ne.s32.totalorder %s201, %s203
      %p207 = scmp.eq.s32.totalorder %s20, 0
      %p208 = por %p206, %p207
      %p209 = scmp.ne.s32.totalorder %s201, %s203
      %p210 = scmp.eq.s32.totalorder %s25, 1
      %p211 = por %p209, %p210
      %p212 = scmp.ne.s32.totalorder %s203, %s204
      %p213 = scmp.eq.s32.totalorder %s25, 0
      %p214 = por %p212, %p213
      %p215 = scmp.ne.s32.totalorder %s203, %s204
      %p216 = scmp.eq.s32.totalorder %s26, 1
      %p217 = por %p215, %p216
      %p219 = scmp.ne.s32.totalorder %s204, %s218
      %p220 = scmp.eq.s32.totalorder %s26, 0
      %p221 = por %p219, %p220
      %s223 = sadd.s32 %s222, 1
      %p226 = scmp.eq.s32.totalorder %s20, 1
      %p227 = scmp.ne.s32.totalorder %s222, %s224
      %p228 = scmp.eq.s32.totalorder %s20, 0
      %p229 = por %p227, %p228
      %p230 = scmp.ne.s32.totalorder %s222, %s224
      %p231 = scmp.eq.s32.totalorder %s25, 1
      %p232 = por %p230, %p231
      %p233 = scmp.ne.s32.totalorder %s224, %s225
      %p234 = scmp.eq.s32.totalorder %s25, 0
      %p235 = por %p233, %p234
      %p236 = scmp.ne.s32.totalorder %s224, %s225
      %p237 = scmp.eq.s32.totalorder %s26, 1
      %p238 = por %p236, %p237
      %p240 = scmp.ne.s32.totalorder %s225, %s239
      %p241 = scmp.eq.s32.totalorder %s26, 0
      %p242 = por %p240, %p241
      %s244 = sadd.s32 %s243, 1
      %p247 = scmp.eq.s32.totalorder %s20, 1
      %p248 = scmp.ne.s32.totalorder %s243, %s245
      %p249 = scmp.eq.s32.totalorder %s20, 0
      %p250 = por %p248, %p249
      %p251 = scmp.ne.s32.totalorder %s243, %s245
      %p252 = scmp.eq.s32.totalorder %s25, 1
      %p253 = por %p251, %p252
      %p254 = scmp.ne.s32.totalorder %s245, %s246
      %p255 = scmp.eq.s32.totalorder %s25, 0
      %p256 = por %p254, %p255
      %p257 = scmp.ne.s32.totalorder %s245, %s246
      %p258 = scmp.eq.s32.totalorder %s26, 1
      %p259 = por %p257, %p258
      %p261 = scmp.ne.s32.totalorder %s246, %s260
      %p262 = scmp.eq.s32.totalorder %s26, 0
      %p263 = por %p261, %p262
      %s264 = ssub.s32 %s20, %s27
      %p265 = scmp.eq.s32.totalorder %s264, 0
      %s267 = sadd.s32 %s266, 1
      %s268 = scalar_select %p265, %s266, %s267
      %p271 = pneg %p265
      %p272 = scmp.eq.s32.totalorder %s20, 1
      %p273 = por %p271, %p272
      %p274 = scmp.ne.s32.totalorder %s266, %s269
      %p275 = scmp.eq.s32.totalorder %s20, 0
      %p276 = por %p274, %p275
      %p277 = scmp.ne.s32.totalorder %s266, %s269
      %p278 = scmp.eq.s32.totalorder %s25, 1
      %p279 = por %p277, %p278
      %p280 = scmp.ne.s32.totalorder %s269, %s270
      %p281 = scmp.eq.s32.totalorder %s25, 0
      %p282 = por %p280, %p281
      %p283 = scmp.ne.s32.totalorder %s269, %s270
      %p284 = scmp.eq.s32.totalorder %s26, 1
      %p285 = por %p283, %p284
      %p287 = scmp.ne.s32.totalorder %s270, %s286
      %p288 = scmp.eq.s32.totalorder %s26, 0
      %p289 = por %p287, %p288
      %p290 = scmp.le.s32.totalorder 1, %s20
      %p291 = scmp.lt.s32.totalorder %s20, 3
      %p292 = pnand %p290, %p291
      %p293 = pneg %p292
      // Predicated region
      $region9: #{tpu_custom_call.1} parent=5 // pred_check
        _
      $region10: #{tpu_custom_call.1} parent=5 // pred_check_branch
        %295 = sbr.rel (%p292) target = $region12
      $region11: #{tpu_custom_call.1} parent=5 // pred_region
        %s296 = ssub.s32 %s20, 1
        // Predicated region
        $region13: #{tpu_custom_call.1} parent=11 // pred_check
          %p297 = pneg %p67
        $region14: #{tpu_custom_call.1} parent=11 // pred_check_branch
          %299 = sbr.rel (%p297) target = $region16
        $region15: #{tpu_custom_call.1} parent=11 // pred_region
          _
        $region16: #{tpu_custom_call.1} parent=11 // pred_fallthru
          _
        // Predicated region
        $region17: #{tpu_custom_call.1} parent=11 // pred_check
          %p300 = pneg %p88
        $region18: #{tpu_custom_call.1} parent=11 // pred_check_branch
          %302 = sbr.rel (%p300) target = $region20
        $region19: #{tpu_custom_call.1} parent=11 // pred_region
          _
        $region20: #{tpu_custom_call.1} parent=11 // pred_fallthru
          _
        // Predicated region
        $region21: #{tpu_custom_call.1} parent=11 // pred_check
          %p303 = pneg %p109
        $region22: #{tpu_custom_call.1} parent=11 // pred_check_branch
          %305 = sbr.rel (%p303) target = $region24
        $region23: #{tpu_custom_call.1} parent=11 // pred_region
          _
        $region24: #{tpu_custom_call.1} parent=11 // pred_fallthru
          _
        // Predicated region
        $region25: #{tpu_custom_call.1} parent=11 // pred_check
          %p306 = pneg %p130
        $region26: #{tpu_custom_call.1} parent=11 // pred_check_branch
          %308 = sbr.rel (%p306) target = $region28
        $region27: #{tpu_custom_call.1} parent=11 // pred_region
          _
        $region28: #{tpu_custom_call.1} parent=11 // pred_fallthru
          _
        // Predicated region
        $region29: #{tpu_custom_call.1} parent=11 // pred_check
          %p309 = pneg %p151
        $region30: #{tpu_custom_call.1} parent=11 // pred_check_branch
          %311 = sbr.rel (%p309) target = $region32
        $region31: #{tpu_custom_call.1} parent=11 // pred_region
          _
        $region32: #{tpu_custom_call.1} parent=11 // pred_fallthru
          _
        // Predicated region
        $region33: #{tpu_custom_call.1} parent=11 // pred_check
          %p312 = pneg %p172
        $region34: #{tpu_custom_call.1} parent=11 // pred_check_branch
          %314 = sbr.rel (%p312) target = $region36
        $region35: #{tpu_custom_call.1} parent=11 // pred_region
          _
        $region36: #{tpu_custom_call.1} parent=11 // pred_fallthru
          _
        // Predicated region
        $region37: #{tpu_custom_call.1} parent=11 // pred_check
          %p315 = pneg %p193
        $region38: #{tpu_custom_call.1} parent=11 // pred_check_branch
          %317 = sbr.rel (%p315) target = $region40
        $region39: #{tpu_custom_call.1} parent=11 // pred_region
          _
        $region40: #{tpu_custom_call.1} parent=11 // pred_fallthru
          _
        // Predicated region
        $region41: #{tpu_custom_call.1} parent=11 // pred_check
          %p318 = pneg %p214
        $region42: #{tpu_custom_call.1} parent=11 // pred_check_branch
          %320 = sbr.rel (%p318) target = $region44
        $region43: #{tpu_custom_call.1} parent=11 // pred_region
          _
        $region44: #{tpu_custom_call.1} parent=11 // pred_fallthru
          _
        // Predicated region
        $region45: #{tpu_custom_call.1} parent=11 // pred_check
          %p321 = pneg %p235
        $region46: #{tpu_custom_call.1} parent=11 // pred_check_branch
          %323 = sbr.rel (%p321) target = $region48
        $region47: #{tpu_custom_call.1} parent=11 // pred_region
          _
        $region48: #{tpu_custom_call.1} parent=11 // pred_fallthru
          _
        // Predicated region
        $region49: #{tpu_custom_call.1} parent=11 // pred_check
          %p324 = pneg %p256
        $region50: #{tpu_custom_call.1} parent=11 // pred_check_branch
          %326 = sbr.rel (%p324) target = $region52
        $region51: #{tpu_custom_call.1} parent=11 // pred_region
          _
        $region52: #{tpu_custom_call.1} parent=11 // pred_fallthru
          _
      $region12: #{tpu_custom_call.1} parent=5 // pred_fallthru
        _
      %p327 = scmp.lt.s32.totalorder %s20, 2
      // Predicated region
      $region53: #{tpu_custom_call.1} parent=5 // pred_check
        %p328 = pneg %p327
      $region54: #{tpu_custom_call.1} parent=5 // pred_check_branch
        %330 = sbr.rel (%p328) target = $region56
      $region55: #{tpu_custom_call.1} parent=5 // pred_region
        // Predicated region
        $region57: #{tpu_custom_call.1} parent=55 // pred_check
          %p331 = pneg %p40
        $region58: #{tpu_custom_call.1} parent=55 // pred_check_branch
          %333 = sbr.rel (%p331) target = $region60
        $region59: #{tpu_custom_call.1} parent=55 // pred_region
          %p334 = scmp.lt.s32.totalorder %s20, 1
          %s335 = scalar_select %p334, %s20, 1
          %s336 = smul.addr %s335, 32
          %s337 = smul.addr %s336, 8
          %s338 = scalar_lea.vmem %s0, %s337
        $region60: #{tpu_custom_call.1} parent=55 // pred_fallthru
          _
      $region56: #{tpu_custom_call.1} parent=5 // pred_fallthru
        _
      %p339 = scmp.le.s32.totalorder 1, %s20
      %p340 = scmp.lt.s32.totalorder %s20, 3
      %p341 = pnand %p339, %p340
      %p342 = pneg %p341
      // Predicated region
      $region61: #{tpu_custom_call.1} parent=5 // pred_check
        _
      $region62: #{tpu_custom_call.1} parent=5 // pred_check_branch
        %344 = sbr.rel (%p341) target = $region64
      $region63: #{tpu_custom_call.1} parent=5 // pred_region
        %s345 = ssub.s32 %s20, 1
        %p346 = scmp.lt.s32.totalorder %s25, 1
        %s347 = scalar_select %p346, %s25, 1
        %s348 = smul.addr %s347, 32
        %s349 = smul.addr %s348, 8
        %s350 = scalar_lea.vmem %s0, %s349
        %p351 = pneg %p46
        %p352 = pneg %p43
        %p353 = pneg %p67
        %p354 = pneg %p64
        %p355 = pneg %p88
        %p356 = pneg %p85
        %p357 = pneg %p109
        %p358 = pneg %p106
        %p359 = pneg %p130
        %p360 = pneg %p127
        %p361 = pneg %p151
        %p362 = pneg %p148
        %p363 = pneg %p172
        %p364 = pneg %p169
        %p365 = pneg %p193
        %p366 = pneg %p190
        %p367 = pneg %p214
        %p368 = pneg %p211
        %p369 = pneg %p235
        %p370 = pneg %p232
        %p371 = pneg %p256
        %p372 = pneg %p253
        %p373 = pneg %p282
        %p374 = pneg %p279
        %s375 = sand.u32 %s269, 1
        %s376 = scalar_lea.sflag [#allocation7], %s375
        %s377 = sand.u32 %s269, 1
        %s378 = smul.addr %s377, 256
        %s379 = scalar_lea.vmem [#allocation6], %s378
        %p380 = scmp.lt.s32.totalorder %s25, 1
        %s381 = scalar_select %p380, %s25, 1
        %s382 = smul.addr %s381, 32
        %s383 = smul.addr %s382, 8
        %s384 = scalar_lea.vmem %s0, %s383
        %v385 = vld [vmem:[%s384] sm:$0xff]
        %v386 = vld [vmem:[%s384 + $0x8] sm:$0xff]
        %v387 = vld [vmem:[%s384 + $0x10] sm:$0xff]
        %v388 = vld [vmem:[%s384 + $0x18] sm:$0xff]
        %v389 = vld [vmem:[%s384 + $0x20] sm:$0xff]
        %v390 = vld [vmem:[%s384 + $0x28] sm:$0xff]
        %v391 = vld [vmem:[%s384 + $0x30] sm:$0xff]
        %v392 = vld [vmem:[%s384 + $0x38] sm:$0xff]
        %v393 = vld [vmem:[%s384 + $0x40] sm:$0xff]
        %v394 = vld [vmem:[%s384 + $0x48] sm:$0xff]
        %v395 = vld [vmem:[%s384 + $0x50] sm:$0xff]
        %v396 = vld [vmem:[%s384 + $0x58] sm:$0xff]
        %v397 = vld [vmem:[%s384 + $0x60] sm:$0xff]
        %v398 = vld [vmem:[%s384 + $0x68] sm:$0xff]
        %v399 = vld [vmem:[%s384 + $0x70] sm:$0xff]
        %v400 = vld [vmem:[%s384 + $0x78] sm:$0xff]
        %v401 = vld [vmem:[%s384 + $0x80] sm:$0xff]
        %v402 = vld [vmem:[%s384 + $0x88] sm:$0xff]
        %v403 = vld [vmem:[%s384 + $0x90] sm:$0xff]
        %v404 = vld [vmem:[%s384 + $0x98] sm:$0xff]
        %v405 = vld [vmem:[%s384 + $0xa0] sm:$0xff]
        %v406 = vld [vmem:[%s384 + $0xa8] sm:$0xff]
        %v407 = vld [vmem:[%s384 + $0xb0] sm:$0xff]
        %v408 = vld [vmem:[%s384 + $0xb8] sm:$0xff]
        %v409 = vld [vmem:[%s384 + $0xc0] sm:$0xff]
        %v410 = vld [vmem:[%s384 + $0xc8] sm:$0xff]
        %v411 = vld [vmem:[%s384 + $0xd0] sm:$0xff]
        %v412 = vld [vmem:[%s384 + $0xd8] sm:$0xff]
        %v413 = vld [vmem:[%s384 + $0xe0] sm:$0xff]
        %v414 = vld [vmem:[%s384 + $0xe8] sm:$0xff]
        %v415 = vld [vmem:[%s384 + $0xf0] sm:$0xff]
        %v416 = vld [vmem:[%s384 + $0xf8] sm:$0xff]
        %v417 = vld [vmem:[%s1] sm:$0x1]
        %v419 = vperm.slane %v417, 0
        %v421 = vmul.f32 %v385, %v419
        %v422 = vmul.f32 %v386, %v419
        %v423 = vmul.f32 %v387, %v419
        %v424 = vmul.f32 %v388, %v419
        %v425 = vmul.f32 %v389, %v419
        %v426 = vmul.f32 %v390, %v419
        %v427 = vmul.f32 %v391, %v419
        %v428 = vmul.f32 %v392, %v419
        %v429 = vmul.f32 %v393, %v419
        %v430 = vmul.f32 %v394, %v419
        %v431 = vmul.f32 %v395, %v419
        %v432 = vmul.f32 %v396, %v419
        %v433 = vmul.f32 %v397, %v419
        %v434 = vmul.f32 %v398, %v419
        %v435 = vmul.f32 %v399, %v419
        %v436 = vmul.f32 %v400, %v419
        %v437 = vmul.f32 %v401, %v419
        %v438 = vmul.f32 %v402, %v419
        %v439 = vmul.f32 %v403, %v419
        %v440 = vmul.f32 %v404, %v419
        %v441 = vmul.f32 %v405, %v419
        %v442 = vmul.f32 %v406, %v419
        %v443 = vmul.f32 %v407, %v419
        %v444 = vmul.f32 %v408, %v419
        %v445 = vmul.f32 %v409, %v419
        %v446 = vmul.f32 %v410, %v419
        %v447 = vmul.f32 %v411, %v419
        %v448 = vmul.f32 %v412, %v419
        %v449 = vmul.f32 %v413, %v419
        %v450 = vmul.f32 %v414, %v419
        %v451 = vmul.f32 %v415, %v419
        %v452 = vmul.f32 %v416, %v419
        %v453 = vld [vmem:[%s2] sm:$0x1]
        %v455 = vperm.slane %v453, 0
        %v457 = vadd.f32 %v421, %v455
        %v458 = vadd.f32 %v422, %v455
        %v459 = vadd.f32 %v423, %v455
        %v460 = vadd.f32 %v424, %v455
        %v461 = vadd.f32 %v425, %v455
        %v462 = vadd.f32 %v426, %v455
        %v463 = vadd.f32 %v427, %v455
        %v464 = vadd.f32 %v428, %v455
        %v465 = vadd.f32 %v429, %v455
        %v466 = vadd.f32 %v430, %v455
        %v467 = vadd.f32 %v431, %v455
        %v468 = vadd.f32 %v432, %v455
        %v469 = vadd.f32 %v433, %v455
        %v470 = vadd.f32 %v434, %v455
        %v471 = vadd.f32 %v435, %v455
        %v472 = vadd.f32 %v436, %v455
        %v473 = vadd.f32 %v437, %v455
        %v474 = vadd.f32 %v438, %v455
        %v475 = vadd.f32 %v439, %v455
        %v476 = vadd.f32 %v440, %v455
        %v477 = vadd.f32 %v441, %v455
        %v478 = vadd.f32 %v442, %v455
        %v479 = vadd.f32 %v443, %v455
        %v480 = vadd.f32 %v444, %v455
        %v481 = vadd.f32 %v445, %v455
        %v482 = vadd.f32 %v446, %v455
        %v483 = vadd.f32 %v447, %v455
        %v484 = vadd.f32 %v448, %v455
        %v485 = vadd.f32 %v449, %v455
        %v486 = vadd.f32 %v450, %v455
        %v487 = vadd.f32 %v451, %v455
        %v488 = vadd.f32 %v452, %v455
        %v489 = vmax.f32 %v457, 0.0
        %v490 = vmax.f32 %v458, 0.0
        %v491 = vmax.f32 %v459, 0.0
        %v492 = vmax.f32 %v460, 0.0
        %v493 = vmax.f32 %v461, 0.0
        %v494 = vmax.f32 %v462, 0.0
        %v495 = vmax.f32 %v463, 0.0
        %v496 = vmax.f32 %v464, 0.0
        %v497 = vmax.f32 %v465, 0.0
        %v498 = vmax.f32 %v466, 0.0
        %v499 = vmax.f32 %v467, 0.0
        %v500 = vmax.f32 %v468, 0.0
        %v501 = vmax.f32 %v469, 0.0
        %v502 = vmax.f32 %v470, 0.0
        %v503 = vmax.f32 %v471, 0.0
        %v504 = vmax.f32 %v472, 0.0
        %v505 = vmax.f32 %v473, 0.0
        %v506 = vmax.f32 %v474, 0.0
        %v507 = vmax.f32 %v475, 0.0
        %v508 = vmax.f32 %v476, 0.0
        %v509 = vmax.f32 %v477, 0.0
        %v510 = vmax.f32 %v478, 0.0
        %v511 = vmax.f32 %v479, 0.0
        %v512 = vmax.f32 %v480, 0.0
        %v513 = vmax.f32 %v481, 0.0
        %v514 = vmax.f32 %v482, 0.0
        %v515 = vmax.f32 %v483, 0.0
        %v516 = vmax.f32 %v484, 0.0
        %v517 = vmax.f32 %v485, 0.0
        %v518 = vmax.f32 %v486, 0.0
        %v519 = vmax.f32 %v487, 0.0
        %v520 = vmax.f32 %v488, 0.0
        %vm521 = vcmask 64512
        %522 = vst.msk [vmem:[#allocation2] sm:$0xff] %vm521, 0.0
        %523 = vst.msk [vmem:[#allocation2 + $0x8] sm:$0xff] %vm521, 0.0
        %vm524 = vcmask 58368
        %525 = vst.msk [vmem:[#allocation2 + $0x10] sm:$0x3] %vm524, 0.0
        %s526 = scalar_lea.vmem [#allocation2], 408
        %527 = vst.msk [vmem:[%s526] sm:$0xff] %vm521, 0.0
        %528 = vst.msk [vmem:[%s526 + $0x8] sm:$0xff] %vm521, 0.0
        %529 = vst.msk [vmem:[%s526 + $0x10] sm:$0x3] %vm524, 0.0
        %vm530 = vcmask 57344
        %531 = vst.msk [vmem:[#allocation2] sm:$0x1] %vm530, 0.0
        %532 = vst.msk [vmem:[#allocation2 + $0x18] sm:$0x1] %vm530, 0.0
        %533 = vst.msk [vmem:[#allocation2 + $0x30] sm:$0x1] %vm530, 0.0
        %534 = vst.msk [vmem:[#allocation2 + $0x48] sm:$0x1] %vm530, 0.0
        %535 = vst.msk [vmem:[#allocation2 + $0x60] sm:$0x1] %vm530, 0.0
        %536 = vst.msk [vmem:[#allocation2 + $0x78] sm:$0x1] %vm530, 0.0
        %537 = vst.msk [vmem:[#allocation2 + $0x90] sm:$0x1] %vm530, 0.0
        %538 = vst.msk [vmem:[#allocation2 + $0xa8] sm:$0x1] %vm530, 0.0
        %539 = vst.msk [vmem:[#allocation2 + $0xc0] sm:$0x1] %vm530, 0.0
        %540 = vst.msk [vmem:[#allocation2 + $0xd8] sm:$0x1] %vm530, 0.0
        %541 = vst.msk [vmem:[#allocation2 + $0xf0] sm:$0x1] %vm530, 0.0
        %542 = vst.msk [vmem:[#allocation2 + $0x108] sm:$0x1] %vm530, 0.0
        %543 = vst.msk [vmem:[#allocation2 + $0x120] sm:$0x1] %vm530, 0.0
        %544 = vst.msk [vmem:[#allocation2 + $0x138] sm:$0x1] %vm530, 0.0
        %545 = vst.msk [vmem:[#allocation2 + $0x150] sm:$0x1] %vm530, 0.0
        %546 = vst.msk [vmem:[#allocation2 + $0x168] sm:$0x1] %vm530, 0.0
        %547 = vst.msk [vmem:[#allocation2 + $0x180] sm:$0x1] %vm530, 0.0
        %548 = vst.msk [vmem:[#allocation2 + $0x198] sm:$0x1] %vm530, 0.0
        %549 = vst.msk [vmem:[#allocation2 + $0x11] sm:$0x1] %vm530, 0.0
        %550 = vst.msk [vmem:[#allocation2 + $0x29] sm:$0x1] %vm530, 0.0
        %551 = vst.msk [vmem:[#allocation2 + $0x41] sm:$0x1] %vm530, 0.0
        %552 = vst.msk [vmem:[#allocation2 + $0x59] sm:$0x1] %vm530, 0.0
        %553 = vst.msk [vmem:[#allocation2 + $0x71] sm:$0x1] %vm530, 0.0
        %554 = vst.msk [vmem:[#allocation2 + $0x89] sm:$0x1] %vm530, 0.0
        %555 = vst.msk [vmem:[#allocation2 + $0xa1] sm:$0x1] %vm530, 0.0
        %556 = vst.msk [vmem:[#allocation2 + $0xb9] sm:$0x1] %vm530, 0.0
        %557 = vst.msk [vmem:[#allocation2 + $0xd1] sm:$0x1] %vm530, 0.0
        %558 = vst.msk [vmem:[#allocation2 + $0xe9] sm:$0x1] %vm530, 0.0
        %559 = vst.msk [vmem:[#allocation2 + $0x101] sm:$0x1] %vm530, 0.0
        %560 = vst.msk [vmem:[#allocation2 + $0x119] sm:$0x1] %vm530, 0.0
        %561 = vst.msk [vmem:[#allocation2 + $0x131] sm:$0x1] %vm530, 0.0
        %562 = vst.msk [vmem:[#allocation2 + $0x149] sm:$0x1] %vm530, 0.0
        %563 = vst.msk [vmem:[#allocation2 + $0x161] sm:$0x1] %vm530, 0.0
        %564 = vst.msk [vmem:[#allocation2 + $0x179] sm:$0x1] %vm530, 0.0
        %565 = vst.msk [vmem:[#allocation2 + $0x191] sm:$0x1] %vm530, 0.0
        %566 = vst.msk [vmem:[#allocation2 + $0x1a9] sm:$0x1] %vm530, 0.0
        %s567 = scalar_lea.vmem [#allocation2], 24
        %568 = vst.msk [vmem:[%s567 + $0x1] sm:$0xff] %vm521, %v489
        %569 = vst.msk [vmem:[%s567 + $0x9] sm:$0xff] %vm521, %v490
        %570 = vst.msk [vmem:[%s567 + $0x19] sm:$0xff] %vm521, %v491
        %571 = vst.msk [vmem:[%s567 + $0x21] sm:$0xff] %vm521, %v492
        %572 = vst.msk [vmem:[%s567 + $0x31] sm:$0xff] %vm521, %v493
        %573 = vst.msk [vmem:[%s567 + $0x39] sm:$0xff] %vm521, %v494
        %574 = vst.msk [vmem:[%s567 + $0x49] sm:$0xff] %vm521, %v495
        %575 = vst.msk [vmem:[%s567 + $0x51] sm:$0xff] %vm521, %v496
        %576 = vst.msk [vmem:[%s567 + $0x61] sm:$0xff] %vm521, %v497
        %577 = vst.msk [vmem:[%s567 + $0x69] sm:$0xff] %vm521, %v498
        %578 = vst.msk [vmem:[%s567 + $0x79] sm:$0xff] %vm521, %v499
        %579 = vst.msk [vmem:[%s567 + $0x81] sm:$0xff] %vm521, %v500
        %580 = vst.msk [vmem:[%s567 + $0x91] sm:$0xff] %vm521, %v501
        %581 = vst.msk [vmem:[%s567 + $0x99] sm:$0xff] %vm521, %v502
        %582 = vst.msk [vmem:[%s567 + $0xa9] sm:$0xff] %vm521, %v503
        %583 = vst.msk [vmem:[%s567 + $0xb1] sm:$0xff] %vm521, %v504
        %584 = vst.msk [vmem:[%s567 + $0xc1] sm:$0xff] %vm521, %v505
        %585 = vst.msk [vmem:[%s567 + $0xc9] sm:$0xff] %vm521, %v506
        %586 = vst.msk [vmem:[%s567 + $0xd9] sm:$0xff] %vm521, %v507
        %587 = vst.msk [vmem:[%s567 + $0xe1] sm:$0xff] %vm521, %v508
        %588 = vst.msk [vmem:[%s567 + $0xf1] sm:$0xff] %vm521, %v509
        %589 = vst.msk [vmem:[%s567 + $0xf9] sm:$0xff] %vm521, %v510
        %590 = vst.msk [vmem:[%s567 + $0x109] sm:$0xff] %vm521, %v511
        %591 = vst.msk [vmem:[%s567 + $0x111] sm:$0xff] %vm521, %v512
        %592 = vst.msk [vmem:[%s567 + $0x121] sm:$0xff] %vm521, %v513
        %593 = vst.msk [vmem:[%s567 + $0x129] sm:$0xff] %vm521, %v514
        %594 = vst.msk [vmem:[%s567 + $0x139] sm:$0xff] %vm521, %v515
        %595 = vst.msk [vmem:[%s567 + $0x141] sm:$0xff] %vm521, %v516
        %596 = vst.msk [vmem:[%s567 + $0x151] sm:$0xff] %vm521, %v517
        %597 = vst.msk [vmem:[%s567 + $0x159] sm:$0xff] %vm521, %v518
        %598 = vst.msk [vmem:[%s567 + $0x169] sm:$0xff] %vm521, %v519
        %599 = vst.msk [vmem:[%s567 + $0x171] sm:$0xff] %vm521, %v520
        %v600 = vld [vmem:[#allocation2] sm:$0xff]
        %v601 = vld [vmem:[#allocation2 + $0x8] sm:$0xff]
        %v602 = vld [vmem:[#allocation2 + $0x18] sm:$0xff]
        %v603 = vld [vmem:[#allocation2 + $0x20] sm:$0xff]
        %v604 = vld [vmem:[#allocation2 + $0x30] sm:$0xff]
        %v605 = vld [vmem:[#allocation2 + $0x38] sm:$0xff]
        %v606 = vld [vmem:[#allocation2 + $0x48] sm:$0xff]
        %v607 = vld [vmem:[#allocation2 + $0x50] sm:$0xff]
        %v608 = vld [vmem:[#allocation2 + $0x60] sm:$0xff]
        %v609 = vld [vmem:[#allocation2 + $0x68] sm:$0xff]
        %v610 = vld [vmem:[#allocation2 + $0x78] sm:$0xff]
        %v611 = vld [vmem:[#allocation2 + $0x80] sm:$0xff]
        %v612 = vld [vmem:[#allocation2 + $0x90] sm:$0xff]
        %v613 = vld [vmem:[#allocation2 + $0x98] sm:$0xff]
        %v614 = vld [vmem:[#allocation2 + $0xa8] sm:$0xff]
        %v615 = vld [vmem:[#allocation2 + $0xb0] sm:$0xff]
        %v616 = vld [vmem:[#allocation2 + $0xc0] sm:$0xff]
        %v617 = vld [vmem:[#allocation2 + $0xc8] sm:$0xff]
        %v618 = vld [vmem:[#allocation2 + $0xd8] sm:$0xff]
        %v619 = vld [vmem:[#allocation2 + $0xe0] sm:$0xff]
        %v620 = vld [vmem:[#allocation2 + $0xf0] sm:$0xff]
        %v621 = vld [vmem:[#allocation2 + $0xf8] sm:$0xff]
        %v622 = vld [vmem:[#allocation2 + $0x108] sm:$0xff]
        %v623 = vld [vmem:[#allocation2 + $0x110] sm:$0xff]
        %v624 = vld [vmem:[#allocation2 + $0x120] sm:$0xff]
        %v625 = vld [vmem:[#allocation2 + $0x128] sm:$0xff]
        %v626 = vld [vmem:[#allocation2 + $0x138] sm:$0xff]
        %v627 = vld [vmem:[#allocation2 + $0x140] sm:$0xff]
        %v628 = vld [vmem:[#allocation2 + $0x150] sm:$0xff]
        %v629 = vld [vmem:[#allocation2 + $0x158] sm:$0xff]
        %v630 = vld [vmem:[#allocation2 + $0x168] sm:$0xff]
        %v631 = vld [vmem:[#allocation2 + $0x170] sm:$0xff]
        %632 = vst.msk [vmem:[#allocation4] sm:$0xff] %vm521, %v600
        %633 = vst.msk [vmem:[#allocation4 + $0x8] sm:$0xff] %vm521, %v601
        %634 = vst.msk [vmem:[#allocation4 + $0x10] sm:$0xff] %vm521, %v602
        %635 = vst.msk [vmem:[#allocation4 + $0x18] sm:$0xff] %vm521, %v603
        %636 = vst.msk [vmem:[#allocation4 + $0x20] sm:$0xff] %vm521, %v604
        %637 = vst.msk [vmem:[#allocation4 + $0x28] sm:$0xff] %vm521, %v605
        %638 = vst.msk [vmem:[#allocation4 + $0x30] sm:$0xff] %vm521, %v606
        %639 = vst.msk [vmem:[#allocation4 + $0x38] sm:$0xff] %vm521, %v607
        %640 = vst.msk [vmem:[#allocation4 + $0x40] sm:$0xff] %vm521, %v608
        %641 = vst.msk [vmem:[#allocation4 + $0x48] sm:$0xff] %vm521, %v609
        %642 = vst.msk [vmem:[#allocation4 + $0x50] sm:$0xff] %vm521, %v610
        %643 = vst.msk [vmem:[#allocation4 + $0x58] sm:$0xff] %vm521, %v611
        %644 = vst.msk [vmem:[#allocation4 + $0x60] sm:$0xff] %vm521, %v612
        %645 = vst.msk [vmem:[#allocation4 + $0x68] sm:$0xff] %vm521, %v613
        %646 = vst.msk [vmem:[#allocation4 + $0x70] sm:$0xff] %vm521, %v614
        %647 = vst.msk [vmem:[#allocation4 + $0x78] sm:$0xff] %vm521, %v615
        %648 = vst.msk [vmem:[#allocation4 + $0x80] sm:$0xff] %vm521, %v616
        %649 = vst.msk [vmem:[#allocation4 + $0x88] sm:$0xff] %vm521, %v617
        %650 = vst.msk [vmem:[#allocation4 + $0x90] sm:$0xff] %vm521, %v618
        %651 = vst.msk [vmem:[#allocation4 + $0x98] sm:$0xff] %vm521, %v619
        %652 = vst.msk [vmem:[#allocation4 + $0xa0] sm:$0xff] %vm521, %v620
        %653 = vst.msk [vmem:[#allocation4 + $0xa8] sm:$0xff] %vm521, %v621
        %654 = vst.msk [vmem:[#allocation4 + $0xb0] sm:$0xff] %vm521, %v622
        %655 = vst.msk [vmem:[#allocation4 + $0xb8] sm:$0xff] %vm521, %v623
        %656 = vst.msk [vmem:[#allocation4 + $0xc0] sm:$0xff] %vm521, %v624
        %657 = vst.msk [vmem:[#allocation4 + $0xc8] sm:$0xff] %vm521, %v625
        %658 = vst.msk [vmem:[#allocation4 + $0xd0] sm:$0xff] %vm521, %v626
        %659 = vst.msk [vmem:[#allocation4 + $0xd8] sm:$0xff] %vm521, %v627
        %660 = vst.msk [vmem:[#allocation4 + $0xe0] sm:$0xff] %vm521, %v628
        %661 = vst.msk [vmem:[#allocation4 + $0xe8] sm:$0xff] %vm521, %v629
        %662 = vst.msk [vmem:[#allocation4 + $0xf0] sm:$0xff] %vm521, %v630
        %663 = vst.msk [vmem:[#allocation4 + $0xf8] sm:$0xff] %vm521, %v631
        %v664 = vld [vmem:[#allocation2 + $0x1] sm:$0xff]
        %v665 = vld [vmem:[#allocation2 + $0x9] sm:$0xff]
        %v666 = vld [vmem:[#allocation2 + $0x19] sm:$0xff]
        %v667 = vld [vmem:[#allocation2 + $0x21] sm:$0xff]
        %v668 = vld [vmem:[#allocation2 + $0x31] sm:$0xff]
        %v669 = vld [vmem:[#allocation2 + $0x39] sm:$0xff]
        %v670 = vld [vmem:[#allocation2 + $0x49] sm:$0xff]
        %v671 = vld [vmem:[#allocation2 + $0x51] sm:$0xff]
        %v672 = vld [vmem:[#allocation2 + $0x61] sm:$0xff]
        %v673 = vld [vmem:[#allocation2 + $0x69] sm:$0xff]
        %v674 = vld [vmem:[#allocation2 + $0x79] sm:$0xff]
        %v675 = vld [vmem:[#allocation2 + $0x81] sm:$0xff]
        %v676 = vld [vmem:[#allocation2 + $0x91] sm:$0xff]
        %v677 = vld [vmem:[#allocation2 + $0x99] sm:$0xff]
        %v678 = vld [vmem:[#allocation2 + $0xa9] sm:$0xff]
        %v679 = vld [vmem:[#allocation2 + $0xb1] sm:$0xff]
        %v680 = vld [vmem:[#allocation2 + $0xc1] sm:$0xff]
        %v681 = vld [vmem:[#allocation2 + $0xc9] sm:$0xff]
        %v682 = vld [vmem:[#allocation2 + $0xd9] sm:$0xff]
        %v683 = vld [vmem:[#allocation2 + $0xe1] sm:$0xff]
        %v684 = vld [vmem:[#allocation2 + $0xf1] sm:$0xff]
        %v685 = vld [vmem:[#allocation2 + $0xf9] sm:$0xff]
        %v686 = vld [vmem:[#allocation2 + $0x109] sm:$0xff]
        %v687 = vld [vmem:[#allocation2 + $0x111] sm:$0xff]
        %v688 = vld [vmem:[#allocation2 + $0x121] sm:$0xff]
        %v689 = vld [vmem:[#allocation2 + $0x129] sm:$0xff]
        %v690 = vld [vmem:[#allocation2 + $0x139] sm:$0xff]
        %v691 = vld [vmem:[#allocation2 + $0x141] sm:$0xff]
        %v692 = vld [vmem:[#allocation2 + $0x151] sm:$0xff]
        %v693 = vld [vmem:[#allocation2 + $0x159] sm:$0xff]
        %v694 = vld [vmem:[#allocation2 + $0x169] sm:$0xff]
        %v695 = vld [vmem:[#allocation2 + $0x171] sm:$0xff]
        %728 = vrot.lane.b32.xlu0 %v664, 8
        %v729 = vpop.permute.xlu0 %728
        %730 = vrot.lane.b32.xlu0 %v665, 8
        %v731 = vpop.permute.xlu0 %730
        %732 = vrot.lane.b32.xlu0 %v666, 8
        %v733 = vpop.permute.xlu0 %732
        %734 = vrot.lane.b32.xlu0 %v667, 8
        %v735 = vpop.permute.xlu0 %734
        %736 = vrot.lane.b32.xlu0 %v668, 8
        %v737 = vpop.permute.xlu0 %736
        %738 = vrot.lane.b32.xlu0 %v669, 8
        %v739 = vpop.permute.xlu0 %738
        %740 = vrot.lane.b32.xlu0 %v670, 8
        %v741 = vpop.permute.xlu0 %740
        %742 = vrot.lane.b32.xlu0 %v671, 8
        %v743 = vpop.permute.xlu0 %742
        %744 = vrot.lane.b32.xlu0 %v672, 8
        %v745 = vpop.permute.xlu0 %744
        %746 = vrot.lane.b32.xlu0 %v673, 8
        %v747 = vpop.permute.xlu0 %746
        %748 = vrot.lane.b32.xlu0 %v674, 8
        %v749 = vpop.permute.xlu0 %748
        %750 = vrot.lane.b32.xlu0 %v675, 8
        %v751 = vpop.permute.xlu0 %750
        %752 = vrot.lane.b32.xlu0 %v676, 8
        %v753 = vpop.permute.xlu0 %752
        %754 = vrot.lane.b32.xlu0 %v677, 8
        %v755 = vpop.permute.xlu0 %754
        %756 = vrot.lane.b32.xlu0 %v678, 8
        %v757 = vpop.permute.xlu0 %756
        %758 = vrot.lane.b32.xlu0 %v679, 8
        %v759 = vpop.permute.xlu0 %758
        %760 = vrot.lane.b32.xlu0 %v680, 8
        %v761 = vpop.permute.xlu0 %760
        %762 = vrot.lane.b32.xlu0 %v681, 8
        %v763 = vpop.permute.xlu0 %762
        %764 = vrot.lane.b32.xlu0 %v682, 8
        %v765 = vpop.permute.xlu0 %764
        %766 = vrot.lane.b32.xlu0 %v683, 8
        %v767 = vpop.permute.xlu0 %766
        %768 = vrot.lane.b32.xlu0 %v684, 8
        %v769 = vpop.permute.xlu0 %768
        %770 = vrot.lane.b32.xlu0 %v685, 8
        %v771 = vpop.permute.xlu0 %770
        %772 = vrot.lane.b32.xlu0 %v686, 8
        %v773 = vpop.permute.xlu0 %772
        %774 = vrot.lane.b32.xlu0 %v687, 8
        %v775 = vpop.permute.xlu0 %774
        %776 = vrot.lane.b32.xlu0 %v688, 8
        %v777 = vpop.permute.xlu0 %776
        %778 = vrot.lane.b32.xlu0 %v689, 8
        %v779 = vpop.permute.xlu0 %778
        %780 = vrot.lane.b32.xlu0 %v690, 8
        %v781 = vpop.permute.xlu0 %780
        %782 = vrot.lane.b32.xlu0 %v691, 8
        %v783 = vpop.permute.xlu0 %782
        %784 = vrot.lane.b32.xlu0 %v692, 8
        %v785 = vpop.permute.xlu0 %784
        %786 = vrot.lane.b32.xlu0 %v693, 8
        %v787 = vpop.permute.xlu0 %786
        %788 = vrot.lane.b32.xlu0 %v694, 8
        %v789 = vpop.permute.xlu0 %788
        %790 = vrot.lane.b32.xlu0 %v695, 8
        %v791 = vpop.permute.xlu0 %790
        %vm824 = vcmask 130112
        %825 = vst.msk [vmem:[#allocation4] sm:$0xff] %vm824, %v729
        %826 = vst.msk [vmem:[#allocation4 + $0x8] sm:$0xff] %vm824, %v731
        %827 = vst.msk [vmem:[#allocation4 + $0x10] sm:$0xff] %vm824, %v733
        %828 = vst.msk [vmem:[#allocation4 + $0x18] sm:$0xff] %vm824, %v735
        %829 = vst.msk [vmem:[#allocation4 + $0x20] sm:$0xff] %vm824, %v737
        %830 = vst.msk [vmem:[#allocation4 + $0x28] sm:$0xff] %vm824, %v739
        %831 = vst.msk [vmem:[#allocation4 + $0x30] sm:$0xff] %vm824, %v741
        %832 = vst.msk [vmem:[#allocation4 + $0x38] sm:$0xff] %vm824, %v743
        %833 = vst.msk [vmem:[#allocation4 + $0x40] sm:$0xff] %vm824, %v745
        %834 = vst.msk [vmem:[#allocation4 + $0x48] sm:$0xff] %vm824, %v747
        %835 = vst.msk [vmem:[#allocation4 + $0x50] sm:$0xff] %vm824, %v749
        %836 = vst.msk [vmem:[#allocation4 + $0x58] sm:$0xff] %vm824, %v751
        %837 = vst.msk [vmem:[#allocation4 + $0x60] sm:$0xff] %vm824, %v753
        %838 = vst.msk [vmem:[#allocation4 + $0x68] sm:$0xff] %vm824, %v755
        %839 = vst.msk [vmem:[#allocation4 + $0x70] sm:$0xff] %vm824, %v757
        %840 = vst.msk [vmem:[#allocation4 + $0x78] sm:$0xff] %vm824, %v759
        %841 = vst.msk [vmem:[#allocation4 + $0x80] sm:$0xff] %vm824, %v761
        %842 = vst.msk [vmem:[#allocation4 + $0x88] sm:$0xff] %vm824, %v763
        %843 = vst.msk [vmem:[#allocation4 + $0x90] sm:$0xff] %vm824, %v765
        %844 = vst.msk [vmem:[#allocation4 + $0x98] sm:$0xff] %vm824, %v767
        %845 = vst.msk [vmem:[#allocation4 + $0xa0] sm:$0xff] %vm824, %v769
        %846 = vst.msk [vmem:[#allocation4 + $0xa8] sm:$0xff] %vm824, %v771
        %847 = vst.msk [vmem:[#allocation4 + $0xb0] sm:$0xff] %vm824, %v773
        %848 = vst.msk [vmem:[#allocation4 + $0xb8] sm:$0xff] %vm824, %v775
        %849 = vst.msk [vmem:[#allocation4 + $0xc0] sm:$0xff] %vm824, %v777
        %850 = vst.msk [vmem:[#allocation4 + $0xc8] sm:$0xff] %vm824, %v779
        %851 = vst.msk [vmem:[#allocation4 + $0xd0] sm:$0xff] %vm824, %v781
        %852 = vst.msk [vmem:[#allocation4 + $0xd8] sm:$0xff] %vm824, %v783
        %853 = vst.msk [vmem:[#allocation4 + $0xe0] sm:$0xff] %vm824, %v785
        %854 = vst.msk [vmem:[#allocation4 + $0xe8] sm:$0xff] %vm824, %v787
        %855 = vst.msk [vmem:[#allocation4 + $0xf0] sm:$0xff] %vm824, %v789
        %856 = vst.msk [vmem:[#allocation4 + $0xf8] sm:$0xff] %vm824, %v791
        %v857 = vld [vmem:[#allocation2 + $0x2] sm:$0xff]
        %v858 = vld [vmem:[#allocation2 + $0xa] sm:$0xff]
        %v859 = vld [vmem:[#allocation2 + $0x1a] sm:$0xff]
        %v860 = vld [vmem:[#allocation2 + $0x22] sm:$0xff]
        %v861 = vld [vmem:[#allocation2 + $0x32] sm:$0xff]
        %v862 = vld [vmem:[#allocation2 + $0x3a] sm:$0xff]
        %v863 = vld [vmem:[#allocation2 + $0x4a] sm:$0xff]
        %v864 = vld [vmem:[#allocation2 + $0x52] sm:$0xff]
        %v865 = vld [vmem:[#allocation2 + $0x62] sm:$0xff]
        %v866 = vld [vmem:[#allocation2 + $0x6a] sm:$0xff]
        %v867 = vld [vmem:[#allocation2 + $0x7a] sm:$0xff]
        %v868 = vld [vmem:[#allocation2 + $0x82] sm:$0xff]
        %v869 = vld [vmem:[#allocation2 + $0x92] sm:$0xff]
        %v870 = vld [vmem:[#allocation2 + $0x9a] sm:$0xff]
        %v871 = vld [vmem:[#allocation2 + $0xaa] sm:$0xff]
        %v872 = vld [vmem:[#allocation2 + $0xb2] sm:$0xff]
        %v873 = vld [vmem:[#allocation2 + $0xc2] sm:$0xff]
        %v874 = vld [vmem:[#allocation2 + $0xca] sm:$0xff]
        %v875 = vld [vmem:[#allocation2 + $0xda] sm:$0xff]
        %v876 = vld [vmem:[#allocation2 + $0xe2] sm:$0xff]
        %v877 = vld [vmem:[#allocation2 + $0xf2] sm:$0xff]
        %v878 = vld [vmem:[#allocation2 + $0xfa] sm:$0xff]
        %v879 = vld [vmem:[#allocation2 + $0x10a] sm:$0xff]
        %v880 = vld [vmem:[#allocation2 + $0x112] sm:$0xff]
        %v881 = vld [vmem:[#allocation2 + $0x122] sm:$0xff]
        %v882 = vld [vmem:[#allocation2 + $0x12a] sm:$0xff]
        %v883 = vld [vmem:[#allocation2 + $0x13a] sm:$0xff]
        %v884 = vld [vmem:[#allocation2 + $0x142] sm:$0xff]
        %v885 = vld [vmem:[#allocation2 + $0x152] sm:$0xff]
        %v886 = vld [vmem:[#allocation2 + $0x15a] sm:$0xff]
        %v887 = vld [vmem:[#allocation2 + $0x16a] sm:$0xff]
        %v888 = vld [vmem:[#allocation2 + $0x172] sm:$0xff]
        %921 = vrot.lane.b32.xlu0 %v857, 16
        %v922 = vpop.permute.xlu0 %921
        %923 = vrot.lane.b32.xlu0 %v858, 16
        %v924 = vpop.permute.xlu0 %923
        %925 = vrot.lane.b32.xlu0 %v859, 16
        %v926 = vpop.permute.xlu0 %925
        %927 = vrot.lane.b32.xlu0 %v860, 16
        %v928 = vpop.permute.xlu0 %927
        %929 = vrot.lane.b32.xlu0 %v861, 16
        %v930 = vpop.permute.xlu0 %929
        %931 = vrot.lane.b32.xlu0 %v862, 16
        %v932 = vpop.permute.xlu0 %931
        %933 = vrot.lane.b32.xlu0 %v863, 16
        %v934 = vpop.permute.xlu0 %933
        %935 = vrot.lane.b32.xlu0 %v864, 16
        %v936 = vpop.permute.xlu0 %935
        %937 = vrot.lane.b32.xlu0 %v865, 16
        %v938 = vpop.permute.xlu0 %937
        %939 = vrot.lane.b32.xlu0 %v866, 16
        %v940 = vpop.permute.xlu0 %939
        %941 = vrot.lane.b32.xlu0 %v867, 16
        %v942 = vpop.permute.xlu0 %941
        %943 = vrot.lane.b32.xlu0 %v868, 16
        %v944 = vpop.permute.xlu0 %943
        %945 = vrot.lane.b32.xlu0 %v869, 16
        %v946 = vpop.permute.xlu0 %945
        %947 = vrot.lane.b32.xlu0 %v870, 16
        %v948 = vpop.permute.xlu0 %947
        %949 = vrot.lane.b32.xlu0 %v871, 16
        %v950 = vpop.permute.xlu0 %949
        %951 = vrot.lane.b32.xlu0 %v872, 16
        %v952 = vpop.permute.xlu0 %951
        %953 = vrot.lane.b32.xlu0 %v873, 16
        %v954 = vpop.permute.xlu0 %953
        %955 = vrot.lane.b32.xlu0 %v874, 16
        %v956 = vpop.permute.xlu0 %955
        %957 = vrot.lane.b32.xlu0 %v875, 16
        %v958 = vpop.permute.xlu0 %957
        %959 = vrot.lane.b32.xlu0 %v876, 16
        %v960 = vpop.permute.xlu0 %959
        %961 = vrot.lane.b32.xlu0 %v877, 16
        %v962 = vpop.permute.xlu0 %961
        %963 = vrot.lane.b32.xlu0 %v878, 16
        %v964 = vpop.permute.xlu0 %963
        %965 = vrot.lane.b32.xlu0 %v879, 16
        %v966 = vpop.permute.xlu0 %965
        %967 = vrot.lane.b32.xlu0 %v880, 16
        %v968 = vpop.permute.xlu0 %967
        %969 = vrot.lane.b32.xlu0 %v881, 16
        %v970 = vpop.permute.xlu0 %969
        %971 = vrot.lane.b32.xlu0 %v882, 16
        %v972 = vpop.permute.xlu0 %971
        %973 = vrot.lane.b32.xlu0 %v883, 16
        %v974 = vpop.permute.xlu0 %973
        %975 = vrot.lane.b32.xlu0 %v884, 16
        %v976 = vpop.permute.xlu0 %975
        %977 = vrot.lane.b32.xlu0 %v885, 16
        %v978 = vpop.permute.xlu0 %977
        %979 = vrot.lane.b32.xlu0 %v886, 16
        %v980 = vpop.permute.xlu0 %979
        %981 = vrot.lane.b32.xlu0 %v887, 16
        %v982 = vpop.permute.xlu0 %981
        %983 = vrot.lane.b32.xlu0 %v888, 16
        %v984 = vpop.permute.xlu0 %983
        %vm1017 = vcmask 195712
        %1018 = vst.msk [vmem:[#allocation4] sm:$0xff] %vm1017, %v922
        %1019 = vst.msk [vmem:[#allocation4 + $0x8] sm:$0xff] %vm1017, %v924
        %1020 = vst.msk [vmem:[#allocation4 + $0x10] sm:$0xff] %vm1017, %v926
        %1021 = vst.msk [vmem:[#allocation4 + $0x18] sm:$0xff] %vm1017, %v928
        %1022 = vst.msk [vmem:[#allocation4 + $0x20] sm:$0xff] %vm1017, %v930
        %1023 = vst.msk [vmem:[#allocation4 + $0x28] sm:$0xff] %vm1017, %v932
        %1024 = vst.msk [vmem:[#allocation4 + $0x30] sm:$0xff] %vm1017, %v934
        %1025 = vst.msk [vmem:[#allocation4 + $0x38] sm:$0xff] %vm1017, %v936
        %1026 = vst.msk [vmem:[#allocation4 + $0x40] sm:$0xff] %vm1017, %v938
        %1027 = vst.msk [vmem:[#allocation4 + $0x48] sm:$0xff] %vm1017, %v940
        %1028 = vst.msk [vmem:[#allocation4 + $0x50] sm:$0xff] %vm1017, %v942
        %1029 = vst.msk [vmem:[#allocation4 + $0x58] sm:$0xff] %vm1017, %v944
        %1030 = vst.msk [vmem:[#allocation4 + $0x60] sm:$0xff] %vm1017, %v946
        %1031 = vst.msk [vmem:[#allocation4 + $0x68] sm:$0xff] %vm1017, %v948
        %1032 = vst.msk [vmem:[#allocation4 + $0x70] sm:$0xff] %vm1017, %v950
        %1033 = vst.msk [vmem:[#allocation4 + $0x78] sm:$0xff] %vm1017, %v952
        %1034 = vst.msk [vmem:[#allocation4 + $0x80] sm:$0xff] %vm1017, %v954
        %1035 = vst.msk [vmem:[#allocation4 + $0x88] sm:$0xff] %vm1017, %v956
        %1036 = vst.msk [vmem:[#allocation4 + $0x90] sm:$0xff] %vm1017, %v958
        %1037 = vst.msk [vmem:[#allocation4 + $0x98] sm:$0xff] %vm1017, %v960
        %1038 = vst.msk [vmem:[#allocation4 + $0xa0] sm:$0xff] %vm1017, %v962
        %1039 = vst.msk [vmem:[#allocation4 + $0xa8] sm:$0xff] %vm1017, %v964
        %1040 = vst.msk [vmem:[#allocation4 + $0xb0] sm:$0xff] %vm1017, %v966
        %1041 = vst.msk [vmem:[#allocation4 + $0xb8] sm:$0xff] %vm1017, %v968
        %1042 = vst.msk [vmem:[#allocation4 + $0xc0] sm:$0xff] %vm1017, %v970
        %1043 = vst.msk [vmem:[#allocation4 + $0xc8] sm:$0xff] %vm1017, %v972
        %1044 = vst.msk [vmem:[#allocation4 + $0xd0] sm:$0xff] %vm1017, %v974
        %1045 = vst.msk [vmem:[#allocation4 + $0xd8] sm:$0xff] %vm1017, %v976
        %1046 = vst.msk [vmem:[#allocation4 + $0xe0] sm:$0xff] %vm1017, %v978
        %1047 = vst.msk [vmem:[#allocation4 + $0xe8] sm:$0xff] %vm1017, %v980
        %1048 = vst.msk [vmem:[#allocation4 + $0xf0] sm:$0xff] %vm1017, %v982
        %1049 = vst.msk [vmem:[#allocation4 + $0xf8] sm:$0xff] %vm1017, %v984
        %v1050 = vld [vmem:[%s567] sm:$0xff]
        %v1051 = vld [vmem:[%s567 + $0x8] sm:$0xff]
        %v1052 = vld [vmem:[%s567 + $0x18] sm:$0xff]
        %v1053 = vld [vmem:[%s567 + $0x20] sm:$0xff]
        %v1054 = vld [vmem:[%s567 + $0x30] sm:$0xff]
        %v1055 = vld [vmem:[%s567 + $0x38] sm:$0xff]
        %v1056 = vld [vmem:[%s567 + $0x48] sm:$0xff]
        %v1057 = vld [vmem:[%s567 + $0x50] sm:$0xff]
        %v1058 = vld [vmem:[%s567 + $0x60] sm:$0xff]
        %v1059 = vld [vmem:[%s567 + $0x68] sm:$0xff]
        %v1060 = vld [vmem:[%s567 + $0x78] sm:$0xff]
        %v1061 = vld [vmem:[%s567 + $0x80] sm:$0xff]
        %v1062 = vld [vmem:[%s567 + $0x90] sm:$0xff]
        %v1063 = vld [vmem:[%s567 + $0x98] sm:$0xff]
        %v1064 = vld [vmem:[%s567 + $0xa8] sm:$0xff]
        %v1065 = vld [vmem:[%s567 + $0xb0] sm:$0xff]
        %v1066 = vld [vmem:[%s567 + $0xc0] sm:$0xff]
        %v1067 = vld [vmem:[%s567 + $0xc8] sm:$0xff]
        %v1068 = vld [vmem:[%s567 + $0xd8] sm:$0xff]
        %v1069 = vld [vmem:[%s567 + $0xe0] sm:$0xff]
        %v1070 = vld [vmem:[%s567 + $0xf0] sm:$0xff]
        %v1071 = vld [vmem:[%s567 + $0xf8] sm:$0xff]
        %v1072 = vld [vmem:[%s567 + $0x108] sm:$0xff]
        %v1073 = vld [vmem:[%s567 + $0x110] sm:$0xff]
        %v1074 = vld [vmem:[%s567 + $0x120] sm:$0xff]
        %v1075 = vld [vmem:[%s567 + $0x128] sm:$0xff]
        %v1076 = vld [vmem:[%s567 + $0x138] sm:$0xff]
        %v1077 = vld [vmem:[%s567 + $0x140] sm:$0xff]
        %v1078 = vld [vmem:[%s567 + $0x150] sm:$0xff]
        %v1079 = vld [vmem:[%s567 + $0x158] sm:$0xff]
        %v1080 = vld [vmem:[%s567 + $0x168] sm:$0xff]
        %v1081 = vld [vmem:[%s567 + $0x170] sm:$0xff]
        %1114 = vrot.lane.b32.xlu0 %v1050, 24
        %v1115 = vpop.permute.xlu0 %1114
        %1116 = vrot.lane.b32.xlu0 %v1051, 24
        %v1117 = vpop.permute.xlu0 %1116
        %1118 = vrot.lane.b32.xlu0 %v1052, 24
        %v1119 = vpop.permute.xlu0 %1118
        %1120 = vrot.lane.b32.xlu0 %v1053, 24
        %v1121 = vpop.permute.xlu0 %1120
        %1122 = vrot.lane.b32.xlu0 %v1054, 24
        %v1123 = vpop.permute.xlu0 %1122
        %1124 = vrot.lane.b32.xlu0 %v1055, 24
        %v1125 = vpop.permute.xlu0 %1124
        %1126 = vrot.lane.b32.xlu0 %v1056, 24
        %v1127 = vpop.permute.xlu0 %1126
        %1128 = vrot.lane.b32.xlu0 %v1057, 24
        %v1129 = vpop.permute.xlu0 %1128
        %1130 = vrot.lane.b32.xlu0 %v1058, 24
        %v1131 = vpop.permute.xlu0 %1130
        %1132 = vrot.lane.b32.xlu0 %v1059, 24
        %v1133 = vpop.permute.xlu0 %1132
        %1134 = vrot.lane.b32.xlu0 %v1060, 24
        %v1135 = vpop.permute.xlu0 %1134
        %1136 = vrot.lane.b32.xlu0 %v1061, 24
        %v1137 = vpop.permute.xlu0 %1136
        %1138 = vrot.lane.b32.xlu0 %v1062, 24
        %v1139 = vpop.permute.xlu0 %1138
        %1140 = vrot.lane.b32.xlu0 %v1063, 24
        %v1141 = vpop.permute.xlu0 %1140
        %1142 = vrot.lane.b32.xlu0 %v1064, 24
        %v1143 = vpop.permute.xlu0 %1142
        %1144 = vrot.lane.b32.xlu0 %v1065, 24
        %v1145 = vpop.permute.xlu0 %1144
        %1146 = vrot.lane.b32.xlu0 %v1066, 24
        %v1147 = vpop.permute.xlu0 %1146
        %1148 = vrot.lane.b32.xlu0 %v1067, 24
        %v1149 = vpop.permute.xlu0 %1148
        %1150 = vrot.lane.b32.xlu0 %v1068, 24
        %v1151 = vpop.permute.xlu0 %1150
        %1152 = vrot.lane.b32.xlu0 %v1069, 24
        %v1153 = vpop.permute.xlu0 %1152
        %1154 = vrot.lane.b32.xlu0 %v1070, 24
        %v1155 = vpop.permute.xlu0 %1154
        %1156 = vrot.lane.b32.xlu0 %v1071, 24
        %v1157 = vpop.permute.xlu0 %1156
        %1158 = vrot.lane.b32.xlu0 %v1072, 24
        %v1159 = vpop.permute.xlu0 %1158
        %1160 = vrot.lane.b32.xlu0 %v1073, 24
        %v1161 = vpop.permute.xlu0 %1160
        %1162 = vrot.lane.b32.xlu0 %v1074, 24
        %v1163 = vpop.permute.xlu0 %1162
        %1164 = vrot.lane.b32.xlu0 %v1075, 24
        %v1165 = vpop.permute.xlu0 %1164
        %1166 = vrot.lane.b32.xlu0 %v1076, 24
        %v1167 = vpop.permute.xlu0 %1166
        %1168 = vrot.lane.b32.xlu0 %v1077, 24
        %v1169 = vpop.permute.xlu0 %1168
        %1170 = vrot.lane.b32.xlu0 %v1078, 24
        %v1171 = vpop.permute.xlu0 %1170
        %1172 = vrot.lane.b32.xlu0 %v1079, 24
        %v1173 = vpop.permute.xlu0 %1172
        %1174 = vrot.lane.b32.xlu0 %v1080, 24
        %v1175 = vpop.permute.xlu0 %1174
        %1176 = vrot.lane.b32.xlu0 %v1081, 24
        %v1177 = vpop.permute.xlu0 %1176
        %vm1210 = vcmask 261312
        %1211 = vst.msk [vmem:[#allocation4] sm:$0xff] %vm1210, %v1115
        %1212 = vst.msk [vmem:[#allocation4 + $0x8] sm:$0xff] %vm1210, %v1117
        %1213 = vst.msk [vmem:[#allocation4 + $0x10] sm:$0xff] %vm1210, %v1119
        %1214 = vst.msk [vmem:[#allocation4 + $0x18] sm:$0xff] %vm1210, %v1121
        %1215 = vst.msk [vmem:[#allocation4 + $0x20] sm:$0xff] %vm1210, %v1123
        %1216 = vst.msk [vmem:[#allocation4 + $0x28] sm:$0xff] %vm1210, %v1125
        %1217 = vst.msk [vmem:[#allocation4 + $0x30] sm:$0xff] %vm1210, %v1127
        %1218 = vst.msk [vmem:[#allocation4 + $0x38] sm:$0xff] %vm1210, %v1129
        %1219 = vst.msk [vmem:[#allocation4 + $0x40] sm:$0xff] %vm1210, %v1131
        %1220 = vst.msk [vmem:[#allocation4 + $0x48] sm:$0xff] %vm1210, %v1133
        %1221 = vst.msk [vmem:[#allocation4 + $0x50] sm:$0xff] %vm1210, %v1135
        %1222 = vst.msk [vmem:[#allocation4 + $0x58] sm:$0xff] %vm1210, %v1137
        %1223 = vst.msk [vmem:[#allocation4 + $0x60] sm:$0xff] %vm1210, %v1139
        %1224 = vst.msk [vmem:[#allocation4 + $0x68] sm:$0xff] %vm1210, %v1141
        %1225 = vst.msk [vmem:[#allocation4 + $0x70] sm:$0xff] %vm1210, %v1143
        %1226 = vst.msk [vmem:[#allocation4 + $0x78] sm:$0xff] %vm1210, %v1145
        %1227 = vst.msk [vmem:[#allocation4 + $0x80] sm:$0xff] %vm1210, %v1147
        %1228 = vst.msk [vmem:[#allocation4 + $0x88] sm:$0xff] %vm1210, %v1149
        %1229 = vst.msk [vmem:[#allocation4 + $0x90] sm:$0xff] %vm1210, %v1151
        %1230 = vst.msk [vmem:[#allocation4 + $0x98] sm:$0xff] %vm1210, %v1153
        %1231 = vst.msk [vmem:[#allocation4 + $0xa0] sm:$0xff] %vm1210, %v1155
        %1232 = vst.msk [vmem:[#allocation4 + $0xa8] sm:$0xff] %vm1210, %v1157
        %1233 = vst.msk [vmem:[#allocation4 + $0xb0] sm:$0xff] %vm1210, %v1159
        %1234 = vst.msk [vmem:[#allocation4 + $0xb8] sm:$0xff] %vm1210, %v1161
        %1235 = vst.msk [vmem:[#allocation4 + $0xc0] sm:$0xff] %vm1210, %v1163
        %1236 = vst.msk [vmem:[#allocation4 + $0xc8] sm:$0xff] %vm1210, %v1165
        %1237 = vst.msk [vmem:[#allocation4 + $0xd0] sm:$0xff] %vm1210, %v1167
        %1238 = vst.msk [vmem:[#allocation4 + $0xd8] sm:$0xff] %vm1210, %v1169
        %1239 = vst.msk [vmem:[#allocation4 + $0xe0] sm:$0xff] %vm1210, %v1171
        %1240 = vst.msk [vmem:[#allocation4 + $0xe8] sm:$0xff] %vm1210, %v1173
        %1241 = vst.msk [vmem:[#allocation4 + $0xf0] sm:$0xff] %vm1210, %v1175
        %1242 = vst.msk [vmem:[#allocation4 + $0xf8] sm:$0xff] %vm1210, %v1177
        %v1243 = vld [vmem:[%s567 + $0x1] sm:$0xff]
        %v1244 = vld [vmem:[%s567 + $0x9] sm:$0xff]
        %v1245 = vld [vmem:[%s567 + $0x19] sm:$0xff]
        %v1246 = vld [vmem:[%s567 + $0x21] sm:$0xff]
        %v1247 = vld [vmem:[%s567 + $0x31] sm:$0xff]
        %v1248 = vld [vmem:[%s567 + $0x39] sm:$0xff]
        %v1249 = vld [vmem:[%s567 + $0x49] sm:$0xff]
        %v1250 = vld [vmem:[%s567 + $0x51] sm:$0xff]
        %v1251 = vld [vmem:[%s567 + $0x61] sm:$0xff]
        %v1252 = vld [vmem:[%s567 + $0x69] sm:$0xff]
        %v1253 = vld [vmem:[%s567 + $0x79] sm:$0xff]
        %v1254 = vld [vmem:[%s567 + $0x81] sm:$0xff]
        %v1255 = vld [vmem:[%s567 + $0x91] sm:$0xff]
        %v1256 = vld [vmem:[%s567 + $0x99] sm:$0xff]
        %v1257 = vld [vmem:[%s567 + $0xa9] sm:$0xff]
        %v1258 = vld [vmem:[%s567 + $0xb1] sm:$0xff]
        %v1259 = vld [vmem:[%s567 + $0xc1] sm:$0xff]
        %v1260 = vld [vmem:[%s567 + $0xc9] sm:$0xff]
        %v1261 = vld [vmem:[%s567 + $0xd9] sm:$0xff]
        %v1262 = vld [vmem:[%s567 + $0xe1] sm:$0xff]
        %v1263 = vld [vmem:[%s567 + $0xf1] sm:$0xff]
        %v1264 = vld [vmem:[%s567 + $0xf9] sm:$0xff]
        %v1265 = vld [vmem:[%s567 + $0x109] sm:$0xff]
        %v1266 = vld [vmem:[%s567 + $0x111] sm:$0xff]
        %v1267 = vld [vmem:[%s567 + $0x121] sm:$0xff]
        %v1268 = vld [vmem:[%s567 + $0x129] sm:$0xff]
        %v1269 = vld [vmem:[%s567 + $0x139] sm:$0xff]
        %v1270 = vld [vmem:[%s567 + $0x141] sm:$0xff]
        %v1271 = vld [vmem:[%s567 + $0x151] sm:$0xff]
        %v1272 = vld [vmem:[%s567 + $0x159] sm:$0xff]
        %v1273 = vld [vmem:[%s567 + $0x169] sm:$0xff]
        %v1274 = vld [vmem:[%s567 + $0x171] sm:$0xff]
        %1307 = vrot.lane.b32.xlu0 %v1243, 32
        %v1308 = vpop.permute.xlu0 %1307
        %1309 = vrot.lane.b32.xlu0 %v1244, 32
        %v1310 = vpop.permute.xlu0 %1309
        %1311 = vrot.lane.b32.xlu0 %v1245, 32
        %v1312 = vpop.permute.xlu0 %1311
        %1313 = vrot.lane.b32.xlu0 %v1246, 32
        %v1314 = vpop.permute.xlu0 %1313
        %1315 = vrot.lane.b32.xlu0 %v1247, 32
        %v1316 = vpop.permute.xlu0 %1315
        %1317 = vrot.lane.b32.xlu0 %v1248, 32
        %v1318 = vpop.permute.xlu0 %1317
        %1319 = vrot.lane.b32.xlu0 %v1249, 32
        %v1320 = vpop.permute.xlu0 %1319
        %1321 = vrot.lane.b32.xlu0 %v1250, 32
        %v1322 = vpop.permute.xlu0 %1321
        %1323 = vrot.lane.b32.xlu0 %v1251, 32
        %v1324 = vpop.permute.xlu0 %1323
        %1325 = vrot.lane.b32.xlu0 %v1252, 32
        %v1326 = vpop.permute.xlu0 %1325
        %1327 = vrot.lane.b32.xlu0 %v1253, 32
        %v1328 = vpop.permute.xlu0 %1327
        %1329 = vrot.lane.b32.xlu0 %v1254, 32
        %v1330 = vpop.permute.xlu0 %1329
        %1331 = vrot.lane.b32.xlu0 %v1255, 32
        %v1332 = vpop.permute.xlu0 %1331
        %1333 = vrot.lane.b32.xlu0 %v1256, 32
        %v1334 = vpop.permute.xlu0 %1333
        %1335 = vrot.lane.b32.xlu0 %v1257, 32
        %v1336 = vpop.permute.xlu0 %1335
        %1337 = vrot.lane.b32.xlu0 %v1258, 32
        %v1338 = vpop.permute.xlu0 %1337
        %1339 = vrot.lane.b32.xlu0 %v1259, 32
        %v1340 = vpop.permute.xlu0 %1339
        %1341 = vrot.lane.b32.xlu0 %v1260, 32
        %v1342 = vpop.permute.xlu0 %1341
        %1343 = vrot.lane.b32.xlu0 %v1261, 32
        %v1344 = vpop.permute.xlu0 %1343
        %1345 = vrot.lane.b32.xlu0 %v1262, 32
        %v1346 = vpop.permute.xlu0 %1345
        %1347 = vrot.lane.b32.xlu0 %v1263, 32
        %v1348 = vpop.permute.xlu0 %1347
        %1349 = vrot.lane.b32.xlu0 %v1264, 32
        %v1350 = vpop.permute.xlu0 %1349
        %1351 = vrot.lane.b32.xlu0 %v1265, 32
        %v1352 = vpop.permute.xlu0 %1351
        %1353 = vrot.lane.b32.xlu0 %v1266, 32
        %v1354 = vpop.permute.xlu0 %1353
        %1355 = vrot.lane.b32.xlu0 %v1267, 32
        %v1356 = vpop.permute.xlu0 %1355
        %1357 = vrot.lane.b32.xlu0 %v1268, 32
        %v1358 = vpop.permute.xlu0 %1357
        %1359 = vrot.lane.b32.xlu0 %v1269, 32
        %v1360 = vpop.permute.xlu0 %1359
        %1361 = vrot.lane.b32.xlu0 %v1270, 32
        %v1362 = vpop.permute.xlu0 %1361
        %1363 = vrot.lane.b32.xlu0 %v1271, 32
        %v1364 = vpop.permute.xlu0 %1363
        %1365 = vrot.lane.b32.xlu0 %v1272, 32
        %v1366 = vpop.permute.xlu0 %1365
        %1367 = vrot.lane.b32.xlu0 %v1273, 32
        %v1368 = vpop.permute.xlu0 %1367
        %1369 = vrot.lane.b32.xlu0 %v1274, 32
        %v1370 = vpop.permute.xlu0 %1369
        %vm1403 = vcmask 326912
        %1404 = vst.msk [vmem:[#allocation4] sm:$0xff] %vm1403, %v1308
        %1405 = vst.msk [vmem:[#allocation4 + $0x8] sm:$0xff] %vm1403, %v1310
        %1406 = vst.msk [vmem:[#allocation4 + $0x10] sm:$0xff] %vm1403, %v1312
        %1407 = vst.msk [vmem:[#allocation4 + $0x18] sm:$0xff] %vm1403, %v1314
        %1408 = vst.msk [vmem:[#allocation4 + $0x20] sm:$0xff] %vm1403, %v1316
        %1409 = vst.msk [vmem:[#allocation4 + $0x28] sm:$0xff] %vm1403, %v1318
        %1410 = vst.msk [vmem:[#allocation4 + $0x30] sm:$0xff] %vm1403, %v1320
        %1411 = vst.msk [vmem:[#allocation4 + $0x38] sm:$0xff] %vm1403, %v1322
        %1412 = vst.msk [vmem:[#allocation4 + $0x40] sm:$0xff] %vm1403, %v1324
        %1413 = vst.msk [vmem:[#allocation4 + $0x48] sm:$0xff] %vm1403, %v1326
        %1414 = vst.msk [vmem:[#allocation4 + $0x50] sm:$0xff] %vm1403, %v1328
        %1415 = vst.msk [vmem:[#allocation4 + $0x58] sm:$0xff] %vm1403, %v1330
        %1416 = vst.msk [vmem:[#allocation4 + $0x60] sm:$0xff] %vm1403, %v1332
        %1417 = vst.msk [vmem:[#allocation4 + $0x68] sm:$0xff] %vm1403, %v1334
        %1418 = vst.msk [vmem:[#allocation4 + $0x70] sm:$0xff] %vm1403, %v1336
        %1419 = vst.msk [vmem:[#allocation4 + $0x78] sm:$0xff] %vm1403, %v1338
        %1420 = vst.msk [vmem:[#allocation4 + $0x80] sm:$0xff] %vm1403, %v1340
        %1421 = vst.msk [vmem:[#allocation4 + $0x88] sm:$0xff] %vm1403, %v1342
        %1422 = vst.msk [vmem:[#allocation4 + $0x90] sm:$0xff] %vm1403, %v1344
        %1423 = vst.msk [vmem:[#allocation4 + $0x98] sm:$0xff] %vm1403, %v1346
        %1424 = vst.msk [vmem:[#allocation4 + $0xa0] sm:$0xff] %vm1403, %v1348
        %1425 = vst.msk [vmem:[#allocation4 + $0xa8] sm:$0xff] %vm1403, %v1350
        %1426 = vst.msk [vmem:[#allocation4 + $0xb0] sm:$0xff] %vm1403, %v1352
        %1427 = vst.msk [vmem:[#allocation4 + $0xb8] sm:$0xff] %vm1403, %v1354
        %1428 = vst.msk [vmem:[#allocation4 + $0xc0] sm:$0xff] %vm1403, %v1356
        %1429 = vst.msk [vmem:[#allocation4 + $0xc8] sm:$0xff] %vm1403, %v1358
        %1430 = vst.msk [vmem:[#allocation4 + $0xd0] sm:$0xff] %vm1403, %v1360
        %1431 = vst.msk [vmem:[#allocation4 + $0xd8] sm:$0xff] %vm1403, %v1362
        %1432 = vst.msk [vmem:[#allocation4 + $0xe0] sm:$0xff] %vm1403, %v1364
        %1433 = vst.msk [vmem:[#allocation4 + $0xe8] sm:$0xff] %vm1403, %v1366
        %1434 = vst.msk [vmem:[#allocation4 + $0xf0] sm:$0xff] %vm1403, %v1368
        %1435 = vst.msk [vmem:[#allocation4 + $0xf8] sm:$0xff] %vm1403, %v1370
        %v1436 = vld [vmem:[%s567 + $0x2] sm:$0xff]
        %v1437 = vld [vmem:[%s567 + $0xa] sm:$0xff]
        %v1438 = vld [vmem:[%s567 + $0x1a] sm:$0xff]
        %v1439 = vld [vmem:[%s567 + $0x22] sm:$0xff]
        %v1440 = vld [vmem:[%s567 + $0x32] sm:$0xff]
        %v1441 = vld [vmem:[%s567 + $0x3a] sm:$0xff]
        %v1442 = vld [vmem:[%s567 + $0x4a] sm:$0xff]
        %v1443 = vld [vmem:[%s567 + $0x52] sm:$0xff]
        %v1444 = vld [vmem:[%s567 + $0x62] sm:$0xff]
        %v1445 = vld [vmem:[%s567 + $0x6a] sm:$0xff]
        %v1446 = vld [vmem:[%s567 + $0x7a] sm:$0xff]
        %v1447 = vld [vmem:[%s567 + $0x82] sm:$0xff]
        %v1448 = vld [vmem:[%s567 + $0x92] sm:$0xff]
        %v1449 = vld [vmem:[%s567 + $0x9a] sm:$0xff]
        %v1450 = vld [vmem:[%s567 + $0xaa] sm:$0xff]
        %v1451 = vld [vmem:[%s567 + $0xb2] sm:$0xff]
        %v1452 = vld [vmem:[%s567 + $0xc2] sm:$0xff]
        %v1453 = vld [vmem:[%s567 + $0xca] sm:$0xff]
        %v1454 = vld [vmem:[%s567 + $0xda] sm:$0xff]
        %v1455 = vld [vmem:[%s567 + $0xe2] sm:$0xff]
        %v1456 = vld [vmem:[%s567 + $0xf2] sm:$0xff]
        %v1457 = vld [vmem:[%s567 + $0xfa] sm:$0xff]
        %v1458 = vld [vmem:[%s567 + $0x10a] sm:$0xff]
        %v1459 = vld [vmem:[%s567 + $0x112] sm:$0xff]
        %v1460 = vld [vmem:[%s567 + $0x122] sm:$0xff]
        %v1461 = vld [vmem:[%s567 + $0x12a] sm:$0xff]
        %v1462 = vld [vmem:[%s567 + $0x13a] sm:$0xff]
        %v1463 = vld [vmem:[%s567 + $0x142] sm:$0xff]
        %v1464 = vld [vmem:[%s567 + $0x152] sm:$0xff]
        %v1465 = vld [vmem:[%s567 + $0x15a] sm:$0xff]
        %v1466 = vld [vmem:[%s567 + $0x16a] sm:$0xff]
        %v1467 = vld [vmem:[%s567 + $0x172] sm:$0xff]
        %1500 = vrot.lane.b32.xlu0 %v1436, 40
        %v1501 = vpop.permute.xlu0 %1500
        %1502 = vrot.lane.b32.xlu0 %v1437, 40
        %v1503 = vpop.permute.xlu0 %1502
        %1504 = vrot.lane.b32.xlu0 %v1438, 40
        %v1505 = vpop.permute.xlu0 %1504
        %1506 = vrot.lane.b32.xlu0 %v1439, 40
        %v1507 = vpop.permute.xlu0 %1506
        %1508 = vrot.lane.b32.xlu0 %v1440, 40
        %v1509 = vpop.permute.xlu0 %1508
        %1510 = vrot.lane.b32.xlu0 %v1441, 40
        %v1511 = vpop.permute.xlu0 %1510
        %1512 = vrot.lane.b32.xlu0 %v1442, 40
        %v1513 = vpop.permute.xlu0 %1512
        %1514 = vrot.lane.b32.xlu0 %v1443, 40
        %v1515 = vpop.permute.xlu0 %1514
        %1516 = vrot.lane.b32.xlu0 %v1444, 40
        %v1517 = vpop.permute.xlu0 %1516
        %1518 = vrot.lane.b32.xlu0 %v1445, 40
        %v1519 = vpop.permute.xlu0 %1518
        %1520 = vrot.lane.b32.xlu0 %v1446, 40
        %v1521 = vpop.permute.xlu0 %1520
        %1522 = vrot.lane.b32.xlu0 %v1447, 40
        %v1523 = vpop.permute.xlu0 %1522
        %1524 = vrot.lane.b32.xlu0 %v1448, 40
        %v1525 = vpop.permute.xlu0 %1524
        %1526 = vrot.lane.b32.xlu0 %v1449, 40
        %v1527 = vpop.permute.xlu0 %1526
        %1528 = vrot.lane.b32.xlu0 %v1450, 40
        %v1529 = vpop.permute.xlu0 %1528
        %1530 = vrot.lane.b32.xlu0 %v1451, 40
        %v1531 = vpop.permute.xlu0 %1530
        %1532 = vrot.lane.b32.xlu0 %v1452, 40
        %v1533 = vpop.permute.xlu0 %1532
        %1534 = vrot.lane.b32.xlu0 %v1453, 40
        %v1535 = vpop.permute.xlu0 %1534
        %1536 = vrot.lane.b32.xlu0 %v1454, 40
        %v1537 = vpop.permute.xlu0 %1536
        %1538 = vrot.lane.b32.xlu0 %v1455, 40
        %v1539 = vpop.permute.xlu0 %1538
        %1540 = vrot.lane.b32.xlu0 %v1456, 40
        %v1541 = vpop.permute.xlu0 %1540
        %1542 = vrot.lane.b32.xlu0 %v1457, 40
        %v1543 = vpop.permute.xlu0 %1542
        %1544 = vrot.lane.b32.xlu0 %v1458, 40
        %v1545 = vpop.permute.xlu0 %1544
        %1546 = vrot.lane.b32.xlu0 %v1459, 40
        %v1547 = vpop.permute.xlu0 %1546
        %1548 = vrot.lane.b32.xlu0 %v1460, 40
        %v1549 = vpop.permute.xlu0 %1548
        %1550 = vrot.lane.b32.xlu0 %v1461, 40
        %v1551 = vpop.permute.xlu0 %1550
        %1552 = vrot.lane.b32.xlu0 %v1462, 40
        %v1553 = vpop.permute.xlu0 %1552
        %1554 = vrot.lane.b32.xlu0 %v1463, 40
        %v1555 = vpop.permute.xlu0 %1554
        %1556 = vrot.lane.b32.xlu0 %v1464, 40
        %v1557 = vpop.permute.xlu0 %1556
        %1558 = vrot.lane.b32.xlu0 %v1465, 40
        %v1559 = vpop.permute.xlu0 %1558
        %1560 = vrot.lane.b32.xlu0 %v1466, 40
        %v1561 = vpop.permute.xlu0 %1560
        %1562 = vrot.lane.b32.xlu0 %v1467, 40
        %v1563 = vpop.permute.xlu0 %1562
        %vm1596 = vcmask 392512
        %1597 = vst.msk [vmem:[#allocation4] sm:$0xff] %vm1596, %v1501
        %1598 = vst.msk [vmem:[#allocation4 + $0x8] sm:$0xff] %vm1596, %v1503
        %1599 = vst.msk [vmem:[#allocation4 + $0x10] sm:$0xff] %vm1596, %v1505
        %1600 = vst.msk [vmem:[#allocation4 + $0x18] sm:$0xff] %vm1596, %v1507
        %1601 = vst.msk [vmem:[#allocation4 + $0x20] sm:$0xff] %vm1596, %v1509
        %1602 = vst.msk [vmem:[#allocation4 + $0x28] sm:$0xff] %vm1596, %v1511
        %1603 = vst.msk [vmem:[#allocation4 + $0x30] sm:$0xff] %vm1596, %v1513
        %1604 = vst.msk [vmem:[#allocation4 + $0x38] sm:$0xff] %vm1596, %v1515
        %1605 = vst.msk [vmem:[#allocation4 + $0x40] sm:$0xff] %vm1596, %v1517
        %1606 = vst.msk [vmem:[#allocation4 + $0x48] sm:$0xff] %vm1596, %v1519
        %1607 = vst.msk [vmem:[#allocation4 + $0x50] sm:$0xff] %vm1596, %v1521
        %1608 = vst.msk [vmem:[#allocation4 + $0x58] sm:$0xff] %vm1596, %v1523
        %1609 = vst.msk [vmem:[#allocation4 + $0x60] sm:$0xff] %vm1596, %v1525
        %1610 = vst.msk [vmem:[#allocation4 + $0x68] sm:$0xff] %vm1596, %v1527
        %1611 = vst.msk [vmem:[#allocation4 + $0x70] sm:$0xff] %vm1596, %v1529
        %1612 = vst.msk [vmem:[#allocation4 + $0x78] sm:$0xff] %vm1596, %v1531
        %1613 = vst.msk [vmem:[#allocation4 + $0x80] sm:$0xff] %vm1596, %v1533
        %1614 = vst.msk [vmem:[#allocation4 + $0x88] sm:$0xff] %vm1596, %v1535
        %1615 = vst.msk [vmem:[#allocation4 + $0x90] sm:$0xff] %vm1596, %v1537
        %1616 = vst.msk [vmem:[#allocation4 + $0x98] sm:$0xff] %vm1596, %v1539
        %1617 = vst.msk [vmem:[#allocation4 + $0xa0] sm:$0xff] %vm1596, %v1541
        %1618 = vst.msk [vmem:[#allocation4 + $0xa8] sm:$0xff] %vm1596, %v1543
        %1619 = vst.msk [vmem:[#allocation4 + $0xb0] sm:$0xff] %vm1596, %v1545
        %1620 = vst.msk [vmem:[#allocation4 + $0xb8] sm:$0xff] %vm1596, %v1547
        %1621 = vst.msk [vmem:[#allocation4 + $0xc0] sm:$0xff] %vm1596, %v1549
        %1622 = vst.msk [vmem:[#allocation4 + $0xc8] sm:$0xff] %vm1596, %v1551
        %1623 = vst.msk [vmem:[#allocation4 + $0xd0] sm:$0xff] %vm1596, %v1553
        %1624 = vst.msk [vmem:[#allocation4 + $0xd8] sm:$0xff] %vm1596, %v1555
        %1625 = vst.msk [vmem:[#allocation4 + $0xe0] sm:$0xff] %vm1596, %v1557
        %1626 = vst.msk [vmem:[#allocation4 + $0xe8] sm:$0xff] %vm1596, %v1559
        %1627 = vst.msk [vmem:[#allocation4 + $0xf0] sm:$0xff] %vm1596, %v1561
        %1628 = vst.msk [vmem:[#allocation4 + $0xf8] sm:$0xff] %vm1596, %v1563
        %s1629 = scalar_lea.vmem [#allocation2], 48
        %v1630 = vld [vmem:[%s1629] sm:$0xff]
        %v1631 = vld [vmem:[%s1629 + $0x8] sm:$0xff]
        %v1632 = vld [vmem:[%s1629 + $0x18] sm:$0xff]
        %v1633 = vld [vmem:[%s1629 + $0x20] sm:$0xff]
        %v1634 = vld [vmem:[%s1629 + $0x30] sm:$0xff]
        %v1635 = vld [vmem:[%s1629 + $0x38] sm:$0xff]
        %v1636 = vld [vmem:[%s1629 + $0x48] sm:$0xff]
        %v1637 = vld [vmem:[%s1629 + $0x50] sm:$0xff]
        %v1638 = vld [vmem:[%s1629 + $0x60] sm:$0xff]
        %v1639 = vld [vmem:[%s1629 + $0x68] sm:$0xff]
        %v1640 = vld [vmem:[%s1629 + $0x78] sm:$0xff]
        %v1641 = vld [vmem:[%s1629 + $0x80] sm:$0xff]
        %v1642 = vld [vmem:[%s1629 + $0x90] sm:$0xff]
        %v1643 = vld [vmem:[%s1629 + $0x98] sm:$0xff]
        %v1644 = vld [vmem:[%s1629 + $0xa8] sm:$0xff]
        %v1645 = vld [vmem:[%s1629 + $0xb0] sm:$0xff]
        %v1646 = vld [vmem:[%s1629 + $0xc0] sm:$0xff]
        %v1647 = vld [vmem:[%s1629 + $0xc8] sm:$0xff]
        %v1648 = vld [vmem:[%s1629 + $0xd8] sm:$0xff]
        %v1649 = vld [vmem:[%s1629 + $0xe0] sm:$0xff]
        %v1650 = vld [vmem:[%s1629 + $0xf0] sm:$0xff]
        %v1651 = vld [vmem:[%s1629 + $0xf8] sm:$0xff]
        %v1652 = vld [vmem:[%s1629 + $0x108] sm:$0xff]
        %v1653 = vld [vmem:[%s1629 + $0x110] sm:$0xff]
        %v1654 = vld [vmem:[%s1629 + $0x120] sm:$0xff]
        %v1655 = vld [vmem:[%s1629 + $0x128] sm:$0xff]
        %v1656 = vld [vmem:[%s1629 + $0x138] sm:$0xff]
        %v1657 = vld [vmem:[%s1629 + $0x140] sm:$0xff]
        %v1658 = vld [vmem:[%s1629 + $0x150] sm:$0xff]
        %v1659 = vld [vmem:[%s1629 + $0x158] sm:$0xff]
        %v1660 = vld [vmem:[%s1629 + $0x168] sm:$0xff]
        %v1661 = vld [vmem:[%s1629 + $0x170] sm:$0xff]
        %1694 = vrot.lane.b32.xlu0 %v1630, 48
        %v1695 = vpop.permute.xlu0 %1694
        %1696 = vrot.lane.b32.xlu0 %v1631, 48
        %v1697 = vpop.permute.xlu0 %1696
        %1698 = vrot.lane.b32.xlu0 %v1632, 48
        %v1699 = vpop.permute.xlu0 %1698
        %1700 = vrot.lane.b32.xlu0 %v1633, 48
        %v1701 = vpop.permute.xlu0 %1700
        %1702 = vrot.lane.b32.xlu0 %v1634, 48
        %v1703 = vpop.permute.xlu0 %1702
        %1704 = vrot.lane.b32.xlu0 %v1635, 48
        %v1705 = vpop.permute.xlu0 %1704
        %1706 = vrot.lane.b32.xlu0 %v1636, 48
        %v1707 = vpop.permute.xlu0 %1706
        %1708 = vrot.lane.b32.xlu0 %v1637, 48
        %v1709 = vpop.permute.xlu0 %1708
        %1710 = vrot.lane.b32.xlu0 %v1638, 48
        %v1711 = vpop.permute.xlu0 %1710
        %1712 = vrot.lane.b32.xlu0 %v1639, 48
        %v1713 = vpop.permute.xlu0 %1712
        %1714 = vrot.lane.b32.xlu0 %v1640, 48
        %v1715 = vpop.permute.xlu0 %1714
        %1716 = vrot.lane.b32.xlu0 %v1641, 48
        %v1717 = vpop.permute.xlu0 %1716
        %1718 = vrot.lane.b32.xlu0 %v1642, 48
        %v1719 = vpop.permute.xlu0 %1718
        %1720 = vrot.lane.b32.xlu0 %v1643, 48
        %v1721 = vpop.permute.xlu0 %1720
        %1722 = vrot.lane.b32.xlu0 %v1644, 48
        %v1723 = vpop.permute.xlu0 %1722
        %1724 = vrot.lane.b32.xlu0 %v1645, 48
        %v1725 = vpop.permute.xlu0 %1724
        %1726 = vrot.lane.b32.xlu0 %v1646, 48
        %v1727 = vpop.permute.xlu0 %1726
        %1728 = vrot.lane.b32.xlu0 %v1647, 48
        %v1729 = vpop.permute.xlu0 %1728
        %1730 = vrot.lane.b32.xlu0 %v1648, 48
        %v1731 = vpop.permute.xlu0 %1730
        %1732 = vrot.lane.b32.xlu0 %v1649, 48
        %v1733 = vpop.permute.xlu0 %1732
        %1734 = vrot.lane.b32.xlu0 %v1650, 48
        %v1735 = vpop.permute.xlu0 %1734
        %1736 = vrot.lane.b32.xlu0 %v1651, 48
        %v1737 = vpop.permute.xlu0 %1736
        %1738 = vrot.lane.b32.xlu0 %v1652, 48
        %v1739 = vpop.permute.xlu0 %1738
        %1740 = vrot.lane.b32.xlu0 %v1653, 48
        %v1741 = vpop.permute.xlu0 %1740
        %1742 = vrot.lane.b32.xlu0 %v1654, 48
        %v1743 = vpop.permute.xlu0 %1742
        %1744 = vrot.lane.b32.xlu0 %v1655, 48
        %v1745 = vpop.permute.xlu0 %1744
        %1746 = vrot.lane.b32.xlu0 %v1656, 48
        %v1747 = vpop.permute.xlu0 %1746
        %1748 = vrot.lane.b32.xlu0 %v1657, 48
        %v1749 = vpop.permute.xlu0 %1748
        %1750 = vrot.lane.b32.xlu0 %v1658, 48
        %v1751 = vpop.permute.xlu0 %1750
        %1752 = vrot.lane.b32.xlu0 %v1659, 48
        %v1753 = vpop.permute.xlu0 %1752
        %1754 = vrot.lane.b32.xlu0 %v1660, 48
        %v1755 = vpop.permute.xlu0 %1754
        %1756 = vrot.lane.b32.xlu0 %v1661, 48
        %v1757 = vpop.permute.xlu0 %1756
        %vm1790 = vcmask 458112
        %1791 = vst.msk [vmem:[#allocation4] sm:$0xff] %vm1790, %v1695
        %1792 = vst.msk [vmem:[#allocation4 + $0x8] sm:$0xff] %vm1790, %v1697
        %1793 = vst.msk [vmem:[#allocation4 + $0x10] sm:$0xff] %vm1790, %v1699
        %1794 = vst.msk [vmem:[#allocation4 + $0x18] sm:$0xff] %vm1790, %v1701
        %1795 = vst.msk [vmem:[#allocation4 + $0x20] sm:$0xff] %vm1790, %v1703
        %1796 = vst.msk [vmem:[#allocation4 + $0x28] sm:$0xff] %vm1790, %v1705
        %1797 = vst.msk [vmem:[#allocation4 + $0x30] sm:$0xff] %vm1790, %v1707
        %1798 = vst.msk [vmem:[#allocation4 + $0x38] sm:$0xff] %vm1790, %v1709
        %1799 = vst.msk [vmem:[#allocation4 + $0x40] sm:$0xff] %vm1790, %v1711
        %1800 = vst.msk [vmem:[#allocation4 + $0x48] sm:$0xff] %vm1790, %v1713
        %1801 = vst.msk [vmem:[#allocation4 + $0x50] sm:$0xff] %vm1790, %v1715
        %1802 = vst.msk [vmem:[#allocation4 + $0x58] sm:$0xff] %vm1790, %v1717
        %1803 = vst.msk [vmem:[#allocation4 + $0x60] sm:$0xff] %vm1790, %v1719
        %1804 = vst.msk [vmem:[#allocation4 + $0x68] sm:$0xff] %vm1790, %v1721
        %1805 = vst.msk [vmem:[#allocation4 + $0x70] sm:$0xff] %vm1790, %v1723
        %1806 = vst.msk [vmem:[#allocation4 + $0x78] sm:$0xff] %vm1790, %v1725
        %1807 = vst.msk [vmem:[#allocation4 + $0x80] sm:$0xff] %vm1790, %v1727
        %1808 = vst.msk [vmem:[#allocation4 + $0x88] sm:$0xff] %vm1790, %v1729
        %1809 = vst.msk [vmem:[#allocation4 + $0x90] sm:$0xff] %vm1790, %v1731
        %1810 = vst.msk [vmem:[#allocation4 + $0x98] sm:$0xff] %vm1790, %v1733
        %1811 = vst.msk [vmem:[#allocation4 + $0xa0] sm:$0xff] %vm1790, %v1735
        %1812 = vst.msk [vmem:[#allocation4 + $0xa8] sm:$0xff] %vm1790, %v1737
        %1813 = vst.msk [vmem:[#allocation4 + $0xb0] sm:$0xff] %vm1790, %v1739
        %1814 = vst.msk [vmem:[#allocation4 + $0xb8] sm:$0xff] %vm1790, %v1741
        %1815 = vst.msk [vmem:[#allocation4 + $0xc0] sm:$0xff] %vm1790, %v1743
        %1816 = vst.msk [vmem:[#allocation4 + $0xc8] sm:$0xff] %vm1790, %v1745
        %1817 = vst.msk [vmem:[#allocation4 + $0xd0] sm:$0xff] %vm1790, %v1747
        %1818 = vst.msk [vmem:[#allocation4 + $0xd8] sm:$0xff] %vm1790, %v1749
        %1819 = vst.msk [vmem:[#allocation4 + $0xe0] sm:$0xff] %vm1790, %v1751
        %1820 = vst.msk [vmem:[#allocation4 + $0xe8] sm:$0xff] %vm1790, %v1753
        %1821 = vst.msk [vmem:[#allocation4 + $0xf0] sm:$0xff] %vm1790, %v1755
        %1822 = vst.msk [vmem:[#allocation4 + $0xf8] sm:$0xff] %vm1790, %v1757
        %v1823 = vld [vmem:[%s1629 + $0x1] sm:$0xff]
        %v1824 = vld [vmem:[%s1629 + $0x9] sm:$0xff]
        %v1825 = vld [vmem:[%s1629 + $0x19] sm:$0xff]
        %v1826 = vld [vmem:[%s1629 + $0x21] sm:$0xff]
        %v1827 = vld [vmem:[%s1629 + $0x31] sm:$0xff]
        %v1828 = vld [vmem:[%s1629 + $0x39] sm:$0xff]
        %v1829 = vld [vmem:[%s1629 + $0x49] sm:$0xff]
        %v1830 = vld [vmem:[%s1629 + $0x51] sm:$0xff]
        %v1831 = vld [vmem:[%s1629 + $0x61] sm:$0xff]
        %v1832 = vld [vmem:[%s1629 + $0x69] sm:$0xff]
        %v1833 = vld [vmem:[%s1629 + $0x79] sm:$0xff]
        %v1834 = vld [vmem:[%s1629 + $0x81] sm:$0xff]
        %v1835 = vld [vmem:[%s1629 + $0x91] sm:$0xff]
        %v1836 = vld [vmem:[%s1629 + $0x99] sm:$0xff]
        %v1837 = vld [vmem:[%s1629 + $0xa9] sm:$0xff]
        %v1838 = vld [vmem:[%s1629 + $0xb1] sm:$0xff]
        %v1839 = vld [vmem:[%s1629 + $0xc1] sm:$0xff]
        %v1840 = vld [vmem:[%s1629 + $0xc9] sm:$0xff]
        %v1841 = vld [vmem:[%s1629 + $0xd9] sm:$0xff]
        %v1842 = vld [vmem:[%s1629 + $0xe1] sm:$0xff]
        %v1843 = vld [vmem:[%s1629 + $0xf1] sm:$0xff]
        %v1844 = vld [vmem:[%s1629 + $0xf9] sm:$0xff]
        %v1845 = vld [vmem:[%s1629 + $0x109] sm:$0xff]
        %v1846 = vld [vmem:[%s1629 + $0x111] sm:$0xff]
        %v1847 = vld [vmem:[%s1629 + $0x121] sm:$0xff]
        %v1848 = vld [vmem:[%s1629 + $0x129] sm:$0xff]
        %v1849 = vld [vmem:[%s1629 + $0x139] sm:$0xff]
        %v1850 = vld [vmem:[%s1629 + $0x141] sm:$0xff]
        %v1851 = vld [vmem:[%s1629 + $0x151] sm:$0xff]
        %v1852 = vld [vmem:[%s1629 + $0x159] sm:$0xff]
        %v1853 = vld [vmem:[%s1629 + $0x169] sm:$0xff]
        %v1854 = vld [vmem:[%s1629 + $0x171] sm:$0xff]
        %1887 = vrot.lane.b32.xlu0 %v1823, 56
        %v1888 = vpop.permute.xlu0 %1887
        %1889 = vrot.lane.b32.xlu0 %v1824, 56
        %v1890 = vpop.permute.xlu0 %1889
        %1891 = vrot.lane.b32.xlu0 %v1825, 56
        %v1892 = vpop.permute.xlu0 %1891
        %1893 = vrot.lane.b32.xlu0 %v1826, 56
        %v1894 = vpop.permute.xlu0 %1893
        %1895 = vrot.lane.b32.xlu0 %v1827, 56
        %v1896 = vpop.permute.xlu0 %1895
        %1897 = vrot.lane.b32.xlu0 %v1828, 56
        %v1898 = vpop.permute.xlu0 %1897
        %1899 = vrot.lane.b32.xlu0 %v1829, 56
        %v1900 = vpop.permute.xlu0 %1899
        %1901 = vrot.lane.b32.xlu0 %v1830, 56
        %v1902 = vpop.permute.xlu0 %1901
        %1903 = vrot.lane.b32.xlu0 %v1831, 56
        %v1904 = vpop.permute.xlu0 %1903
        %1905 = vrot.lane.b32.xlu0 %v1832, 56
        %v1906 = vpop.permute.xlu0 %1905
        %1907 = vrot.lane.b32.xlu0 %v1833, 56
        %v1908 = vpop.permute.xlu0 %1907
        %1909 = vrot.lane.b32.xlu0 %v1834, 56
        %v1910 = vpop.permute.xlu0 %1909
        %1911 = vrot.lane.b32.xlu0 %v1835, 56
        %v1912 = vpop.permute.xlu0 %1911
        %1913 = vrot.lane.b32.xlu0 %v1836, 56
        %v1914 = vpop.permute.xlu0 %1913
        %1915 = vrot.lane.b32.xlu0 %v1837, 56
        %v1916 = vpop.permute.xlu0 %1915
        %1917 = vrot.lane.b32.xlu0 %v1838, 56
        %v1918 = vpop.permute.xlu0 %1917
        %1919 = vrot.lane.b32.xlu0 %v1839, 56
        %v1920 = vpop.permute.xlu0 %1919
        %1921 = vrot.lane.b32.xlu0 %v1840, 56
        %v1922 = vpop.permute.xlu0 %1921
        %1923 = vrot.lane.b32.xlu0 %v1841, 56
        %v1924 = vpop.permute.xlu0 %1923
        %1925 = vrot.lane.b32.xlu0 %v1842, 56
        %v1926 = vpop.permute.xlu0 %1925
        %1927 = vrot.lane.b32.xlu0 %v1843, 56
        %v1928 = vpop.permute.xlu0 %1927
        %1929 = vrot.lane.b32.xlu0 %v1844, 56
        %v1930 = vpop.permute.xlu0 %1929
        %1931 = vrot.lane.b32.xlu0 %v1845, 56
        %v1932 = vpop.permute.xlu0 %1931
        %1933 = vrot.lane.b32.xlu0 %v1846, 56
        %v1934 = vpop.permute.xlu0 %1933
        %1935 = vrot.lane.b32.xlu0 %v1847, 56
        %v1936 = vpop.permute.xlu0 %1935
        %1937 = vrot.lane.b32.xlu0 %v1848, 56
        %v1938 = vpop.permute.xlu0 %1937
        %1939 = vrot.lane.b32.xlu0 %v1849, 56
        %v1940 = vpop.permute.xlu0 %1939
        %1941 = vrot.lane.b32.xlu0 %v1850, 56
        %v1942 = vpop.permute.xlu0 %1941
        %1943 = vrot.lane.b32.xlu0 %v1851, 56
        %v1944 = vpop.permute.xlu0 %1943
        %1945 = vrot.lane.b32.xlu0 %v1852, 56
        %v1946 = vpop.permute.xlu0 %1945
        %1947 = vrot.lane.b32.xlu0 %v1853, 56
        %v1948 = vpop.permute.xlu0 %1947
        %1949 = vrot.lane.b32.xlu0 %v1854, 56
        %v1950 = vpop.permute.xlu0 %1949
        %vm1983 = vcmask 523712
        %1984 = vst.msk [vmem:[#allocation4] sm:$0xff] %vm1983, %v1888
        %1985 = vst.msk [vmem:[#allocation4 + $0x8] sm:$0xff] %vm1983, %v1890
        %1986 = vst.msk [vmem:[#allocation4 + $0x10] sm:$0xff] %vm1983, %v1892
        %1987 = vst.msk [vmem:[#allocation4 + $0x18] sm:$0xff] %vm1983, %v1894
        %1988 = vst.msk [vmem:[#allocation4 + $0x20] sm:$0xff] %vm1983, %v1896
        %1989 = vst.msk [vmem:[#allocation4 + $0x28] sm:$0xff] %vm1983, %v1898
        %1990 = vst.msk [vmem:[#allocation4 + $0x30] sm:$0xff] %vm1983, %v1900
        %1991 = vst.msk [vmem:[#allocation4 + $0x38] sm:$0xff] %vm1983, %v1902
        %1992 = vst.msk [vmem:[#allocation4 + $0x40] sm:$0xff] %vm1983, %v1904
        %1993 = vst.msk [vmem:[#allocation4 + $0x48] sm:$0xff] %vm1983, %v1906
        %1994 = vst.msk [vmem:[#allocation4 + $0x50] sm:$0xff] %vm1983, %v1908
        %1995 = vst.msk [vmem:[#allocation4 + $0x58] sm:$0xff] %vm1983, %v1910
        %1996 = vst.msk [vmem:[#allocation4 + $0x60] sm:$0xff] %vm1983, %v1912
        %1997 = vst.msk [vmem:[#allocation4 + $0x68] sm:$0xff] %vm1983, %v1914
        %1998 = vst.msk [vmem:[#allocation4 + $0x70] sm:$0xff] %vm1983, %v1916
        %1999 = vst.msk [vmem:[#allocation4 + $0x78] sm:$0xff] %vm1983, %v1918
        %2000 = vst.msk [vmem:[#allocation4 + $0x80] sm:$0xff] %vm1983, %v1920
        %2001 = vst.msk [vmem:[#allocation4 + $0x88] sm:$0xff] %vm1983, %v1922
        %2002 = vst.msk [vmem:[#allocation4 + $0x90] sm:$0xff] %vm1983, %v1924
        %2003 = vst.msk [vmem:[#allocation4 + $0x98] sm:$0xff] %vm1983, %v1926
        %2004 = vst.msk [vmem:[#allocation4 + $0xa0] sm:$0xff] %vm1983, %v1928
        %2005 = vst.msk [vmem:[#allocation4 + $0xa8] sm:$0xff] %vm1983, %v1930
        %2006 = vst.msk [vmem:[#allocation4 + $0xb0] sm:$0xff] %vm1983, %v1932
        %2007 = vst.msk [vmem:[#allocation4 + $0xb8] sm:$0xff] %vm1983, %v1934
        %2008 = vst.msk [vmem:[#allocation4 + $0xc0] sm:$0xff] %vm1983, %v1936
        %2009 = vst.msk [vmem:[#allocation4 + $0xc8] sm:$0xff] %vm1983, %v1938
        %2010 = vst.msk [vmem:[#allocation4 + $0xd0] sm:$0xff] %vm1983, %v1940
        %2011 = vst.msk [vmem:[#allocation4 + $0xd8] sm:$0xff] %vm1983, %v1942
        %2012 = vst.msk [vmem:[#allocation4 + $0xe0] sm:$0xff] %vm1983, %v1944
        %2013 = vst.msk [vmem:[#allocation4 + $0xe8] sm:$0xff] %vm1983, %v1946
        %2014 = vst.msk [vmem:[#allocation4 + $0xf0] sm:$0xff] %vm1983, %v1948
        %2015 = vst.msk [vmem:[#allocation4 + $0xf8] sm:$0xff] %vm1983, %v1950
        %v2016 = vld [vmem:[%s1629 + $0x2] sm:$0xff]
        %v2017 = vld [vmem:[%s1629 + $0xa] sm:$0xff]
        %v2018 = vld [vmem:[%s1629 + $0x1a] sm:$0xff]
        %v2019 = vld [vmem:[%s1629 + $0x22] sm:$0xff]
        %v2020 = vld [vmem:[%s1629 + $0x32] sm:$0xff]
        %v2021 = vld [vmem:[%s1629 + $0x3a] sm:$0xff]
        %v2022 = vld [vmem:[%s1629 + $0x4a] sm:$0xff]
        %v2023 = vld [vmem:[%s1629 + $0x52] sm:$0xff]
        %v2024 = vld [vmem:[%s1629 + $0x62] sm:$0xff]
        %v2025 = vld [vmem:[%s1629 + $0x6a] sm:$0xff]
        %v2026 = vld [vmem:[%s1629 + $0x7a] sm:$0xff]
        %v2027 = vld [vmem:[%s1629 + $0x82] sm:$0xff]
        %v2028 = vld [vmem:[%s1629 + $0x92] sm:$0xff]
        %v2029 = vld [vmem:[%s1629 + $0x9a] sm:$0xff]
        %v2030 = vld [vmem:[%s1629 + $0xaa] sm:$0xff]
        %v2031 = vld [vmem:[%s1629 + $0xb2] sm:$0xff]
        %v2032 = vld [vmem:[%s1629 + $0xc2] sm:$0xff]
        %v2033 = vld [vmem:[%s1629 + $0xca] sm:$0xff]
        %v2034 = vld [vmem:[%s1629 + $0xda] sm:$0xff]
        %v2035 = vld [vmem:[%s1629 + $0xe2] sm:$0xff]
        %v2036 = vld [vmem:[%s1629 + $0xf2] sm:$0xff]
        %v2037 = vld [vmem:[%s1629 + $0xfa] sm:$0xff]
        %v2038 = vld [vmem:[%s1629 + $0x10a] sm:$0xff]
        %v2039 = vld [vmem:[%s1629 + $0x112] sm:$0xff]
        %v2040 = vld [vmem:[%s1629 + $0x122] sm:$0xff]
        %v2041 = vld [vmem:[%s1629 + $0x12a] sm:$0xff]
        %v2042 = vld [vmem:[%s1629 + $0x13a] sm:$0xff]
        %v2043 = vld [vmem:[%s1629 + $0x142] sm:$0xff]
        %v2044 = vld [vmem:[%s1629 + $0x152] sm:$0xff]
        %v2045 = vld [vmem:[%s1629 + $0x15a] sm:$0xff]
        %v2046 = vld [vmem:[%s1629 + $0x16a] sm:$0xff]
        %v2047 = vld [vmem:[%s1629 + $0x172] sm:$0xff]
        %2080 = vrot.lane.b32.xlu0 %v2016, 64
        %v2081 = vpop.permute.xlu0 %2080
        %2082 = vrot.lane.b32.xlu0 %v2017, 64
        %v2083 = vpop.permute.xlu0 %2082
        %2084 = vrot.lane.b32.xlu0 %v2018, 64
        %v2085 = vpop.permute.xlu0 %2084
        %2086 = vrot.lane.b32.xlu0 %v2019, 64
        %v2087 = vpop.permute.xlu0 %2086
        %2088 = vrot.lane.b32.xlu0 %v2020, 64
        %v2089 = vpop.permute.xlu0 %2088
        %2090 = vrot.lane.b32.xlu0 %v2021, 64
        %v2091 = vpop.permute.xlu0 %2090
        %2092 = vrot.lane.b32.xlu0 %v2022, 64
        %v2093 = vpop.permute.xlu0 %2092
        %2094 = vrot.lane.b32.xlu0 %v2023, 64
        %v2095 = vpop.permute.xlu0 %2094
        %2096 = vrot.lane.b32.xlu0 %v2024, 64
        %v2097 = vpop.permute.xlu0 %2096
        %2098 = vrot.lane.b32.xlu0 %v2025, 64
        %v2099 = vpop.permute.xlu0 %2098
        %2100 = vrot.lane.b32.xlu0 %v2026, 64
        %v2101 = vpop.permute.xlu0 %2100
        %2102 = vrot.lane.b32.xlu0 %v2027, 64
        %v2103 = vpop.permute.xlu0 %2102
        %2104 = vrot.lane.b32.xlu0 %v2028, 64
        %v2105 = vpop.permute.xlu0 %2104
        %2106 = vrot.lane.b32.xlu0 %v2029, 64
        %v2107 = vpop.permute.xlu0 %2106
        %2108 = vrot.lane.b32.xlu0 %v2030, 64
        %v2109 = vpop.permute.xlu0 %2108
        %2110 = vrot.lane.b32.xlu0 %v2031, 64
        %v2111 = vpop.permute.xlu0 %2110
        %2112 = vrot.lane.b32.xlu0 %v2032, 64
        %v2113 = vpop.permute.xlu0 %2112
        %2114 = vrot.lane.b32.xlu0 %v2033, 64
        %v2115 = vpop.permute.xlu0 %2114
        %2116 = vrot.lane.b32.xlu0 %v2034, 64
        %v2117 = vpop.permute.xlu0 %2116
        %2118 = vrot.lane.b32.xlu0 %v2035, 64
        %v2119 = vpop.permute.xlu0 %2118
        %2120 = vrot.lane.b32.xlu0 %v2036, 64
        %v2121 = vpop.permute.xlu0 %2120
        %2122 = vrot.lane.b32.xlu0 %v2037, 64
        %v2123 = vpop.permute.xlu0 %2122
        %2124 = vrot.lane.b32.xlu0 %v2038, 64
        %v2125 = vpop.permute.xlu0 %2124
        %2126 = vrot.lane.b32.xlu0 %v2039, 64
        %v2127 = vpop.permute.xlu0 %2126
        %2128 = vrot.lane.b32.xlu0 %v2040, 64
        %v2129 = vpop.permute.xlu0 %2128
        %2130 = vrot.lane.b32.xlu0 %v2041, 64
        %v2131 = vpop.permute.xlu0 %2130
        %2132 = vrot.lane.b32.xlu0 %v2042, 64
        %v2133 = vpop.permute.xlu0 %2132
        %2134 = vrot.lane.b32.xlu0 %v2043, 64
        %v2135 = vpop.permute.xlu0 %2134
        %2136 = vrot.lane.b32.xlu0 %v2044, 64
        %v2137 = vpop.permute.xlu0 %2136
        %2138 = vrot.lane.b32.xlu0 %v2045, 64
        %v2139 = vpop.permute.xlu0 %2138
        %2140 = vrot.lane.b32.xlu0 %v2046, 64
        %v2141 = vpop.permute.xlu0 %2140
        %2142 = vrot.lane.b32.xlu0 %v2047, 64
        %v2143 = vpop.permute.xlu0 %2142
        %vm2176 = vcmask 589312
        %2177 = vst.msk [vmem:[#allocation4] sm:$0xff] %vm2176, %v2081
        %2178 = vst.msk [vmem:[#allocation4 + $0x8] sm:$0xff] %vm2176, %v2083
        %2179 = vst.msk [vmem:[#allocation4 + $0x10] sm:$0xff] %vm2176, %v2085
        %2180 = vst.msk [vmem:[#allocation4 + $0x18] sm:$0xff] %vm2176, %v2087
        %2181 = vst.msk [vmem:[#allocation4 + $0x20] sm:$0xff] %vm2176, %v2089
        %2182 = vst.msk [vmem:[#allocation4 + $0x28] sm:$0xff] %vm2176, %v2091
        %2183 = vst.msk [vmem:[#allocation4 + $0x30] sm:$0xff] %vm2176, %v2093
        %2184 = vst.msk [vmem:[#allocation4 + $0x38] sm:$0xff] %vm2176, %v2095
        %2185 = vst.msk [vmem:[#allocation4 + $0x40] sm:$0xff] %vm2176, %v2097
        %2186 = vst.msk [vmem:[#allocation4 + $0x48] sm:$0xff] %vm2176, %v2099
        %2187 = vst.msk [vmem:[#allocation4 + $0x50] sm:$0xff] %vm2176, %v2101
        %2188 = vst.msk [vmem:[#allocation4 + $0x58] sm:$0xff] %vm2176, %v2103
        %2189 = vst.msk [vmem:[#allocation4 + $0x60] sm:$0xff] %vm2176, %v2105
        %2190 = vst.msk [vmem:[#allocation4 + $0x68] sm:$0xff] %vm2176, %v2107
        %2191 = vst.msk [vmem:[#allocation4 + $0x70] sm:$0xff] %vm2176, %v2109
        %2192 = vst.msk [vmem:[#allocation4 + $0x78] sm:$0xff] %vm2176, %v2111
        %2193 = vst.msk [vmem:[#allocation4 + $0x80] sm:$0xff] %vm2176, %v2113
        %2194 = vst.msk [vmem:[#allocation4 + $0x88] sm:$0xff] %vm2176, %v2115
        %2195 = vst.msk [vmem:[#allocation4 + $0x90] sm:$0xff] %vm2176, %v2117
        %2196 = vst.msk [vmem:[#allocation4 + $0x98] sm:$0xff] %vm2176, %v2119
        %2197 = vst.msk [vmem:[#allocation4 + $0xa0] sm:$0xff] %vm2176, %v2121
        %2198 = vst.msk [vmem:[#allocation4 + $0xa8] sm:$0xff] %vm2176, %v2123
        %2199 = vst.msk [vmem:[#allocation4 + $0xb0] sm:$0xff] %vm2176, %v2125
        %2200 = vst.msk [vmem:[#allocation4 + $0xb8] sm:$0xff] %vm2176, %v2127
        %2201 = vst.msk [vmem:[#allocation4 + $0xc0] sm:$0xff] %vm2176, %v2129
        %2202 = vst.msk [vmem:[#allocation4 + $0xc8] sm:$0xff] %vm2176, %v2131
        %2203 = vst.msk [vmem:[#allocation4 + $0xd0] sm:$0xff] %vm2176, %v2133
        %2204 = vst.msk [vmem:[#allocation4 + $0xd8] sm:$0xff] %vm2176, %v2135
        %2205 = vst.msk [vmem:[#allocation4 + $0xe0] sm:$0xff] %vm2176, %v2137
        %2206 = vst.msk [vmem:[#allocation4 + $0xe8] sm:$0xff] %vm2176, %v2139
        %2207 = vst.msk [vmem:[#allocation4 + $0xf0] sm:$0xff] %vm2176, %v2141
        %2208 = vst.msk [vmem:[#allocation4 + $0xf8] sm:$0xff] %vm2176, %v2143
        %v2209 = vld [vmem:[#allocation4] sm:$0xff]
        %v2210 = vld [vmem:[#allocation4 + $0x8] sm:$0xff]
        %v2211 = vld [vmem:[#allocation4 + $0x10] sm:$0xff]
        %v2212 = vld [vmem:[#allocation4 + $0x18] sm:$0xff]
        %v2213 = vld [vmem:[#allocation4 + $0x20] sm:$0xff]
        %v2214 = vld [vmem:[#allocation4 + $0x28] sm:$0xff]
        %v2215 = vld [vmem:[#allocation4 + $0x30] sm:$0xff]
        %v2216 = vld [vmem:[#allocation4 + $0x38] sm:$0xff]
        %v2217 = vld [vmem:[#allocation4 + $0x40] sm:$0xff]
        %v2218 = vld [vmem:[#allocation4 + $0x48] sm:$0xff]
        %v2219 = vld [vmem:[#allocation4 + $0x50] sm:$0xff]
        %v2220 = vld [vmem:[#allocation4 + $0x58] sm:$0xff]
        %v2221 = vld [vmem:[#allocation4 + $0x60] sm:$0xff]
        %v2222 = vld [vmem:[#allocation4 + $0x68] sm:$0xff]
        %v2223 = vld [vmem:[#allocation4 + $0x70] sm:$0xff]
        %v2224 = vld [vmem:[#allocation4 + $0x78] sm:$0xff]
        %v2225 = vld [vmem:[#allocation4 + $0x80] sm:$0xff]
        %v2226 = vld [vmem:[#allocation4 + $0x88] sm:$0xff]
        %v2227 = vld [vmem:[#allocation4 + $0x90] sm:$0xff]
        %v2228 = vld [vmem:[#allocation4 + $0x98] sm:$0xff]
        %v2229 = vld [vmem:[#allocation4 + $0xa0] sm:$0xff]
        %v2230 = vld [vmem:[#allocation4 + $0xa8] sm:$0xff]
        %v2231 = vld [vmem:[#allocation4 + $0xb0] sm:$0xff]
        %v2232 = vld [vmem:[#allocation4 + $0xb8] sm:$0xff]
        %v2233 = vld [vmem:[#allocation4 + $0xc0] sm:$0xff]
        %v2234 = vld [vmem:[#allocation4 + $0xc8] sm:$0xff]
        %v2235 = vld [vmem:[#allocation4 + $0xd0] sm:$0xff]
        %v2236 = vld [vmem:[#allocation4 + $0xd8] sm:$0xff]
        %v2237 = vld [vmem:[#allocation4 + $0xe0] sm:$0xff]
        %v2238 = vld [vmem:[#allocation4 + $0xe8] sm:$0xff]
        %v2239 = vld [vmem:[#allocation4 + $0xf0] sm:$0xff]
        %v2240 = vld [vmem:[#allocation4 + $0xf8] sm:$0xff]
        %v2241 = vld [vmem:[%s3] sm:$0xff]
        %v2242 = vld [vmem:[%s3 + $0x8] sm:$0xff]
        %v2243 = vld [vmem:[%s3 + $0x10] sm:$0xff]
        %v2244 = vld [vmem:[%s3 + $0x18] sm:$0xff]
        %v2245 = vld [vmem:[%s3 + $0x20] sm:$0xff]
        %v2246 = vld [vmem:[%s3 + $0x28] sm:$0xff]
        %v2247 = vld [vmem:[%s3 + $0x30] sm:$0xff]
        %v2248 = vld [vmem:[%s3 + $0x38] sm:$0xff]
        %v2249 = vld [vmem:[%s3 + $0x40] sm:$0xff]
        %vm2250 = vcmask 588800
        %v2252 = vsel %vm2250, %v2209, 0
        %v2255 = vsel %vm2250, %v2210, 0
        %v2258 = vsel %vm2250, %v2211, 0
        %v2261 = vsel %vm2250, %v2212, 0
        %v2264 = vsel %vm2250, %v2213, 0
        %v2267 = vsel %vm2250, %v2214, 0
        %v2270 = vsel %vm2250, %v2215, 0
        %v2273 = vsel %vm2250, %v2216, 0
        %v2276 = vsel %vm2250, %v2217, 0
        %v2279 = vsel %vm2250, %v2218, 0
        %v2282 = vsel %vm2250, %v2219, 0
        %v2285 = vsel %vm2250, %v2220, 0
        %v2288 = vsel %vm2250, %v2221, 0
        %v2291 = vsel %vm2250, %v2222, 0
        %v2294 = vsel %vm2250, %v2223, 0
        %v2297 = vsel %vm2250, %v2224, 0
        %v2300 = vsel %vm2250, %v2225, 0
        %v2303 = vsel %vm2250, %v2226, 0
        %v2306 = vsel %vm2250, %v2227, 0
        %v2309 = vsel %vm2250, %v2228, 0
        %v2312 = vsel %vm2250, %v2229, 0
        %v2315 = vsel %vm2250, %v2230, 0
        %v2318 = vsel %vm2250, %v2231, 0
        %v2321 = vsel %vm2250, %v2232, 0
        %v2324 = vsel %vm2250, %v2233, 0
        %v2327 = vsel %vm2250, %v2234, 0
        %v2330 = vsel %vm2250, %v2235, 0
        %v2333 = vsel %vm2250, %v2236, 0
        %v2336 = vsel %vm2250, %v2237, 0
        %v2339 = vsel %vm2250, %v2238, 0
        %v2342 = vsel %vm2250, %v2239, 0
        %v2345 = vsel %vm2250, %v2240, 0
        %2347 = vmatpush.msra.mxu0 0.0
        %2348 = vmatpush.msra.mxu0 0.0
        %2349 = vmatpush.msra.mxu0 0.0
        %2350 = vmatpush.msra.mxu0 0.0
        %2351 = vmatpush.msra.mxu0 0.0
        %2352 = vmatpush.msra.mxu0 0.0
        %2353 = vmatpush.msra.mxu0 0.0
        %2354 = vmatpush.msra.mxu0 %v2249
        %2355 = vmatpush.msra.mxu0 %v2248
        %2356 = vmatpush.msra.mxu0 %v2247
        %2357 = vmatpush.msra.mxu0 %v2246
        %2358 = vmatpush.msra.mxu0 %v2245
        %2359 = vmatpush.msra.mxu0 %v2244
        %2360 = vmatpush.msra.mxu0 %v2243
        %2361 = vmatpush.msra.mxu0 %v2242
        %2362 = vmatpush.msra.mxu0 %v2241
        %2363 = vmatmul.f32.gmra.mxu0 %v2252
        %v2364 = vpop.f32.mrf.mxu0
        %v2365 = vadd.f32 0.0, %v2364
        %2366 = vmatmul.f32.gmra.mxu0 %v2255
        %v2367 = vpop.f32.mrf.mxu0
        %v2368 = vadd.f32 0.0, %v2367
        %2369 = vmatmul.f32.gmra.mxu0 %v2258
        %v2370 = vpop.f32.mrf.mxu0
        %v2371 = vadd.f32 0.0, %v2370
        %2372 = vmatmul.f32.gmra.mxu0 %v2261
        %v2373 = vpop.f32.mrf.mxu0
        %v2374 = vadd.f32 0.0, %v2373
        %2375 = vmatmul.f32.gmra.mxu0 %v2264
        %v2376 = vpop.f32.mrf.mxu0
        %v2377 = vadd.f32 0.0, %v2376
        %2378 = vmatmul.f32.gmra.mxu0 %v2267
        %v2379 = vpop.f32.mrf.mxu0
        %v2380 = vadd.f32 0.0, %v2379
        %2381 = vmatmul.f32.gmra.mxu0 %v2270
        %v2382 = vpop.f32.mrf.mxu0
        %v2383 = vadd.f32 0.0, %v2382
        %2384 = vmatmul.f32.gmra.mxu0 %v2273
        %v2385 = vpop.f32.mrf.mxu0
        %v2386 = vadd.f32 0.0, %v2385
        %2387 = vmatmul.f32.gmra.mxu0 %v2276
        %v2388 = vpop.f32.mrf.mxu0
        %v2389 = vadd.f32 0.0, %v2388
        %2390 = vmatmul.f32.gmra.mxu0 %v2279
        %v2391 = vpop.f32.mrf.mxu0
        %v2392 = vadd.f32 0.0, %v2391
        %2393 = vmatmul.f32.gmra.mxu0 %v2282
        %v2394 = vpop.f32.mrf.mxu0
        %v2395 = vadd.f32 0.0, %v2394
        %2396 = vmatmul.f32.gmra.mxu0 %v2285
        %v2397 = vpop.f32.mrf.mxu0
        %v2398 = vadd.f32 0.0, %v2397
        %2399 = vmatmul.f32.gmra.mxu0 %v2288
        %v2400 = vpop.f32.mrf.mxu0
        %v2401 = vadd.f32 0.0, %v2400
        %2402 = vmatmul.f32.gmra.mxu0 %v2291
        %v2403 = vpop.f32.mrf.mxu0
        %v2404 = vadd.f32 0.0, %v2403
        %2405 = vmatmul.f32.gmra.mxu0 %v2294
        %v2406 = vpop.f32.mrf.mxu0
        %v2407 = vadd.f32 0.0, %v2406
        %2408 = vmatmul.f32.gmra.mxu0 %v2297
        %v2409 = vpop.f32.mrf.mxu0
        %v2410 = vadd.f32 0.0, %v2409
        %2411 = vmatmul.f32.gmra.mxu0 %v2300
        %v2412 = vpop.f32.mrf.mxu0
        %v2413 = vadd.f32 0.0, %v2412
        %2414 = vmatmul.f32.gmra.mxu0 %v2303
        %v2415 = vpop.f32.mrf.mxu0
        %v2416 = vadd.f32 0.0, %v2415
        %2417 = vmatmul.f32.gmra.mxu0 %v2306
        %v2418 = vpop.f32.mrf.mxu0
        %v2419 = vadd.f32 0.0, %v2418
        %2420 = vmatmul.f32.gmra.mxu0 %v2309
        %v2421 = vpop.f32.mrf.mxu0
        %v2422 = vadd.f32 0.0, %v2421
        %2423 = vmatmul.f32.gmra.mxu0 %v2312
        %v2424 = vpop.f32.mrf.mxu0
        %v2425 = vadd.f32 0.0, %v2424
        %2426 = vmatmul.f32.gmra.mxu0 %v2315
        %v2427 = vpop.f32.mrf.mxu0
        %v2428 = vadd.f32 0.0, %v2427
        %2429 = vmatmul.f32.gmra.mxu0 %v2318
        %v2430 = vpop.f32.mrf.mxu0
        %v2431 = vadd.f32 0.0, %v2430
        %2432 = vmatmul.f32.gmra.mxu0 %v2321
        %v2433 = vpop.f32.mrf.mxu0
        %v2434 = vadd.f32 0.0, %v2433
        %2435 = vmatmul.f32.gmra.mxu0 %v2324
        %v2436 = vpop.f32.mrf.mxu0
        %v2437 = vadd.f32 0.0, %v2436
        %2438 = vmatmul.f32.gmra.mxu0 %v2327
        %v2439 = vpop.f32.mrf.mxu0
        %v2440 = vadd.f32 0.0, %v2439
        %2441 = vmatmul.f32.gmra.mxu0 %v2330
        %v2442 = vpop.f32.mrf.mxu0
        %v2443 = vadd.f32 0.0, %v2442
        %2444 = vmatmul.f32.gmra.mxu0 %v2333
        %v2445 = vpop.f32.mrf.mxu0
        %v2446 = vadd.f32 0.0, %v2445
        %2447 = vmatmul.f32.gmra.mxu0 %v2336
        %v2448 = vpop.f32.mrf.mxu0
        %v2449 = vadd.f32 0.0, %v2448
        %2450 = vmatmul.f32.gmra.mxu0 %v2339
        %v2451 = vpop.f32.mrf.mxu0
        %v2452 = vadd.f32 0.0, %v2451
        %2453 = vmatmul.f32.gmra.mxu0 %v2342
        %v2454 = vpop.f32.mrf.mxu0
        %v2455 = vadd.f32 0.0, %v2454
        %2456 = vmatmul.f32.gmra.mxu0 %v2345
        %v2457 = vpop.f32.mrf.mxu0
        %v2458 = vadd.f32 0.0, %v2457
        %2459 = vdwg.mxu0
        %v2460 = vld [vmem:[%s4] sm:$0x1]
        %v2462 = vperm.slane %v2460, 0
        %v2464 = vmul.f32 %v2365, %v2462
        %v2465 = vmul.f32 %v2368, %v2462
        %v2466 = vmul.f32 %v2371, %v2462
        %v2467 = vmul.f32 %v2374, %v2462
        %v2468 = vmul.f32 %v2377, %v2462
        %v2469 = vmul.f32 %v2380, %v2462
        %v2470 = vmul.f32 %v2383, %v2462
        %v2471 = vmul.f32 %v2386, %v2462
        %v2472 = vmul.f32 %v2389, %v2462
        %v2473 = vmul.f32 %v2392, %v2462
        %v2474 = vmul.f32 %v2395, %v2462
        %v2475 = vmul.f32 %v2398, %v2462
        %v2476 = vmul.f32 %v2401, %v2462
        %v2477 = vmul.f32 %v2404, %v2462
        %v2478 = vmul.f32 %v2407, %v2462
        %v2479 = vmul.f32 %v2410, %v2462
        %v2480 = vmul.f32 %v2413, %v2462
        %v2481 = vmul.f32 %v2416, %v2462
        %v2482 = vmul.f32 %v2419, %v2462
        %v2483 = vmul.f32 %v2422, %v2462
        %v2484 = vmul.f32 %v2425, %v2462
        %v2485 = vmul.f32 %v2428, %v2462
        %v2486 = vmul.f32 %v2431, %v2462
        %v2487 = vmul.f32 %v2434, %v2462
        %v2488 = vmul.f32 %v2437, %v2462
        %v2489 = vmul.f32 %v2440, %v2462
        %v2490 = vmul.f32 %v2443, %v2462
        %v2491 = vmul.f32 %v2446, %v2462
        %v2492 = vmul.f32 %v2449, %v2462
        %v2493 = vmul.f32 %v2452, %v2462
        %v2494 = vmul.f32 %v2455, %v2462
        %v2495 = vmul.f32 %v2458, %v2462
        %v2496 = vld [vmem:[%s5] sm:$0x1]
        %v2498 = vperm.slane %v2496, 0
        %v2500 = vadd.f32 %v2464, %v2498
        %v2501 = vadd.f32 %v2465, %v2498
        %v2502 = vadd.f32 %v2466, %v2498
        %v2503 = vadd.f32 %v2467, %v2498
        %v2504 = vadd.f32 %v2468, %v2498
        %v2505 = vadd.f32 %v2469, %v2498
        %v2506 = vadd.f32 %v2470, %v2498
        %v2507 = vadd.f32 %v2471, %v2498
        %v2508 = vadd.f32 %v2472, %v2498
        %v2509 = vadd.f32 %v2473, %v2498
        %v2510 = vadd.f32 %v2474, %v2498
        %v2511 = vadd.f32 %v2475, %v2498
        %v2512 = vadd.f32 %v2476, %v2498
        %v2513 = vadd.f32 %v2477, %v2498
        %v2514 = vadd.f32 %v2478, %v2498
        %v2515 = vadd.f32 %v2479, %v2498
        %v2516 = vadd.f32 %v2480, %v2498
        %v2517 = vadd.f32 %v2481, %v2498
        %v2518 = vadd.f32 %v2482, %v2498
        %v2519 = vadd.f32 %v2483, %v2498
        %v2520 = vadd.f32 %v2484, %v2498
        %v2521 = vadd.f32 %v2485, %v2498
        %v2522 = vadd.f32 %v2486, %v2498
        %v2523 = vadd.f32 %v2487, %v2498
        %v2524 = vadd.f32 %v2488, %v2498
        %v2525 = vadd.f32 %v2489, %v2498
        %v2526 = vadd.f32 %v2490, %v2498
        %v2527 = vadd.f32 %v2491, %v2498
        %v2528 = vadd.f32 %v2492, %v2498
        %v2529 = vadd.f32 %v2493, %v2498
        %v2530 = vadd.f32 %v2494, %v2498
        %v2531 = vadd.f32 %v2495, %v2498
        %v2532 = vmax.f32 %v2500, 0.0
        %v2533 = vmax.f32 %v2501, 0.0
        %v2534 = vmax.f32 %v2502, 0.0
        %v2535 = vmax.f32 %v2503, 0.0
        %v2536 = vmax.f32 %v2504, 0.0
        %v2537 = vmax.f32 %v2505, 0.0
        %v2538 = vmax.f32 %v2506, 0.0
        %v2539 = vmax.f32 %v2507, 0.0
        %v2540 = vmax.f32 %v2508, 0.0
        %v2541 = vmax.f32 %v2509, 0.0
        %v2542 = vmax.f32 %v2510, 0.0
        %v2543 = vmax.f32 %v2511, 0.0
        %v2544 = vmax.f32 %v2512, 0.0
        %v2545 = vmax.f32 %v2513, 0.0
        %v2546 = vmax.f32 %v2514, 0.0
        %v2547 = vmax.f32 %v2515, 0.0
        %v2548 = vmax.f32 %v2516, 0.0
        %v2549 = vmax.f32 %v2517, 0.0
        %v2550 = vmax.f32 %v2518, 0.0
        %v2551 = vmax.f32 %v2519, 0.0
        %v2552 = vmax.f32 %v2520, 0.0
        %v2553 = vmax.f32 %v2521, 0.0
        %v2554 = vmax.f32 %v2522, 0.0
        %v2555 = vmax.f32 %v2523, 0.0
        %v2556 = vmax.f32 %v2524, 0.0
        %v2557 = vmax.f32 %v2525, 0.0
        %v2558 = vmax.f32 %v2526, 0.0
        %v2559 = vmax.f32 %v2527, 0.0
        %v2560 = vmax.f32 %v2528, 0.0
        %v2561 = vmax.f32 %v2529, 0.0
        %v2562 = vmax.f32 %v2530, 0.0
        %v2563 = vmax.f32 %v2531, 0.0
        %vm2564 = vcmask 130048
        %2565 = vst.msk [vmem:[#allocation3] sm:$0xff] %vm2564, 0.0
        %2566 = vst.msk [vmem:[#allocation3 + $0x8] sm:$0xff] %vm2564, 0.0
        %vm2567 = vcmask 123904
        %2568 = vst.msk [vmem:[#allocation3 + $0x10] sm:$0x3] %vm2567, 0.0
        %s2569 = scalar_lea.vmem [#allocation3], 408
        %2570 = vst.msk [vmem:[%s2569] sm:$0xff] %vm2564, 0.0
        %2571 = vst.msk [vmem:[%s2569 + $0x8] sm:$0xff] %vm2564, 0.0
        %2572 = vst.msk [vmem:[%s2569 + $0x10] sm:$0x3] %vm2567, 0.0
        %vm2573 = vcmask 122880
        %2574 = vst.msk [vmem:[#allocation3] sm:$0x1] %vm2573, 0.0
        %2575 = vst.msk [vmem:[#allocation3 + $0x18] sm:$0x1] %vm2573, 0.0
        %2576 = vst.msk [vmem:[#allocation3 + $0x30] sm:$0x1] %vm2573, 0.0
        %2577 = vst.msk [vmem:[#allocation3 + $0x48] sm:$0x1] %vm2573, 0.0
        %2578 = vst.msk [vmem:[#allocation3 + $0x60] sm:$0x1] %vm2573, 0.0
        %2579 = vst.msk [vmem:[#allocation3 + $0x78] sm:$0x1] %vm2573, 0.0
        %2580 = vst.msk [vmem:[#allocation3 + $0x90] sm:$0x1] %vm2573, 0.0
        %2581 = vst.msk [vmem:[#allocation3 + $0xa8] sm:$0x1] %vm2573, 0.0
        %2582 = vst.msk [vmem:[#allocation3 + $0xc0] sm:$0x1] %vm2573, 0.0
        %2583 = vst.msk [vmem:[#allocation3 + $0xd8] sm:$0x1] %vm2573, 0.0
        %2584 = vst.msk [vmem:[#allocation3 + $0xf0] sm:$0x1] %vm2573, 0.0
        %2585 = vst.msk [vmem:[#allocation3 + $0x108] sm:$0x1] %vm2573, 0.0
        %2586 = vst.msk [vmem:[#allocation3 + $0x120] sm:$0x1] %vm2573, 0.0
        %2587 = vst.msk [vmem:[#allocation3 + $0x138] sm:$0x1] %vm2573, 0.0
        %2588 = vst.msk [vmem:[#allocation3 + $0x150] sm:$0x1] %vm2573, 0.0
        %2589 = vst.msk [vmem:[#allocation3 + $0x168] sm:$0x1] %vm2573, 0.0
        %2590 = vst.msk [vmem:[#allocation3 + $0x180] sm:$0x1] %vm2573, 0.0
        %2591 = vst.msk [vmem:[#allocation3 + $0x198] sm:$0x1] %vm2573, 0.0
        %2592 = vst.msk [vmem:[#allocation3 + $0x11] sm:$0x1] %vm2573, 0.0
        %2593 = vst.msk [vmem:[#allocation3 + $0x29] sm:$0x1] %vm2573, 0.0
        %2594 = vst.msk [vmem:[#allocation3 + $0x41] sm:$0x1] %vm2573, 0.0
        %2595 = vst.msk [vmem:[#allocation3 + $0x59] sm:$0x1] %vm2573, 0.0
        %2596 = vst.msk [vmem:[#allocation3 + $0x71] sm:$0x1] %vm2573, 0.0
        %2597 = vst.msk [vmem:[#allocation3 + $0x89] sm:$0x1] %vm2573, 0.0
        %2598 = vst.msk [vmem:[#allocation3 + $0xa1] sm:$0x1] %vm2573, 0.0
        %2599 = vst.msk [vmem:[#allocation3 + $0xb9] sm:$0x1] %vm2573, 0.0
        %2600 = vst.msk [vmem:[#allocation3 + $0xd1] sm:$0x1] %vm2573, 0.0
        %2601 = vst.msk [vmem:[#allocation3 + $0xe9] sm:$0x1] %vm2573, 0.0
        %2602 = vst.msk [vmem:[#allocation3 + $0x101] sm:$0x1] %vm2573, 0.0
        %2603 = vst.msk [vmem:[#allocation3 + $0x119] sm:$0x1] %vm2573, 0.0
        %2604 = vst.msk [vmem:[#allocation3 + $0x131] sm:$0x1] %vm2573, 0.0
        %2605 = vst.msk [vmem:[#allocation3 + $0x149] sm:$0x1] %vm2573, 0.0
        %2606 = vst.msk [vmem:[#allocation3 + $0x161] sm:$0x1] %vm2573, 0.0
        %2607 = vst.msk [vmem:[#allocation3 + $0x179] sm:$0x1] %vm2573, 0.0
        %2608 = vst.msk [vmem:[#allocation3 + $0x191] sm:$0x1] %vm2573, 0.0
        %2609 = vst.msk [vmem:[#allocation3 + $0x1a9] sm:$0x1] %vm2573, 0.0
        %s2610 = scalar_lea.vmem [#allocation3], 24
        %2611 = vst.msk [vmem:[%s2610 + $0x1] sm:$0xff] %vm2564, %v2532
        %2612 = vst.msk [vmem:[%s2610 + $0x9] sm:$0xff] %vm2564, %v2533
        %2613 = vst.msk [vmem:[%s2610 + $0x19] sm:$0xff] %vm2564, %v2534
        %2614 = vst.msk [vmem:[%s2610 + $0x21] sm:$0xff] %vm2564, %v2535
        %2615 = vst.msk [vmem:[%s2610 + $0x31] sm:$0xff] %vm2564, %v2536
        %2616 = vst.msk [vmem:[%s2610 + $0x39] sm:$0xff] %vm2564, %v2537
        %2617 = vst.msk [vmem:[%s2610 + $0x49] sm:$0xff] %vm2564, %v2538
        %2618 = vst.msk [vmem:[%s2610 + $0x51] sm:$0xff] %vm2564, %v2539
        %2619 = vst.msk [vmem:[%s2610 + $0x61] sm:$0xff] %vm2564, %v2540
        %2620 = vst.msk [vmem:[%s2610 + $0x69] sm:$0xff] %vm2564, %v2541
        %2621 = vst.msk [vmem:[%s2610 + $0x79] sm:$0xff] %vm2564, %v2542
        %2622 = vst.msk [vmem:[%s2610 + $0x81] sm:$0xff] %vm2564, %v2543
        %2623 = vst.msk [vmem:[%s2610 + $0x91] sm:$0xff] %vm2564, %v2544
        %2624 = vst.msk [vmem:[%s2610 + $0x99] sm:$0xff] %vm2564, %v2545
        %2625 = vst.msk [vmem:[%s2610 + $0xa9] sm:$0xff] %vm2564, %v2546
        %2626 = vst.msk [vmem:[%s2610 + $0xb1] sm:$0xff] %vm2564, %v2547
        %2627 = vst.msk [vmem:[%s2610 + $0xc1] sm:$0xff] %vm2564, %v2548
        %2628 = vst.msk [vmem:[%s2610 + $0xc9] sm:$0xff] %vm2564, %v2549
        %2629 = vst.msk [vmem:[%s2610 + $0xd9] sm:$0xff] %vm2564, %v2550
        %2630 = vst.msk [vmem:[%s2610 + $0xe1] sm:$0xff] %vm2564, %v2551
        %2631 = vst.msk [vmem:[%s2610 + $0xf1] sm:$0xff] %vm2564, %v2552
        %2632 = vst.msk [vmem:[%s2610 + $0xf9] sm:$0xff] %vm2564, %v2553
        %2633 = vst.msk [vmem:[%s2610 + $0x109] sm:$0xff] %vm2564, %v2554
        %2634 = vst.msk [vmem:[%s2610 + $0x111] sm:$0xff] %vm2564, %v2555
        %2635 = vst.msk [vmem:[%s2610 + $0x121] sm:$0xff] %vm2564, %v2556
        %2636 = vst.msk [vmem:[%s2610 + $0x129] sm:$0xff] %vm2564, %v2557
        %2637 = vst.msk [vmem:[%s2610 + $0x139] sm:$0xff] %vm2564, %v2558
        %2638 = vst.msk [vmem:[%s2610 + $0x141] sm:$0xff] %vm2564, %v2559
        %2639 = vst.msk [vmem:[%s2610 + $0x151] sm:$0xff] %vm2564, %v2560
        %2640 = vst.msk [vmem:[%s2610 + $0x159] sm:$0xff] %vm2564, %v2561
        %2641 = vst.msk [vmem:[%s2610 + $0x169] sm:$0xff] %vm2564, %v2562
        %2642 = vst.msk [vmem:[%s2610 + $0x171] sm:$0xff] %vm2564, %v2563
        %v2643 = vld [vmem:[#allocation3] sm:$0xff]
        %v2644 = vld [vmem:[#allocation3 + $0x8] sm:$0xff]
        %v2645 = vld [vmem:[#allocation3 + $0x18] sm:$0xff]
        %v2646 = vld [vmem:[#allocation3 + $0x20] sm:$0xff]
        %v2647 = vld [vmem:[#allocation3 + $0x30] sm:$0xff]
        %v2648 = vld [vmem:[#allocation3 + $0x38] sm:$0xff]
        %v2649 = vld [vmem:[#allocation3 + $0x48] sm:$0xff]
        %v2650 = vld [vmem:[#allocation3 + $0x50] sm:$0xff]
        %v2651 = vld [vmem:[#allocation3 + $0x60] sm:$0xff]
        %v2652 = vld [vmem:[#allocation3 + $0x68] sm:$0xff]
        %v2653 = vld [vmem:[#allocation3 + $0x78] sm:$0xff]
        %v2654 = vld [vmem:[#allocation3 + $0x80] sm:$0xff]
        %v2655 = vld [vmem:[#allocation3 + $0x90] sm:$0xff]
        %v2656 = vld [vmem:[#allocation3 + $0x98] sm:$0xff]
        %v2657 = vld [vmem:[#allocation3 + $0xa8] sm:$0xff]
        %v2658 = vld [vmem:[#allocation3 + $0xb0] sm:$0xff]
        %v2659 = vld [vmem:[#allocation3 + $0xc0] sm:$0xff]
        %v2660 = vld [vmem:[#allocation3 + $0xc8] sm:$0xff]
        %v2661 = vld [vmem:[#allocation3 + $0xd8] sm:$0xff]
        %v2662 = vld [vmem:[#allocation3 + $0xe0] sm:$0xff]
        %v2663 = vld [vmem:[#allocation3 + $0xf0] sm:$0xff]
        %v2664 = vld [vmem:[#allocation3 + $0xf8] sm:$0xff]
        %v2665 = vld [vmem:[#allocation3 + $0x108] sm:$0xff]
        %v2666 = vld [vmem:[#allocation3 + $0x110] sm:$0xff]
        %v2667 = vld [vmem:[#allocation3 + $0x120] sm:$0xff]
        %v2668 = vld [vmem:[#allocation3 + $0x128] sm:$0xff]
        %v2669 = vld [vmem:[#allocation3 + $0x138] sm:$0xff]
        %v2670 = vld [vmem:[#allocation3 + $0x140] sm:$0xff]
        %v2671 = vld [vmem:[#allocation3 + $0x150] sm:$0xff]
        %v2672 = vld [vmem:[#allocation3 + $0x158] sm:$0xff]
        %v2673 = vld [vmem:[#allocation3 + $0x168] sm:$0xff]
        %v2674 = vld [vmem:[#allocation3 + $0x170] sm:$0xff]
        %2675 = vst.msk [vmem:[#allocation5] sm:$0xff] %vm2564, %v2643
        %2676 = vst.msk [vmem:[#allocation5 + $0x10] sm:$0xff] %vm2564, %v2644
        %2677 = vst.msk [vmem:[#allocation5 + $0x20] sm:$0xff] %vm2564, %v2645
        %2678 = vst.msk [vmem:[#allocation5 + $0x30] sm:$0xff] %vm2564, %v2646
        %2679 = vst.msk [vmem:[#allocation5 + $0x40] sm:$0xff] %vm2564, %v2647
        %2680 = vst.msk [vmem:[#allocation5 + $0x50] sm:$0xff] %vm2564, %v2648
        %2681 = vst.msk [vmem:[#allocation5 + $0x60] sm:$0xff] %vm2564, %v2649
        %2682 = vst.msk [vmem:[#allocation5 + $0x70] sm:$0xff] %vm2564, %v2650
        %2683 = vst.msk [vmem:[#allocation5 + $0x80] sm:$0xff] %vm2564, %v2651
        %2684 = vst.msk [vmem:[#allocation5 + $0x90] sm:$0xff] %vm2564, %v2652
        %2685 = vst.msk [vmem:[#allocation5 + $0xa0] sm:$0xff] %vm2564, %v2653
        %2686 = vst.msk [vmem:[#allocation5 + $0xb0] sm:$0xff] %vm2564, %v2654
        %2687 = vst.msk [vmem:[#allocation5 + $0xc0] sm:$0xff] %vm2564, %v2655
        %2688 = vst.msk [vmem:[#allocation5 + $0xd0] sm:$0xff] %vm2564, %v2656
        %2689 = vst.msk [vmem:[#allocation5 + $0xe0] sm:$0xff] %vm2564, %v2657
        %2690 = vst.msk [vmem:[#allocation5 + $0xf0] sm:$0xff] %vm2564, %v2658
        %2691 = vst.msk [vmem:[#allocation5 + $0x100] sm:$0xff] %vm2564, %v2659
        %2692 = vst.msk [vmem:[#allocation5 + $0x110] sm:$0xff] %vm2564, %v2660
        %2693 = vst.msk [vmem:[#allocation5 + $0x120] sm:$0xff] %vm2564, %v2661
        %2694 = vst.msk [vmem:[#allocation5 + $0x130] sm:$0xff] %vm2564, %v2662
        %2695 = vst.msk [vmem:[#allocation5 + $0x140] sm:$0xff] %vm2564, %v2663
        %2696 = vst.msk [vmem:[#allocation5 + $0x150] sm:$0xff] %vm2564, %v2664
        %2697 = vst.msk [vmem:[#allocation5 + $0x160] sm:$0xff] %vm2564, %v2665
        %2698 = vst.msk [vmem:[#allocation5 + $0x170] sm:$0xff] %vm2564, %v2666
        %2699 = vst.msk [vmem:[#allocation5 + $0x180] sm:$0xff] %vm2564, %v2667
        %2700 = vst.msk [vmem:[#allocation5 + $0x190] sm:$0xff] %vm2564, %v2668
        %2701 = vst.msk [vmem:[#allocation5 + $0x1a0] sm:$0xff] %vm2564, %v2669
        %2702 = vst.msk [vmem:[#allocation5 + $0x1b0] sm:$0xff] %vm2564, %v2670
        %2703 = vst.msk [vmem:[#allocation5 + $0x1c0] sm:$0xff] %vm2564, %v2671
        %2704 = vst.msk [vmem:[#allocation5 + $0x1d0] sm:$0xff] %vm2564, %v2672
        %2705 = vst.msk [vmem:[#allocation5 + $0x1e0] sm:$0xff] %vm2564, %v2673
        %2706 = vst.msk [vmem:[#allocation5 + $0x1f0] sm:$0xff] %vm2564, %v2674
        %v2707 = vld [vmem:[#allocation3 + $0x1] sm:$0xff]
        %v2708 = vld [vmem:[#allocation3 + $0x9] sm:$0xff]
        %v2709 = vld [vmem:[#allocation3 + $0x19] sm:$0xff]
        %v2710 = vld [vmem:[#allocation3 + $0x21] sm:$0xff]
        %v2711 = vld [vmem:[#allocation3 + $0x31] sm:$0xff]
        %v2712 = vld [vmem:[#allocation3 + $0x39] sm:$0xff]
        %v2713 = vld [vmem:[#allocation3 + $0x49] sm:$0xff]
        %v2714 = vld [vmem:[#allocation3 + $0x51] sm:$0xff]
        %v2715 = vld [vmem:[#allocation3 + $0x61] sm:$0xff]
        %v2716 = vld [vmem:[#allocation3 + $0x69] sm:$0xff]
        %v2717 = vld [vmem:[#allocation3 + $0x79] sm:$0xff]
        %v2718 = vld [vmem:[#allocation3 + $0x81] sm:$0xff]
        %v2719 = vld [vmem:[#allocation3 + $0x91] sm:$0xff]
        %v2720 = vld [vmem:[#allocation3 + $0x99] sm:$0xff]
        %v2721 = vld [vmem:[#allocation3 + $0xa9] sm:$0xff]
        %v2722 = vld [vmem:[#allocation3 + $0xb1] sm:$0xff]
        %v2723 = vld [vmem:[#allocation3 + $0xc1] sm:$0xff]
        %v2724 = vld [vmem:[#allocation3 + $0xc9] sm:$0xff]
        %v2725 = vld [vmem:[#allocation3 + $0xd9] sm:$0xff]
        %v2726 = vld [vmem:[#allocation3 + $0xe1] sm:$0xff]
        %v2727 = vld [vmem:[#allocation3 + $0xf1] sm:$0xff]
        %v2728 = vld [vmem:[#allocation3 + $0xf9] sm:$0xff]
        %v2729 = vld [vmem:[#allocation3 + $0x109] sm:$0xff]
        %v2730 = vld [vmem:[#allocation3 + $0x111] sm:$0xff]
        %v2731 = vld [vmem:[#allocation3 + $0x121] sm:$0xff]
        %v2732 = vld [vmem:[#allocation3 + $0x129] sm:$0xff]
        %v2733 = vld [vmem:[#allocation3 + $0x139] sm:$0xff]
        %v2734 = vld [vmem:[#allocation3 + $0x141] sm:$0xff]
        %v2735 = vld [vmem:[#allocation3 + $0x151] sm:$0xff]
        %v2736 = vld [vmem:[#allocation3 + $0x159] sm:$0xff]
        %v2737 = vld [vmem:[#allocation3 + $0x169] sm:$0xff]
        %v2738 = vld [vmem:[#allocation3 + $0x171] sm:$0xff]
        %2771 = vrot.lane.b32.xlu0 %v2707, 16
        %v2772 = vpop.permute.xlu0 %2771
        %2773 = vrot.lane.b32.xlu0 %v2708, 16
        %v2774 = vpop.permute.xlu0 %2773
        %2775 = vrot.lane.b32.xlu0 %v2709, 16
        %v2776 = vpop.permute.xlu0 %2775
        %2777 = vrot.lane.b32.xlu0 %v2710, 16
        %v2778 = vpop.permute.xlu0 %2777
        %2779 = vrot.lane.b32.xlu0 %v2711, 16
        %v2780 = vpop.permute.xlu0 %2779
        %2781 = vrot.lane.b32.xlu0 %v2712, 16
        %v2782 = vpop.permute.xlu0 %2781
        %2783 = vrot.lane.b32.xlu0 %v2713, 16
        %v2784 = vpop.permute.xlu0 %2783
        %2785 = vrot.lane.b32.xlu0 %v2714, 16
        %v2786 = vpop.permute.xlu0 %2785
        %2787 = vrot.lane.b32.xlu0 %v2715, 16
        %v2788 = vpop.permute.xlu0 %2787
        %2789 = vrot.lane.b32.xlu0 %v2716, 16
        %v2790 = vpop.permute.xlu0 %2789
        %2791 = vrot.lane.b32.xlu0 %v2717, 16
        %v2792 = vpop.permute.xlu0 %2791
        %2793 = vrot.lane.b32.xlu0 %v2718, 16
        %v2794 = vpop.permute.xlu0 %2793
        %2795 = vrot.lane.b32.xlu0 %v2719, 16
        %v2796 = vpop.permute.xlu0 %2795
        %2797 = vrot.lane.b32.xlu0 %v2720, 16
        %v2798 = vpop.permute.xlu0 %2797
        %2799 = vrot.lane.b32.xlu0 %v2721, 16
        %v2800 = vpop.permute.xlu0 %2799
        %2801 = vrot.lane.b32.xlu0 %v2722, 16
        %v2802 = vpop.permute.xlu0 %2801
        %2803 = vrot.lane.b32.xlu0 %v2723, 16
        %v2804 = vpop.permute.xlu0 %2803
        %2805 = vrot.lane.b32.xlu0 %v2724, 16
        %v2806 = vpop.permute.xlu0 %2805
        %2807 = vrot.lane.b32.xlu0 %v2725, 16
        %v2808 = vpop.permute.xlu0 %2807
        %2809 = vrot.lane.b32.xlu0 %v2726, 16
        %v2810 = vpop.permute.xlu0 %2809
        %2811 = vrot.lane.b32.xlu0 %v2727, 16
        %v2812 = vpop.permute.xlu0 %2811
        %2813 = vrot.lane.b32.xlu0 %v2728, 16
        %v2814 = vpop.permute.xlu0 %2813
        %2815 = vrot.lane.b32.xlu0 %v2729, 16
        %v2816 = vpop.permute.xlu0 %2815
        %2817 = vrot.lane.b32.xlu0 %v2730, 16
        %v2818 = vpop.permute.xlu0 %2817
        %2819 = vrot.lane.b32.xlu0 %v2731, 16
        %v2820 = vpop.permute.xlu0 %2819
        %2821 = vrot.lane.b32.xlu0 %v2732, 16
        %v2822 = vpop.permute.xlu0 %2821
        %2823 = vrot.lane.b32.xlu0 %v2733, 16
        %v2824 = vpop.permute.xlu0 %2823
        %2825 = vrot.lane.b32.xlu0 %v2734, 16
        %v2826 = vpop.permute.xlu0 %2825
        %2827 = vrot.lane.b32.xlu0 %v2735, 16
        %v2828 = vpop.permute.xlu0 %2827
        %2829 = vrot.lane.b32.xlu0 %v2736, 16
        %v2830 = vpop.permute.xlu0 %2829
        %2831 = vrot.lane.b32.xlu0 %v2737, 16
        %v2832 = vpop.permute.xlu0 %2831
        %2833 = vrot.lane.b32.xlu0 %v2738, 16
        %v2834 = vpop.permute.xlu0 %2833
        %vm2867 = vcmask 261248
        %2868 = vst.msk [vmem:[#allocation5] sm:$0xff] %vm2867, %v2772
        %2869 = vst.msk [vmem:[#allocation5 + $0x10] sm:$0xff] %vm2867, %v2774
        %2870 = vst.msk [vmem:[#allocation5 + $0x20] sm:$0xff] %vm2867, %v2776
        %2871 = vst.msk [vmem:[#allocation5 + $0x30] sm:$0xff] %vm2867, %v2778
        %2872 = vst.msk [vmem:[#allocation5 + $0x40] sm:$0xff] %vm2867, %v2780
        %2873 = vst.msk [vmem:[#allocation5 + $0x50] sm:$0xff] %vm2867, %v2782
        %2874 = vst.msk [vmem:[#allocation5 + $0x60] sm:$0xff] %vm2867, %v2784
        %2875 = vst.msk [vmem:[#allocation5 + $0x70] sm:$0xff] %vm2867, %v2786
        %2876 = vst.msk [vmem:[#allocation5 + $0x80] sm:$0xff] %vm2867, %v2788
        %2877 = vst.msk [vmem:[#allocation5 + $0x90] sm:$0xff] %vm2867, %v2790
        %2878 = vst.msk [vmem:[#allocation5 + $0xa0] sm:$0xff] %vm2867, %v2792
        %2879 = vst.msk [vmem:[#allocation5 + $0xb0] sm:$0xff] %vm2867, %v2794
        %2880 = vst.msk [vmem:[#allocation5 + $0xc0] sm:$0xff] %vm2867, %v2796
        %2881 = vst.msk [vmem:[#allocation5 + $0xd0] sm:$0xff] %vm2867, %v2798
        %2882 = vst.msk [vmem:[#allocation5 + $0xe0] sm:$0xff] %vm2867, %v2800
        %2883 = vst.msk [vmem:[#allocation5 + $0xf0] sm:$0xff] %vm2867, %v2802
        %2884 = vst.msk [vmem:[#allocation5 + $0x100] sm:$0xff] %vm2867, %v2804
        %2885 = vst.msk [vmem:[#allocation5 + $0x110] sm:$0xff] %vm2867, %v2806
        %2886 = vst.msk [vmem:[#allocation5 + $0x120] sm:$0xff] %vm2867, %v2808
        %2887 = vst.msk [vmem:[#allocation5 + $0x130] sm:$0xff] %vm2867, %v2810
        %2888 = vst.msk [vmem:[#allocation5 + $0x140] sm:$0xff] %vm2867, %v2812
        %2889 = vst.msk [vmem:[#allocation5 + $0x150] sm:$0xff] %vm2867, %v2814
        %2890 = vst.msk [vmem:[#allocation5 + $0x160] sm:$0xff] %vm2867, %v2816
        %2891 = vst.msk [vmem:[#allocation5 + $0x170] sm:$0xff] %vm2867, %v2818
        %2892 = vst.msk [vmem:[#allocation5 + $0x180] sm:$0xff] %vm2867, %v2820
        %2893 = vst.msk [vmem:[#allocation5 + $0x190] sm:$0xff] %vm2867, %v2822
        %2894 = vst.msk [vmem:[#allocation5 + $0x1a0] sm:$0xff] %vm2867, %v2824
        %2895 = vst.msk [vmem:[#allocation5 + $0x1b0] sm:$0xff] %vm2867, %v2826
        %2896 = vst.msk [vmem:[#allocation5 + $0x1c0] sm:$0xff] %vm2867, %v2828
        %2897 = vst.msk [vmem:[#allocation5 + $0x1d0] sm:$0xff] %vm2867, %v2830
        %2898 = vst.msk [vmem:[#allocation5 + $0x1e0] sm:$0xff] %vm2867, %v2832
        %2899 = vst.msk [vmem:[#allocation5 + $0x1f0] sm:$0xff] %vm2867, %v2834
        %v2900 = vld [vmem:[#allocation3 + $0x2] sm:$0xff]
        %v2901 = vld [vmem:[#allocation3 + $0xa] sm:$0xff]
        %v2902 = vld [vmem:[#allocation3 + $0x1a] sm:$0xff]
        %v2903 = vld [vmem:[#allocation3 + $0x22] sm:$0xff]
        %v2904 = vld [vmem:[#allocation3 + $0x32] sm:$0xff]
        %v2905 = vld [vmem:[#allocation3 + $0x3a] sm:$0xff]
        %v2906 = vld [vmem:[#allocation3 + $0x4a] sm:$0xff]
        %v2907 = vld [vmem:[#allocation3 + $0x52] sm:$0xff]
        %v2908 = vld [vmem:[#allocation3 + $0x62] sm:$0xff]
        %v2909 = vld [vmem:[#allocation3 + $0x6a] sm:$0xff]
        %v2910 = vld [vmem:[#allocation3 + $0x7a] sm:$0xff]
        %v2911 = vld [vmem:[#allocation3 + $0x82] sm:$0xff]
        %v2912 = vld [vmem:[#allocation3 + $0x92] sm:$0xff]
        %v2913 = vld [vmem:[#allocation3 + $0x9a] sm:$0xff]
        %v2914 = vld [vmem:[#allocation3 + $0xaa] sm:$0xff]
        %v2915 = vld [vmem:[#allocation3 + $0xb2] sm:$0xff]
        %v2916 = vld [vmem:[#allocation3 + $0xc2] sm:$0xff]
        %v2917 = vld [vmem:[#allocation3 + $0xca] sm:$0xff]
        %v2918 = vld [vmem:[#allocation3 + $0xda] sm:$0xff]
        %v2919 = vld [vmem:[#allocation3 + $0xe2] sm:$0xff]
        %v2920 = vld [vmem:[#allocation3 + $0xf2] sm:$0xff]
        %v2921 = vld [vmem:[#allocation3 + $0xfa] sm:$0xff]
        %v2922 = vld [vmem:[#allocation3 + $0x10a] sm:$0xff]
        %v2923 = vld [vmem:[#allocation3 + $0x112] sm:$0xff]
        %v2924 = vld [vmem:[#allocation3 + $0x122] sm:$0xff]
        %v2925 = vld [vmem:[#allocation3 + $0x12a] sm:$0xff]
        %v2926 = vld [vmem:[#allocation3 + $0x13a] sm:$0xff]
        %v2927 = vld [vmem:[#allocation3 + $0x142] sm:$0xff]
        %v2928 = vld [vmem:[#allocation3 + $0x152] sm:$0xff]
        %v2929 = vld [vmem:[#allocation3 + $0x15a] sm:$0xff]
        %v2930 = vld [vmem:[#allocation3 + $0x16a] sm:$0xff]
        %v2931 = vld [vmem:[#allocation3 + $0x172] sm:$0xff]
        %2964 = vrot.lane.b32.xlu0 %v2900, 32
        %v2965 = vpop.permute.xlu0 %2964
        %2966 = vrot.lane.b32.xlu0 %v2901, 32
        %v2967 = vpop.permute.xlu0 %2966
        %2968 = vrot.lane.b32.xlu0 %v2902, 32
        %v2969 = vpop.permute.xlu0 %2968
        %2970 = vrot.lane.b32.xlu0 %v2903, 32
        %v2971 = vpop.permute.xlu0 %2970
        %2972 = vrot.lane.b32.xlu0 %v2904, 32
        %v2973 = vpop.permute.xlu0 %2972
        %2974 = vrot.lane.b32.xlu0 %v2905, 32
        %v2975 = vpop.permute.xlu0 %2974
        %2976 = vrot.lane.b32.xlu0 %v2906, 32
        %v2977 = vpop.permute.xlu0 %2976
        %2978 = vrot.lane.b32.xlu0 %v2907, 32
        %v2979 = vpop.permute.xlu0 %2978
        %2980 = vrot.lane.b32.xlu0 %v2908, 32
        %v2981 = vpop.permute.xlu0 %2980
        %2982 = vrot.lane.b32.xlu0 %v2909, 32
        %v2983 = vpop.permute.xlu0 %2982
        %2984 = vrot.lane.b32.xlu0 %v2910, 32
        %v2985 = vpop.permute.xlu0 %2984
        %2986 = vrot.lane.b32.xlu0 %v2911, 32
        %v2987 = vpop.permute.xlu0 %2986
        %2988 = vrot.lane.b32.xlu0 %v2912, 32
        %v2989 = vpop.permute.xlu0 %2988
        %2990 = vrot.lane.b32.xlu0 %v2913, 32
        %v2991 = vpop.permute.xlu0 %2990
        %2992 = vrot.lane.b32.xlu0 %v2914, 32
        %v2993 = vpop.permute.xlu0 %2992
        %2994 = vrot.lane.b32.xlu0 %v2915, 32
        %v2995 = vpop.permute.xlu0 %2994
        %2996 = vrot.lane.b32.xlu0 %v2916, 32
        %v2997 = vpop.permute.xlu0 %2996
        %2998 = vrot.lane.b32.xlu0 %v2917, 32
        %v2999 = vpop.permute.xlu0 %2998
        %3000 = vrot.lane.b32.xlu0 %v2918, 32
        %v3001 = vpop.permute.xlu0 %3000
        %3002 = vrot.lane.b32.xlu0 %v2919, 32
        %v3003 = vpop.permute.xlu0 %3002
        %3004 = vrot.lane.b32.xlu0 %v2920, 32
        %v3005 = vpop.permute.xlu0 %3004
        %3006 = vrot.lane.b32.xlu0 %v2921, 32
        %v3007 = vpop.permute.xlu0 %3006
        %3008 = vrot.lane.b32.xlu0 %v2922, 32
        %v3009 = vpop.permute.xlu0 %3008
        %3010 = vrot.lane.b32.xlu0 %v2923, 32
        %v3011 = vpop.permute.xlu0 %3010
        %3012 = vrot.lane.b32.xlu0 %v2924, 32
        %v3013 = vpop.permute.xlu0 %3012
        %3014 = vrot.lane.b32.xlu0 %v2925, 32
        %v3015 = vpop.permute.xlu0 %3014
        %3016 = vrot.lane.b32.xlu0 %v2926, 32
        %v3017 = vpop.permute.xlu0 %3016
        %3018 = vrot.lane.b32.xlu0 %v2927, 32
        %v3019 = vpop.permute.xlu0 %3018
        %3020 = vrot.lane.b32.xlu0 %v2928, 32
        %v3021 = vpop.permute.xlu0 %3020
        %3022 = vrot.lane.b32.xlu0 %v2929, 32
        %v3023 = vpop.permute.xlu0 %3022
        %3024 = vrot.lane.b32.xlu0 %v2930, 32
        %v3025 = vpop.permute.xlu0 %3024
        %3026 = vrot.lane.b32.xlu0 %v2931, 32
        %v3027 = vpop.permute.xlu0 %3026
        %vm3060 = vcmask 392448
        %3061 = vst.msk [vmem:[#allocation5] sm:$0xff] %vm3060, %v2965
        %3062 = vst.msk [vmem:[#allocation5 + $0x10] sm:$0xff] %vm3060, %v2967
        %3063 = vst.msk [vmem:[#allocation5 + $0x20] sm:$0xff] %vm3060, %v2969
        %3064 = vst.msk [vmem:[#allocation5 + $0x30] sm:$0xff] %vm3060, %v2971
        %3065 = vst.msk [vmem:[#allocation5 + $0x40] sm:$0xff] %vm3060, %v2973
        %3066 = vst.msk [vmem:[#allocation5 + $0x50] sm:$0xff] %vm3060, %v2975
        %3067 = vst.msk [vmem:[#allocation5 + $0x60] sm:$0xff] %vm3060, %v2977
        %3068 = vst.msk [vmem:[#allocation5 + $0x70] sm:$0xff] %vm3060, %v2979
        %3069 = vst.msk [vmem:[#allocation5 + $0x80] sm:$0xff] %vm3060, %v2981
        %3070 = vst.msk [vmem:[#allocation5 + $0x90] sm:$0xff] %vm3060, %v2983
        %3071 = vst.msk [vmem:[#allocation5 + $0xa0] sm:$0xff] %vm3060, %v2985
        %3072 = vst.msk [vmem:[#allocation5 + $0xb0] sm:$0xff] %vm3060, %v2987
        %3073 = vst.msk [vmem:[#allocation5 + $0xc0] sm:$0xff] %vm3060, %v2989
        %3074 = vst.msk [vmem:[#allocation5 + $0xd0] sm:$0xff] %vm3060, %v2991
        %3075 = vst.msk [vmem:[#allocation5 + $0xe0] sm:$0xff] %vm3060, %v2993
        %3076 = vst.msk [vmem:[#allocation5 + $0xf0] sm:$0xff] %vm3060, %v2995
        %3077 = vst.msk [vmem:[#allocation5 + $0x100] sm:$0xff] %vm3060, %v2997
        %3078 = vst.msk [vmem:[#allocation5 + $0x110] sm:$0xff] %vm3060, %v2999
        %3079 = vst.msk [vmem:[#allocation5 + $0x120] sm:$0xff] %vm3060, %v3001
        %3080 = vst.msk [vmem:[#allocation5 + $0x130] sm:$0xff] %vm3060, %v3003
        %3081 = vst.msk [vmem:[#allocation5 + $0x140] sm:$0xff] %vm3060, %v3005
        %3082 = vst.msk [vmem:[#allocation5 + $0x150] sm:$0xff] %vm3060, %v3007
        %3083 = vst.msk [vmem:[#allocation5 + $0x160] sm:$0xff] %vm3060, %v3009
        %3084 = vst.msk [vmem:[#allocation5 + $0x170] sm:$0xff] %vm3060, %v3011
        %3085 = vst.msk [vmem:[#allocation5 + $0x180] sm:$0xff] %vm3060, %v3013
        %3086 = vst.msk [vmem:[#allocation5 + $0x190] sm:$0xff] %vm3060, %v3015
        %3087 = vst.msk [vmem:[#allocation5 + $0x1a0] sm:$0xff] %vm3060, %v3017
        %3088 = vst.msk [vmem:[#allocation5 + $0x1b0] sm:$0xff] %vm3060, %v3019
        %3089 = vst.msk [vmem:[#allocation5 + $0x1c0] sm:$0xff] %vm3060, %v3021
        %3090 = vst.msk [vmem:[#allocation5 + $0x1d0] sm:$0xff] %vm3060, %v3023
        %3091 = vst.msk [vmem:[#allocation5 + $0x1e0] sm:$0xff] %vm3060, %v3025
        %3092 = vst.msk [vmem:[#allocation5 + $0x1f0] sm:$0xff] %vm3060, %v3027
        %v3093 = vld [vmem:[%s2610] sm:$0xff]
        %v3094 = vld [vmem:[%s2610 + $0x8] sm:$0xff]
        %v3095 = vld [vmem:[%s2610 + $0x18] sm:$0xff]
        %v3096 = vld [vmem:[%s2610 + $0x20] sm:$0xff]
        %v3097 = vld [vmem:[%s2610 + $0x30] sm:$0xff]
        %v3098 = vld [vmem:[%s2610 + $0x38] sm:$0xff]
        %v3099 = vld [vmem:[%s2610 + $0x48] sm:$0xff]
        %v3100 = vld [vmem:[%s2610 + $0x50] sm:$0xff]
        %v3101 = vld [vmem:[%s2610 + $0x60] sm:$0xff]
        %v3102 = vld [vmem:[%s2610 + $0x68] sm:$0xff]
        %v3103 = vld [vmem:[%s2610 + $0x78] sm:$0xff]
        %v3104 = vld [vmem:[%s2610 + $0x80] sm:$0xff]
        %v3105 = vld [vmem:[%s2610 + $0x90] sm:$0xff]
        %v3106 = vld [vmem:[%s2610 + $0x98] sm:$0xff]
        %v3107 = vld [vmem:[%s2610 + $0xa8] sm:$0xff]
        %v3108 = vld [vmem:[%s2610 + $0xb0] sm:$0xff]
        %v3109 = vld [vmem:[%s2610 + $0xc0] sm:$0xff]
        %v3110 = vld [vmem:[%s2610 + $0xc8] sm:$0xff]
        %v3111 = vld [vmem:[%s2610 + $0xd8] sm:$0xff]
        %v3112 = vld [vmem:[%s2610 + $0xe0] sm:$0xff]
        %v3113 = vld [vmem:[%s2610 + $0xf0] sm:$0xff]
        %v3114 = vld [vmem:[%s2610 + $0xf8] sm:$0xff]
        %v3115 = vld [vmem:[%s2610 + $0x108] sm:$0xff]
        %v3116 = vld [vmem:[%s2610 + $0x110] sm:$0xff]
        %v3117 = vld [vmem:[%s2610 + $0x120] sm:$0xff]
        %v3118 = vld [vmem:[%s2610 + $0x128] sm:$0xff]
        %v3119 = vld [vmem:[%s2610 + $0x138] sm:$0xff]
        %v3120 = vld [vmem:[%s2610 + $0x140] sm:$0xff]
        %v3121 = vld [vmem:[%s2610 + $0x150] sm:$0xff]
        %v3122 = vld [vmem:[%s2610 + $0x158] sm:$0xff]
        %v3123 = vld [vmem:[%s2610 + $0x168] sm:$0xff]
        %v3124 = vld [vmem:[%s2610 + $0x170] sm:$0xff]
        %3157 = vrot.lane.b32.xlu0 %v3093, 48
        %v3158 = vpop.permute.xlu0 %3157
        %3159 = vrot.lane.b32.xlu0 %v3094, 48
        %v3160 = vpop.permute.xlu0 %3159
        %3161 = vrot.lane.b32.xlu0 %v3095, 48
        %v3162 = vpop.permute.xlu0 %3161
        %3163 = vrot.lane.b32.xlu0 %v3096, 48
        %v3164 = vpop.permute.xlu0 %3163
        %3165 = vrot.lane.b32.xlu0 %v3097, 48
        %v3166 = vpop.permute.xlu0 %3165
        %3167 = vrot.lane.b32.xlu0 %v3098, 48
        %v3168 = vpop.permute.xlu0 %3167
        %3169 = vrot.lane.b32.xlu0 %v3099, 48
        %v3170 = vpop.permute.xlu0 %3169
        %3171 = vrot.lane.b32.xlu0 %v3100, 48
        %v3172 = vpop.permute.xlu0 %3171
        %3173 = vrot.lane.b32.xlu0 %v3101, 48
        %v3174 = vpop.permute.xlu0 %3173
        %3175 = vrot.lane.b32.xlu0 %v3102, 48
        %v3176 = vpop.permute.xlu0 %3175
        %3177 = vrot.lane.b32.xlu0 %v3103, 48
        %v3178 = vpop.permute.xlu0 %3177
        %3179 = vrot.lane.b32.xlu0 %v3104, 48
        %v3180 = vpop.permute.xlu0 %3179
        %3181 = vrot.lane.b32.xlu0 %v3105, 48
        %v3182 = vpop.permute.xlu0 %3181
        %3183 = vrot.lane.b32.xlu0 %v3106, 48
        %v3184 = vpop.permute.xlu0 %3183
        %3185 = vrot.lane.b32.xlu0 %v3107, 48
        %v3186 = vpop.permute.xlu0 %3185
        %3187 = vrot.lane.b32.xlu0 %v3108, 48
        %v3188 = vpop.permute.xlu0 %3187
        %3189 = vrot.lane.b32.xlu0 %v3109, 48
        %v3190 = vpop.permute.xlu0 %3189
        %3191 = vrot.lane.b32.xlu0 %v3110, 48
        %v3192 = vpop.permute.xlu0 %3191
        %3193 = vrot.lane.b32.xlu0 %v3111, 48
        %v3194 = vpop.permute.xlu0 %3193
        %3195 = vrot.lane.b32.xlu0 %v3112, 48
        %v3196 = vpop.permute.xlu0 %3195
        %3197 = vrot.lane.b32.xlu0 %v3113, 48
        %v3198 = vpop.permute.xlu0 %3197
        %3199 = vrot.lane.b32.xlu0 %v3114, 48
        %v3200 = vpop.permute.xlu0 %3199
        %3201 = vrot.lane.b32.xlu0 %v3115, 48
        %v3202 = vpop.permute.xlu0 %3201
        %3203 = vrot.lane.b32.xlu0 %v3116, 48
        %v3204 = vpop.permute.xlu0 %3203
        %3205 = vrot.lane.b32.xlu0 %v3117, 48
        %v3206 = vpop.permute.xlu0 %3205
        %3207 = vrot.lane.b32.xlu0 %v3118, 48
        %v3208 = vpop.permute.xlu0 %3207
        %3209 = vrot.lane.b32.xlu0 %v3119, 48
        %v3210 = vpop.permute.xlu0 %3209
        %3211 = vrot.lane.b32.xlu0 %v3120, 48
        %v3212 = vpop.permute.xlu0 %3211
        %3213 = vrot.lane.b32.xlu0 %v3121, 48
        %v3214 = vpop.permute.xlu0 %3213
        %3215 = vrot.lane.b32.xlu0 %v3122, 48
        %v3216 = vpop.permute.xlu0 %3215
        %3217 = vrot.lane.b32.xlu0 %v3123, 48
        %v3218 = vpop.permute.xlu0 %3217
        %3219 = vrot.lane.b32.xlu0 %v3124, 48
        %v3220 = vpop.permute.xlu0 %3219
        %vm3253 = vcmask 523648
        %3254 = vst.msk [vmem:[#allocation5] sm:$0xff] %vm3253, %v3158
        %3255 = vst.msk [vmem:[#allocation5 + $0x10] sm:$0xff] %vm3253, %v3160
        %3256 = vst.msk [vmem:[#allocation5 + $0x20] sm:$0xff] %vm3253, %v3162
        %3257 = vst.msk [vmem:[#allocation5 + $0x30] sm:$0xff] %vm3253, %v3164
        %3258 = vst.msk [vmem:[#allocation5 + $0x40] sm:$0xff] %vm3253, %v3166
        %3259 = vst.msk [vmem:[#allocation5 + $0x50] sm:$0xff] %vm3253, %v3168
        %3260 = vst.msk [vmem:[#allocation5 + $0x60] sm:$0xff] %vm3253, %v3170
        %3261 = vst.msk [vmem:[#allocation5 + $0x70] sm:$0xff] %vm3253, %v3172
        %3262 = vst.msk [vmem:[#allocation5 + $0x80] sm:$0xff] %vm3253, %v3174
        %3263 = vst.msk [vmem:[#allocation5 + $0x90] sm:$0xff] %vm3253, %v3176
        %3264 = vst.msk [vmem:[#allocation5 + $0xa0] sm:$0xff] %vm3253, %v3178
        %3265 = vst.msk [vmem:[#allocation5 + $0xb0] sm:$0xff] %vm3253, %v3180
        %3266 = vst.msk [vmem:[#allocation5 + $0xc0] sm:$0xff] %vm3253, %v3182
        %3267 = vst.msk [vmem:[#allocation5 + $0xd0] sm:$0xff] %vm3253, %v3184
        %3268 = vst.msk [vmem:[#allocation5 + $0xe0] sm:$0xff] %vm3253, %v3186
        %3269 = vst.msk [vmem:[#allocation5 + $0xf0] sm:$0xff] %vm3253, %v3188
        %3270 = vst.msk [vmem:[#allocation5 + $0x100] sm:$0xff] %vm3253, %v3190
        %3271 = vst.msk [vmem:[#allocation5 + $0x110] sm:$0xff] %vm3253, %v3192
        %3272 = vst.msk [vmem:[#allocation5 + $0x120] sm:$0xff] %vm3253, %v3194
        %3273 = vst.msk [vmem:[#allocation5 + $0x130] sm:$0xff] %vm3253, %v3196
        %3274 = vst.msk [vmem:[#allocation5 + $0x140] sm:$0xff] %vm3253, %v3198
        %3275 = vst.msk [vmem:[#allocation5 + $0x150] sm:$0xff] %vm3253, %v3200
        %3276 = vst.msk [vmem:[#allocation5 + $0x160] sm:$0xff] %vm3253, %v3202
        %3277 = vst.msk [vmem:[#allocation5 + $0x170] sm:$0xff] %vm3253, %v3204
        %3278 = vst.msk [vmem:[#allocation5 + $0x180] sm:$0xff] %vm3253, %v3206
        %3279 = vst.msk [vmem:[#allocation5 + $0x190] sm:$0xff] %vm3253, %v3208
        %3280 = vst.msk [vmem:[#allocation5 + $0x1a0] sm:$0xff] %vm3253, %v3210
        %3281 = vst.msk [vmem:[#allocation5 + $0x1b0] sm:$0xff] %vm3253, %v3212
        %3282 = vst.msk [vmem:[#allocation5 + $0x1c0] sm:$0xff] %vm3253, %v3214
        %3283 = vst.msk [vmem:[#allocation5 + $0x1d0] sm:$0xff] %vm3253, %v3216
        %3284 = vst.msk [vmem:[#allocation5 + $0x1e0] sm:$0xff] %vm3253, %v3218
        %3285 = vst.msk [vmem:[#allocation5 + $0x1f0] sm:$0xff] %vm3253, %v3220
        %v3286 = vld [vmem:[%s2610 + $0x1] sm:$0xff]
        %v3287 = vld [vmem:[%s2610 + $0x9] sm:$0xff]
        %v3288 = vld [vmem:[%s2610 + $0x19] sm:$0xff]
        %v3289 = vld [vmem:[%s2610 + $0x21] sm:$0xff]
        %v3290 = vld [vmem:[%s2610 + $0x31] sm:$0xff]
        %v3291 = vld [vmem:[%s2610 + $0x39] sm:$0xff]
        %v3292 = vld [vmem:[%s2610 + $0x49] sm:$0xff]
        %v3293 = vld [vmem:[%s2610 + $0x51] sm:$0xff]
        %v3294 = vld [vmem:[%s2610 + $0x61] sm:$0xff]
        %v3295 = vld [vmem:[%s2610 + $0x69] sm:$0xff]
        %v3296 = vld [vmem:[%s2610 + $0x79] sm:$0xff]
        %v3297 = vld [vmem:[%s2610 + $0x81] sm:$0xff]
        %v3298 = vld [vmem:[%s2610 + $0x91] sm:$0xff]
        %v3299 = vld [vmem:[%s2610 + $0x99] sm:$0xff]
        %v3300 = vld [vmem:[%s2610 + $0xa9] sm:$0xff]
        %v3301 = vld [vmem:[%s2610 + $0xb1] sm:$0xff]
        %v3302 = vld [vmem:[%s2610 + $0xc1] sm:$0xff]
        %v3303 = vld [vmem:[%s2610 + $0xc9] sm:$0xff]
        %v3304 = vld [vmem:[%s2610 + $0xd9] sm:$0xff]
        %v3305 = vld [vmem:[%s2610 + $0xe1] sm:$0xff]
        %v3306 = vld [vmem:[%s2610 + $0xf1] sm:$0xff]
        %v3307 = vld [vmem:[%s2610 + $0xf9] sm:$0xff]
        %v3308 = vld [vmem:[%s2610 + $0x109] sm:$0xff]
        %v3309 = vld [vmem:[%s2610 + $0x111] sm:$0xff]
        %v3310 = vld [vmem:[%s2610 + $0x121] sm:$0xff]
        %v3311 = vld [vmem:[%s2610 + $0x129] sm:$0xff]
        %v3312 = vld [vmem:[%s2610 + $0x139] sm:$0xff]
        %v3313 = vld [vmem:[%s2610 + $0x141] sm:$0xff]
        %v3314 = vld [vmem:[%s2610 + $0x151] sm:$0xff]
        %v3315 = vld [vmem:[%s2610 + $0x159] sm:$0xff]
        %v3316 = vld [vmem:[%s2610 + $0x169] sm:$0xff]
        %v3317 = vld [vmem:[%s2610 + $0x171] sm:$0xff]
        %3350 = vrot.lane.b32.xlu0 %v3286, 64
        %v3351 = vpop.permute.xlu0 %3350
        %3352 = vrot.lane.b32.xlu0 %v3287, 64
        %v3353 = vpop.permute.xlu0 %3352
        %3354 = vrot.lane.b32.xlu0 %v3288, 64
        %v3355 = vpop.permute.xlu0 %3354
        %3356 = vrot.lane.b32.xlu0 %v3289, 64
        %v3357 = vpop.permute.xlu0 %3356
        %3358 = vrot.lane.b32.xlu0 %v3290, 64
        %v3359 = vpop.permute.xlu0 %3358
        %3360 = vrot.lane.b32.xlu0 %v3291, 64
        %v3361 = vpop.permute.xlu0 %3360
        %3362 = vrot.lane.b32.xlu0 %v3292, 64
        %v3363 = vpop.permute.xlu0 %3362
        %3364 = vrot.lane.b32.xlu0 %v3293, 64
        %v3365 = vpop.permute.xlu0 %3364
        %3366 = vrot.lane.b32.xlu0 %v3294, 64
        %v3367 = vpop.permute.xlu0 %3366
        %3368 = vrot.lane.b32.xlu0 %v3295, 64
        %v3369 = vpop.permute.xlu0 %3368
        %3370 = vrot.lane.b32.xlu0 %v3296, 64
        %v3371 = vpop.permute.xlu0 %3370
        %3372 = vrot.lane.b32.xlu0 %v3297, 64
        %v3373 = vpop.permute.xlu0 %3372
        %3374 = vrot.lane.b32.xlu0 %v3298, 64
        %v3375 = vpop.permute.xlu0 %3374
        %3376 = vrot.lane.b32.xlu0 %v3299, 64
        %v3377 = vpop.permute.xlu0 %3376
        %3378 = vrot.lane.b32.xlu0 %v3300, 64
        %v3379 = vpop.permute.xlu0 %3378
        %3380 = vrot.lane.b32.xlu0 %v3301, 64
        %v3381 = vpop.permute.xlu0 %3380
        %3382 = vrot.lane.b32.xlu0 %v3302, 64
        %v3383 = vpop.permute.xlu0 %3382
        %3384 = vrot.lane.b32.xlu0 %v3303, 64
        %v3385 = vpop.permute.xlu0 %3384
        %3386 = vrot.lane.b32.xlu0 %v3304, 64
        %v3387 = vpop.permute.xlu0 %3386
        %3388 = vrot.lane.b32.xlu0 %v3305, 64
        %v3389 = vpop.permute.xlu0 %3388
        %3390 = vrot.lane.b32.xlu0 %v3306, 64
        %v3391 = vpop.permute.xlu0 %3390
        %3392 = vrot.lane.b32.xlu0 %v3307, 64
        %v3393 = vpop.permute.xlu0 %3392
        %3394 = vrot.lane.b32.xlu0 %v3308, 64
        %v3395 = vpop.permute.xlu0 %3394
        %3396 = vrot.lane.b32.xlu0 %v3309, 64
        %v3397 = vpop.permute.xlu0 %3396
        %3398 = vrot.lane.b32.xlu0 %v3310, 64
        %v3399 = vpop.permute.xlu0 %3398
        %3400 = vrot.lane.b32.xlu0 %v3311, 64
        %v3401 = vpop.permute.xlu0 %3400
        %3402 = vrot.lane.b32.xlu0 %v3312, 64
        %v3403 = vpop.permute.xlu0 %3402
        %3404 = vrot.lane.b32.xlu0 %v3313, 64
        %v3405 = vpop.permute.xlu0 %3404
        %3406 = vrot.lane.b32.xlu0 %v3314, 64
        %v3407 = vpop.permute.xlu0 %3406
        %3408 = vrot.lane.b32.xlu0 %v3315, 64
        %v3409 = vpop.permute.xlu0 %3408
        %3410 = vrot.lane.b32.xlu0 %v3316, 64
        %v3411 = vpop.permute.xlu0 %3410
        %3412 = vrot.lane.b32.xlu0 %v3317, 64
        %v3413 = vpop.permute.xlu0 %3412
        %vm3446 = vcmask 654848
        %3447 = vst.msk [vmem:[#allocation5] sm:$0xff] %vm3446, %v3351
        %3448 = vst.msk [vmem:[#allocation5 + $0x10] sm:$0xff] %vm3446, %v3353
        %3449 = vst.msk [vmem:[#allocation5 + $0x20] sm:$0xff] %vm3446, %v3355
        %3450 = vst.msk [vmem:[#allocation5 + $0x30] sm:$0xff] %vm3446, %v3357
        %3451 = vst.msk [vmem:[#allocation5 + $0x40] sm:$0xff] %vm3446, %v3359
        %3452 = vst.msk [vmem:[#allocation5 + $0x50] sm:$0xff] %vm3446, %v3361
        %3453 = vst.msk [vmem:[#allocation5 + $0x60] sm:$0xff] %vm3446, %v3363
        %3454 = vst.msk [vmem:[#allocation5 + $0x70] sm:$0xff] %vm3446, %v3365
        %3455 = vst.msk [vmem:[#allocation5 + $0x80] sm:$0xff] %vm3446, %v3367
        %3456 = vst.msk [vmem:[#allocation5 + $0x90] sm:$0xff] %vm3446, %v3369
        %3457 = vst.msk [vmem:[#allocation5 + $0xa0] sm:$0xff] %vm3446, %v3371
        %3458 = vst.msk [vmem:[#allocation5 + $0xb0] sm:$0xff] %vm3446, %v3373
        %3459 = vst.msk [vmem:[#allocation5 + $0xc0] sm:$0xff] %vm3446, %v3375
        %3460 = vst.msk [vmem:[#allocation5 + $0xd0] sm:$0xff] %vm3446, %v3377
        %3461 = vst.msk [vmem:[#allocation5 + $0xe0] sm:$0xff] %vm3446, %v3379
        %3462 = vst.msk [vmem:[#allocation5 + $0xf0] sm:$0xff] %vm3446, %v3381
        %3463 = vst.msk [vmem:[#allocation5 + $0x100] sm:$0xff] %vm3446, %v3383
        %3464 = vst.msk [vmem:[#allocation5 + $0x110] sm:$0xff] %vm3446, %v3385
        %3465 = vst.msk [vmem:[#allocation5 + $0x120] sm:$0xff] %vm3446, %v3387
        %3466 = vst.msk [vmem:[#allocation5 + $0x130] sm:$0xff] %vm3446, %v3389
        %3467 = vst.msk [vmem:[#allocation5 + $0x140] sm:$0xff] %vm3446, %v3391
        %3468 = vst.msk [vmem:[#allocation5 + $0x150] sm:$0xff] %vm3446, %v3393
        %3469 = vst.msk [vmem:[#allocation5 + $0x160] sm:$0xff] %vm3446, %v3395
        %3470 = vst.msk [vmem:[#allocation5 + $0x170] sm:$0xff] %vm3446, %v3397
        %3471 = vst.msk [vmem:[#allocation5 + $0x180] sm:$0xff] %vm3446, %v3399
        %3472 = vst.msk [vmem:[#allocation5 + $0x190] sm:$0xff] %vm3446, %v3401
        %3473 = vst.msk [vmem:[#allocation5 + $0x1a0] sm:$0xff] %vm3446, %v3403
        %3474 = vst.msk [vmem:[#allocation5 + $0x1b0] sm:$0xff] %vm3446, %v3405
        %3475 = vst.msk [vmem:[#allocation5 + $0x1c0] sm:$0xff] %vm3446, %v3407
        %3476 = vst.msk [vmem:[#allocation5 + $0x1d0] sm:$0xff] %vm3446, %v3409
        %3477 = vst.msk [vmem:[#allocation5 + $0x1e0] sm:$0xff] %vm3446, %v3411
        %3478 = vst.msk [vmem:[#allocation5 + $0x1f0] sm:$0xff] %vm3446, %v3413
        %v3479 = vld [vmem:[%s2610 + $0x2] sm:$0xff]
        %v3480 = vld [vmem:[%s2610 + $0xa] sm:$0xff]
        %v3481 = vld [vmem:[%s2610 + $0x1a] sm:$0xff]
        %v3482 = vld [vmem:[%s2610 + $0x22] sm:$0xff]
        %v3483 = vld [vmem:[%s2610 + $0x32] sm:$0xff]
        %v3484 = vld [vmem:[%s2610 + $0x3a] sm:$0xff]
        %v3485 = vld [vmem:[%s2610 + $0x4a] sm:$0xff]
        %v3486 = vld [vmem:[%s2610 + $0x52] sm:$0xff]
        %v3487 = vld [vmem:[%s2610 + $0x62] sm:$0xff]
        %v3488 = vld [vmem:[%s2610 + $0x6a] sm:$0xff]
        %v3489 = vld [vmem:[%s2610 + $0x7a] sm:$0xff]
        %v3490 = vld [vmem:[%s2610 + $0x82] sm:$0xff]
        %v3491 = vld [vmem:[%s2610 + $0x92] sm:$0xff]
        %v3492 = vld [vmem:[%s2610 + $0x9a] sm:$0xff]
        %v3493 = vld [vmem:[%s2610 + $0xaa] sm:$0xff]
        %v3494 = vld [vmem:[%s2610 + $0xb2] sm:$0xff]
        %v3495 = vld [vmem:[%s2610 + $0xc2] sm:$0xff]
        %v3496 = vld [vmem:[%s2610 + $0xca] sm:$0xff]
        %v3497 = vld [vmem:[%s2610 + $0xda] sm:$0xff]
        %v3498 = vld [vmem:[%s2610 + $0xe2] sm:$0xff]
        %v3499 = vld [vmem:[%s2610 + $0xf2] sm:$0xff]
        %v3500 = vld [vmem:[%s2610 + $0xfa] sm:$0xff]
        %v3501 = vld [vmem:[%s2610 + $0x10a] sm:$0xff]
        %v3502 = vld [vmem:[%s2610 + $0x112] sm:$0xff]
        %v3503 = vld [vmem:[%s2610 + $0x122] sm:$0xff]
        %v3504 = vld [vmem:[%s2610 + $0x12a] sm:$0xff]
        %v3505 = vld [vmem:[%s2610 + $0x13a] sm:$0xff]
        %v3506 = vld [vmem:[%s2610 + $0x142] sm:$0xff]
        %v3507 = vld [vmem:[%s2610 + $0x152] sm:$0xff]
        %v3508 = vld [vmem:[%s2610 + $0x15a] sm:$0xff]
        %v3509 = vld [vmem:[%s2610 + $0x16a] sm:$0xff]
        %v3510 = vld [vmem:[%s2610 + $0x172] sm:$0xff]
        %3543 = vrot.lane.b32.xlu0 %v3479, 80
        %v3544 = vpop.permute.xlu0 %3543
        %3545 = vrot.lane.b32.xlu0 %v3480, 80
        %v3546 = vpop.permute.xlu0 %3545
        %3547 = vrot.lane.b32.xlu0 %v3481, 80
        %v3548 = vpop.permute.xlu0 %3547
        %3549 = vrot.lane.b32.xlu0 %v3482, 80
        %v3550 = vpop.permute.xlu0 %3549
        %3551 = vrot.lane.b32.xlu0 %v3483, 80
        %v3552 = vpop.permute.xlu0 %3551
        %3553 = vrot.lane.b32.xlu0 %v3484, 80
        %v3554 = vpop.permute.xlu0 %3553
        %3555 = vrot.lane.b32.xlu0 %v3485, 80
        %v3556 = vpop.permute.xlu0 %3555
        %3557 = vrot.lane.b32.xlu0 %v3486, 80
        %v3558 = vpop.permute.xlu0 %3557
        %3559 = vrot.lane.b32.xlu0 %v3487, 80
        %v3560 = vpop.permute.xlu0 %3559
        %3561 = vrot.lane.b32.xlu0 %v3488, 80
        %v3562 = vpop.permute.xlu0 %3561
        %3563 = vrot.lane.b32.xlu0 %v3489, 80
        %v3564 = vpop.permute.xlu0 %3563
        %3565 = vrot.lane.b32.xlu0 %v3490, 80
        %v3566 = vpop.permute.xlu0 %3565
        %3567 = vrot.lane.b32.xlu0 %v3491, 80
        %v3568 = vpop.permute.xlu0 %3567
        %3569 = vrot.lane.b32.xlu0 %v3492, 80
        %v3570 = vpop.permute.xlu0 %3569
        %3571 = vrot.lane.b32.xlu0 %v3493, 80
        %v3572 = vpop.permute.xlu0 %3571
        %3573 = vrot.lane.b32.xlu0 %v3494, 80
        %v3574 = vpop.permute.xlu0 %3573
        %3575 = vrot.lane.b32.xlu0 %v3495, 80
        %v3576 = vpop.permute.xlu0 %3575
        %3577 = vrot.lane.b32.xlu0 %v3496, 80
        %v3578 = vpop.permute.xlu0 %3577
        %3579 = vrot.lane.b32.xlu0 %v3497, 80
        %v3580 = vpop.permute.xlu0 %3579
        %3581 = vrot.lane.b32.xlu0 %v3498, 80
        %v3582 = vpop.permute.xlu0 %3581
        %3583 = vrot.lane.b32.xlu0 %v3499, 80
        %v3584 = vpop.permute.xlu0 %3583
        %3585 = vrot.lane.b32.xlu0 %v3500, 80
        %v3586 = vpop.permute.xlu0 %3585
        %3587 = vrot.lane.b32.xlu0 %v3501, 80
        %v3588 = vpop.permute.xlu0 %3587
        %3589 = vrot.lane.b32.xlu0 %v3502, 80
        %v3590 = vpop.permute.xlu0 %3589
        %3591 = vrot.lane.b32.xlu0 %v3503, 80
        %v3592 = vpop.permute.xlu0 %3591
        %3593 = vrot.lane.b32.xlu0 %v3504, 80
        %v3594 = vpop.permute.xlu0 %3593
        %3595 = vrot.lane.b32.xlu0 %v3505, 80
        %v3596 = vpop.permute.xlu0 %3595
        %3597 = vrot.lane.b32.xlu0 %v3506, 80
        %v3598 = vpop.permute.xlu0 %3597
        %3599 = vrot.lane.b32.xlu0 %v3507, 80
        %v3600 = vpop.permute.xlu0 %3599
        %3601 = vrot.lane.b32.xlu0 %v3508, 80
        %v3602 = vpop.permute.xlu0 %3601
        %3603 = vrot.lane.b32.xlu0 %v3509, 80
        %v3604 = vpop.permute.xlu0 %3603
        %3605 = vrot.lane.b32.xlu0 %v3510, 80
        %v3606 = vpop.permute.xlu0 %3605
        %vm3639 = vcmask 786048
        %3640 = vst.msk [vmem:[#allocation5] sm:$0xff] %vm3639, %v3544
        %3641 = vst.msk [vmem:[#allocation5 + $0x10] sm:$0xff] %vm3639, %v3546
        %3642 = vst.msk [vmem:[#allocation5 + $0x20] sm:$0xff] %vm3639, %v3548
        %3643 = vst.msk [vmem:[#allocation5 + $0x30] sm:$0xff] %vm3639, %v3550
        %3644 = vst.msk [vmem:[#allocation5 + $0x40] sm:$0xff] %vm3639, %v3552
        %3645 = vst.msk [vmem:[#allocation5 + $0x50] sm:$0xff] %vm3639, %v3554
        %3646 = vst.msk [vmem:[#allocation5 + $0x60] sm:$0xff] %vm3639, %v3556
        %3647 = vst.msk [vmem:[#allocation5 + $0x70] sm:$0xff] %vm3639, %v3558
        %3648 = vst.msk [vmem:[#allocation5 + $0x80] sm:$0xff] %vm3639, %v3560
        %3649 = vst.msk [vmem:[#allocation5 + $0x90] sm:$0xff] %vm3639, %v3562
        %3650 = vst.msk [vmem:[#allocation5 + $0xa0] sm:$0xff] %vm3639, %v3564
        %3651 = vst.msk [vmem:[#allocation5 + $0xb0] sm:$0xff] %vm3639, %v3566
        %3652 = vst.msk [vmem:[#allocation5 + $0xc0] sm:$0xff] %vm3639, %v3568
        %3653 = vst.msk [vmem:[#allocation5 + $0xd0] sm:$0xff] %vm3639, %v3570
        %3654 = vst.msk [vmem:[#allocation5 + $0xe0] sm:$0xff] %vm3639, %v3572
        %3655 = vst.msk [vmem:[#allocation5 + $0xf0] sm:$0xff] %vm3639, %v3574
        %3656 = vst.msk [vmem:[#allocation5 + $0x100] sm:$0xff] %vm3639, %v3576
        %3657 = vst.msk [vmem:[#allocation5 + $0x110] sm:$0xff] %vm3639, %v3578
        %3658 = vst.msk [vmem:[#allocation5 + $0x120] sm:$0xff] %vm3639, %v3580
        %3659 = vst.msk [vmem:[#allocation5 + $0x130] sm:$0xff] %vm3639, %v3582
        %3660 = vst.msk [vmem:[#allocation5 + $0x140] sm:$0xff] %vm3639, %v3584
        %3661 = vst.msk [vmem:[#allocation5 + $0x150] sm:$0xff] %vm3639, %v3586
        %3662 = vst.msk [vmem:[#allocation5 + $0x160] sm:$0xff] %vm3639, %v3588
        %3663 = vst.msk [vmem:[#allocation5 + $0x170] sm:$0xff] %vm3639, %v3590
        %3664 = vst.msk [vmem:[#allocation5 + $0x180] sm:$0xff] %vm3639, %v3592
        %3665 = vst.msk [vmem:[#allocation5 + $0x190] sm:$0xff] %vm3639, %v3594
        %3666 = vst.msk [vmem:[#allocation5 + $0x1a0] sm:$0xff] %vm3639, %v3596
        %3667 = vst.msk [vmem:[#allocation5 + $0x1b0] sm:$0xff] %vm3639, %v3598
        %3668 = vst.msk [vmem:[#allocation5 + $0x1c0] sm:$0xff] %vm3639, %v3600
        %3669 = vst.msk [vmem:[#allocation5 + $0x1d0] sm:$0xff] %vm3639, %v3602
        %3670 = vst.msk [vmem:[#allocation5 + $0x1e0] sm:$0xff] %vm3639, %v3604
        %3671 = vst.msk [vmem:[#allocation5 + $0x1f0] sm:$0xff] %vm3639, %v3606
        %s3672 = scalar_lea.vmem [#allocation3], 48
        %v3673 = vld [vmem:[%s3672] sm:$0xff]
        %v3674 = vld [vmem:[%s3672 + $0x8] sm:$0xff]
        %v3675 = vld [vmem:[%s3672 + $0x18] sm:$0xff]
        %v3676 = vld [vmem:[%s3672 + $0x20] sm:$0xff]
        %v3677 = vld [vmem:[%s3672 + $0x30] sm:$0xff]
        %v3678 = vld [vmem:[%s3672 + $0x38] sm:$0xff]
        %v3679 = vld [vmem:[%s3672 + $0x48] sm:$0xff]
        %v3680 = vld [vmem:[%s3672 + $0x50] sm:$0xff]
        %v3681 = vld [vmem:[%s3672 + $0x60] sm:$0xff]
        %v3682 = vld [vmem:[%s3672 + $0x68] sm:$0xff]
        %v3683 = vld [vmem:[%s3672 + $0x78] sm:$0xff]
        %v3684 = vld [vmem:[%s3672 + $0x80] sm:$0xff]
        %v3685 = vld [vmem:[%s3672 + $0x90] sm:$0xff]
        %v3686 = vld [vmem:[%s3672 + $0x98] sm:$0xff]
        %v3687 = vld [vmem:[%s3672 + $0xa8] sm:$0xff]
        %v3688 = vld [vmem:[%s3672 + $0xb0] sm:$0xff]
        %v3689 = vld [vmem:[%s3672 + $0xc0] sm:$0xff]
        %v3690 = vld [vmem:[%s3672 + $0xc8] sm:$0xff]
        %v3691 = vld [vmem:[%s3672 + $0xd8] sm:$0xff]
        %v3692 = vld [vmem:[%s3672 + $0xe0] sm:$0xff]
        %v3693 = vld [vmem:[%s3672 + $0xf0] sm:$0xff]
        %v3694 = vld [vmem:[%s3672 + $0xf8] sm:$0xff]
        %v3695 = vld [vmem:[%s3672 + $0x108] sm:$0xff]
        %v3696 = vld [vmem:[%s3672 + $0x110] sm:$0xff]
        %v3697 = vld [vmem:[%s3672 + $0x120] sm:$0xff]
        %v3698 = vld [vmem:[%s3672 + $0x128] sm:$0xff]
        %v3699 = vld [vmem:[%s3672 + $0x138] sm:$0xff]
        %v3700 = vld [vmem:[%s3672 + $0x140] sm:$0xff]
        %v3701 = vld [vmem:[%s3672 + $0x150] sm:$0xff]
        %v3702 = vld [vmem:[%s3672 + $0x158] sm:$0xff]
        %v3703 = vld [vmem:[%s3672 + $0x168] sm:$0xff]
        %v3704 = vld [vmem:[%s3672 + $0x170] sm:$0xff]
        %3737 = vrot.lane.b32.xlu0 %v3673, 96
        %v3738 = vpop.permute.xlu0 %3737
        %3739 = vrot.lane.b32.xlu0 %v3674, 96
        %v3740 = vpop.permute.xlu0 %3739
        %3741 = vrot.lane.b32.xlu0 %v3675, 96
        %v3742 = vpop.permute.xlu0 %3741
        %3743 = vrot.lane.b32.xlu0 %v3676, 96
        %v3744 = vpop.permute.xlu0 %3743
        %3745 = vrot.lane.b32.xlu0 %v3677, 96
        %v3746 = vpop.permute.xlu0 %3745
        %3747 = vrot.lane.b32.xlu0 %v3678, 96
        %v3748 = vpop.permute.xlu0 %3747
        %3749 = vrot.lane.b32.xlu0 %v3679, 96
        %v3750 = vpop.permute.xlu0 %3749
        %3751 = vrot.lane.b32.xlu0 %v3680, 96
        %v3752 = vpop.permute.xlu0 %3751
        %3753 = vrot.lane.b32.xlu0 %v3681, 96
        %v3754 = vpop.permute.xlu0 %3753
        %3755 = vrot.lane.b32.xlu0 %v3682, 96
        %v3756 = vpop.permute.xlu0 %3755
        %3757 = vrot.lane.b32.xlu0 %v3683, 96
        %v3758 = vpop.permute.xlu0 %3757
        %3759 = vrot.lane.b32.xlu0 %v3684, 96
        %v3760 = vpop.permute.xlu0 %3759
        %3761 = vrot.lane.b32.xlu0 %v3685, 96
        %v3762 = vpop.permute.xlu0 %3761
        %3763 = vrot.lane.b32.xlu0 %v3686, 96
        %v3764 = vpop.permute.xlu0 %3763
        %3765 = vrot.lane.b32.xlu0 %v3687, 96
        %v3766 = vpop.permute.xlu0 %3765
        %3767 = vrot.lane.b32.xlu0 %v3688, 96
        %v3768 = vpop.permute.xlu0 %3767
        %3769 = vrot.lane.b32.xlu0 %v3689, 96
        %v3770 = vpop.permute.xlu0 %3769
        %3771 = vrot.lane.b32.xlu0 %v3690, 96
        %v3772 = vpop.permute.xlu0 %3771
        %3773 = vrot.lane.b32.xlu0 %v3691, 96
        %v3774 = vpop.permute.xlu0 %3773
        %3775 = vrot.lane.b32.xlu0 %v3692, 96
        %v3776 = vpop.permute.xlu0 %3775
        %3777 = vrot.lane.b32.xlu0 %v3693, 96
        %v3778 = vpop.permute.xlu0 %3777
        %3779 = vrot.lane.b32.xlu0 %v3694, 96
        %v3780 = vpop.permute.xlu0 %3779
        %3781 = vrot.lane.b32.xlu0 %v3695, 96
        %v3782 = vpop.permute.xlu0 %3781
        %3783 = vrot.lane.b32.xlu0 %v3696, 96
        %v3784 = vpop.permute.xlu0 %3783
        %3785 = vrot.lane.b32.xlu0 %v3697, 96
        %v3786 = vpop.permute.xlu0 %3785
        %3787 = vrot.lane.b32.xlu0 %v3698, 96
        %v3788 = vpop.permute.xlu0 %3787
        %3789 = vrot.lane.b32.xlu0 %v3699, 96
        %v3790 = vpop.permute.xlu0 %3789
        %3791 = vrot.lane.b32.xlu0 %v3700, 96
        %v3792 = vpop.permute.xlu0 %3791
        %3793 = vrot.lane.b32.xlu0 %v3701, 96
        %v3794 = vpop.permute.xlu0 %3793
        %3795 = vrot.lane.b32.xlu0 %v3702, 96
        %v3796 = vpop.permute.xlu0 %3795
        %3797 = vrot.lane.b32.xlu0 %v3703, 96
        %v3798 = vpop.permute.xlu0 %3797
        %3799 = vrot.lane.b32.xlu0 %v3704, 96
        %v3800 = vpop.permute.xlu0 %3799
        %vm3833 = vcmask 917248
        %3834 = vst.msk [vmem:[#allocation5] sm:$0xff] %vm3833, %v3738
        %3835 = vst.msk [vmem:[#allocation5 + $0x10] sm:$0xff] %vm3833, %v3740
        %3836 = vst.msk [vmem:[#allocation5 + $0x20] sm:$0xff] %vm3833, %v3742
        %3837 = vst.msk [vmem:[#allocation5 + $0x30] sm:$0xff] %vm3833, %v3744
        %3838 = vst.msk [vmem:[#allocation5 + $0x40] sm:$0xff] %vm3833, %v3746
        %3839 = vst.msk [vmem:[#allocation5 + $0x50] sm:$0xff] %vm3833, %v3748
        %3840 = vst.msk [vmem:[#allocation5 + $0x60] sm:$0xff] %vm3833, %v3750
        %3841 = vst.msk [vmem:[#allocation5 + $0x70] sm:$0xff] %vm3833, %v3752
        %3842 = vst.msk [vmem:[#allocation5 + $0x80] sm:$0xff] %vm3833, %v3754
        %3843 = vst.msk [vmem:[#allocation5 + $0x90] sm:$0xff] %vm3833, %v3756
        %3844 = vst.msk [vmem:[#allocation5 + $0xa0] sm:$0xff] %vm3833, %v3758
        %3845 = vst.msk [vmem:[#allocation5 + $0xb0] sm:$0xff] %vm3833, %v3760
        %3846 = vst.msk [vmem:[#allocation5 + $0xc0] sm:$0xff] %vm3833, %v3762
        %3847 = vst.msk [vmem:[#allocation5 + $0xd0] sm:$0xff] %vm3833, %v3764
        %3848 = vst.msk [vmem:[#allocation5 + $0xe0] sm:$0xff] %vm3833, %v3766
        %3849 = vst.msk [vmem:[#allocation5 + $0xf0] sm:$0xff] %vm3833, %v3768
        %3850 = vst.msk [vmem:[#allocation5 + $0x100] sm:$0xff] %vm3833, %v3770
        %3851 = vst.msk [vmem:[#allocation5 + $0x110] sm:$0xff] %vm3833, %v3772
        %3852 = vst.msk [vmem:[#allocation5 + $0x120] sm:$0xff] %vm3833, %v3774
        %3853 = vst.msk [vmem:[#allocation5 + $0x130] sm:$0xff] %vm3833, %v3776
        %3854 = vst.msk [vmem:[#allocation5 + $0x140] sm:$0xff] %vm3833, %v3778
        %3855 = vst.msk [vmem:[#allocation5 + $0x150] sm:$0xff] %vm3833, %v3780
        %3856 = vst.msk [vmem:[#allocation5 + $0x160] sm:$0xff] %vm3833, %v3782
        %3857 = vst.msk [vmem:[#allocation5 + $0x170] sm:$0xff] %vm3833, %v3784
        %3858 = vst.msk [vmem:[#allocation5 + $0x180] sm:$0xff] %vm3833, %v3786
        %3859 = vst.msk [vmem:[#allocation5 + $0x190] sm:$0xff] %vm3833, %v3788
        %3860 = vst.msk [vmem:[#allocation5 + $0x1a0] sm:$0xff] %vm3833, %v3790
        %3861 = vst.msk [vmem:[#allocation5 + $0x1b0] sm:$0xff] %vm3833, %v3792
        %3862 = vst.msk [vmem:[#allocation5 + $0x1c0] sm:$0xff] %vm3833, %v3794
        %3863 = vst.msk [vmem:[#allocation5 + $0x1d0] sm:$0xff] %vm3833, %v3796
        %3864 = vst.msk [vmem:[#allocation5 + $0x1e0] sm:$0xff] %vm3833, %v3798
        %3865 = vst.msk [vmem:[#allocation5 + $0x1f0] sm:$0xff] %vm3833, %v3800
        %v3866 = vld [vmem:[%s3672 + $0x1] sm:$0xff]
        %v3867 = vld [vmem:[%s3672 + $0x9] sm:$0xff]
        %v3868 = vld [vmem:[%s3672 + $0x19] sm:$0xff]
        %v3869 = vld [vmem:[%s3672 + $0x21] sm:$0xff]
        %v3870 = vld [vmem:[%s3672 + $0x31] sm:$0xff]
        %v3871 = vld [vmem:[%s3672 + $0x39] sm:$0xff]
        %v3872 = vld [vmem:[%s3672 + $0x49] sm:$0xff]
        %v3873 = vld [vmem:[%s3672 + $0x51] sm:$0xff]
        %v3874 = vld [vmem:[%s3672 + $0x61] sm:$0xff]
        %v3875 = vld [vmem:[%s3672 + $0x69] sm:$0xff]
        %v3876 = vld [vmem:[%s3672 + $0x79] sm:$0xff]
        %v3877 = vld [vmem:[%s3672 + $0x81] sm:$0xff]
        %v3878 = vld [vmem:[%s3672 + $0x91] sm:$0xff]
        %v3879 = vld [vmem:[%s3672 + $0x99] sm:$0xff]
        %v3880 = vld [vmem:[%s3672 + $0xa9] sm:$0xff]
        %v3881 = vld [vmem:[%s3672 + $0xb1] sm:$0xff]
        %v3882 = vld [vmem:[%s3672 + $0xc1] sm:$0xff]
        %v3883 = vld [vmem:[%s3672 + $0xc9] sm:$0xff]
        %v3884 = vld [vmem:[%s3672 + $0xd9] sm:$0xff]
        %v3885 = vld [vmem:[%s3672 + $0xe1] sm:$0xff]
        %v3886 = vld [vmem:[%s3672 + $0xf1] sm:$0xff]
        %v3887 = vld [vmem:[%s3672 + $0xf9] sm:$0xff]
        %v3888 = vld [vmem:[%s3672 + $0x109] sm:$0xff]
        %v3889 = vld [vmem:[%s3672 + $0x111] sm:$0xff]
        %v3890 = vld [vmem:[%s3672 + $0x121] sm:$0xff]
        %v3891 = vld [vmem:[%s3672 + $0x129] sm:$0xff]
        %v3892 = vld [vmem:[%s3672 + $0x139] sm:$0xff]
        %v3893 = vld [vmem:[%s3672 + $0x141] sm:$0xff]
        %v3894 = vld [vmem:[%s3672 + $0x151] sm:$0xff]
        %v3895 = vld [vmem:[%s3672 + $0x159] sm:$0xff]
        %v3896 = vld [vmem:[%s3672 + $0x169] sm:$0xff]
        %v3897 = vld [vmem:[%s3672 + $0x171] sm:$0xff]
        %3930 = vrot.lane.b32.xlu0 %v3866, 112
        %v3931 = vpop.permute.xlu0 %3930
        %3932 = vrot.lane.b32.xlu0 %v3867, 112
        %v3933 = vpop.permute.xlu0 %3932
        %3934 = vrot.lane.b32.xlu0 %v3868, 112
        %v3935 = vpop.permute.xlu0 %3934
        %3936 = vrot.lane.b32.xlu0 %v3869, 112
        %v3937 = vpop.permute.xlu0 %3936
        %3938 = vrot.lane.b32.xlu0 %v3870, 112
        %v3939 = vpop.permute.xlu0 %3938
        %3940 = vrot.lane.b32.xlu0 %v3871, 112
        %v3941 = vpop.permute.xlu0 %3940
        %3942 = vrot.lane.b32.xlu0 %v3872, 112
        %v3943 = vpop.permute.xlu0 %3942
        %3944 = vrot.lane.b32.xlu0 %v3873, 112
        %v3945 = vpop.permute.xlu0 %3944
        %3946 = vrot.lane.b32.xlu0 %v3874, 112
        %v3947 = vpop.permute.xlu0 %3946
        %3948 = vrot.lane.b32.xlu0 %v3875, 112
        %v3949 = vpop.permute.xlu0 %3948
        %3950 = vrot.lane.b32.xlu0 %v3876, 112
        %v3951 = vpop.permute.xlu0 %3950
        %3952 = vrot.lane.b32.xlu0 %v3877, 112
        %v3953 = vpop.permute.xlu0 %3952
        %3954 = vrot.lane.b32.xlu0 %v3878, 112
        %v3955 = vpop.permute.xlu0 %3954
        %3956 = vrot.lane.b32.xlu0 %v3879, 112
        %v3957 = vpop.permute.xlu0 %3956
        %3958 = vrot.lane.b32.xlu0 %v3880, 112
        %v3959 = vpop.permute.xlu0 %3958
        %3960 = vrot.lane.b32.xlu0 %v3881, 112
        %v3961 = vpop.permute.xlu0 %3960
        %3962 = vrot.lane.b32.xlu0 %v3882, 112
        %v3963 = vpop.permute.xlu0 %3962
        %3964 = vrot.lane.b32.xlu0 %v3883, 112
        %v3965 = vpop.permute.xlu0 %3964
        %3966 = vrot.lane.b32.xlu0 %v3884, 112
        %v3967 = vpop.permute.xlu0 %3966
        %3968 = vrot.lane.b32.xlu0 %v3885, 112
        %v3969 = vpop.permute.xlu0 %3968
        %3970 = vrot.lane.b32.xlu0 %v3886, 112
        %v3971 = vpop.permute.xlu0 %3970
        %3972 = vrot.lane.b32.xlu0 %v3887, 112
        %v3973 = vpop.permute.xlu0 %3972
        %3974 = vrot.lane.b32.xlu0 %v3888, 112
        %v3975 = vpop.permute.xlu0 %3974
        %3976 = vrot.lane.b32.xlu0 %v3889, 112
        %v3977 = vpop.permute.xlu0 %3976
        %3978 = vrot.lane.b32.xlu0 %v3890, 112
        %v3979 = vpop.permute.xlu0 %3978
        %3980 = vrot.lane.b32.xlu0 %v3891, 112
        %v3981 = vpop.permute.xlu0 %3980
        %3982 = vrot.lane.b32.xlu0 %v3892, 112
        %v3983 = vpop.permute.xlu0 %3982
        %3984 = vrot.lane.b32.xlu0 %v3893, 112
        %v3985 = vpop.permute.xlu0 %3984
        %3986 = vrot.lane.b32.xlu0 %v3894, 112
        %v3987 = vpop.permute.xlu0 %3986
        %3988 = vrot.lane.b32.xlu0 %v3895, 112
        %v3989 = vpop.permute.xlu0 %3988
        %3990 = vrot.lane.b32.xlu0 %v3896, 112
        %v3991 = vpop.permute.xlu0 %3990
        %3992 = vrot.lane.b32.xlu0 %v3897, 112
        %v3993 = vpop.permute.xlu0 %3992
        %vm4026 = vcmask 1048448
        %4027 = vst.msk [vmem:[#allocation5] sm:$0xff] %vm4026, %v3931
        %4028 = vst.msk [vmem:[#allocation5 + $0x10] sm:$0xff] %vm4026, %v3933
        %4029 = vst.msk [vmem:[#allocation5 + $0x20] sm:$0xff] %vm4026, %v3935
        %4030 = vst.msk [vmem:[#allocation5 + $0x30] sm:$0xff] %vm4026, %v3937
        %4031 = vst.msk [vmem:[#allocation5 + $0x40] sm:$0xff] %vm4026, %v3939
        %4032 = vst.msk [vmem:[#allocation5 + $0x50] sm:$0xff] %vm4026, %v3941
        %4033 = vst.msk [vmem:[#allocation5 + $0x60] sm:$0xff] %vm4026, %v3943
        %4034 = vst.msk [vmem:[#allocation5 + $0x70] sm:$0xff] %vm4026, %v3945
        %4035 = vst.msk [vmem:[#allocation5 + $0x80] sm:$0xff] %vm4026, %v3947
        %4036 = vst.msk [vmem:[#allocation5 + $0x90] sm:$0xff] %vm4026, %v3949
        %4037 = vst.msk [vmem:[#allocation5 + $0xa0] sm:$0xff] %vm4026, %v3951
        %4038 = vst.msk [vmem:[#allocation5 + $0xb0] sm:$0xff] %vm4026, %v3953
        %4039 = vst.msk [vmem:[#allocation5 + $0xc0] sm:$0xff] %vm4026, %v3955
        %4040 = vst.msk [vmem:[#allocation5 + $0xd0] sm:$0xff] %vm4026, %v3957
        %4041 = vst.msk [vmem:[#allocation5 + $0xe0] sm:$0xff] %vm4026, %v3959
        %4042 = vst.msk [vmem:[#allocation5 + $0xf0] sm:$0xff] %vm4026, %v3961
        %4043 = vst.msk [vmem:[#allocation5 + $0x100] sm:$0xff] %vm4026, %v3963
        %4044 = vst.msk [vmem:[#allocation5 + $0x110] sm:$0xff] %vm4026, %v3965
        %4045 = vst.msk [vmem:[#allocation5 + $0x120] sm:$0xff] %vm4026, %v3967
        %4046 = vst.msk [vmem:[#allocation5 + $0x130] sm:$0xff] %vm4026, %v3969
        %4047 = vst.msk [vmem:[#allocation5 + $0x140] sm:$0xff] %vm4026, %v3971
        %4048 = vst.msk [vmem:[#allocation5 + $0x150] sm:$0xff] %vm4026, %v3973
        %4049 = vst.msk [vmem:[#allocation5 + $0x160] sm:$0xff] %vm4026, %v3975
        %4050 = vst.msk [vmem:[#allocation5 + $0x170] sm:$0xff] %vm4026, %v3977
        %4051 = vst.msk [vmem:[#allocation5 + $0x180] sm:$0xff] %vm4026, %v3979
        %4052 = vst.msk [vmem:[#allocation5 + $0x190] sm:$0xff] %vm4026, %v3981
        %4053 = vst.msk [vmem:[#allocation5 + $0x1a0] sm:$0xff] %vm4026, %v3983
        %4054 = vst.msk [vmem:[#allocation5 + $0x1b0] sm:$0xff] %vm4026, %v3985
        %4055 = vst.msk [vmem:[#allocation5 + $0x1c0] sm:$0xff] %vm4026, %v3987
        %4056 = vst.msk [vmem:[#allocation5 + $0x1d0] sm:$0xff] %vm4026, %v3989
        %4057 = vst.msk [vmem:[#allocation5 + $0x1e0] sm:$0xff] %vm4026, %v3991
        %4058 = vst.msk [vmem:[#allocation5 + $0x1f0] sm:$0xff] %vm4026, %v3993
        %v4059 = vld [vmem:[%s3672 + $0x2] sm:$0xff]
        %v4060 = vld [vmem:[%s3672 + $0xa] sm:$0xff]
        %v4061 = vld [vmem:[%s3672 + $0x1a] sm:$0xff]
        %v4062 = vld [vmem:[%s3672 + $0x22] sm:$0xff]
        %v4063 = vld [vmem:[%s3672 + $0x32] sm:$0xff]
        %v4064 = vld [vmem:[%s3672 + $0x3a] sm:$0xff]
        %v4065 = vld [vmem:[%s3672 + $0x4a] sm:$0xff]
        %v4066 = vld [vmem:[%s3672 + $0x52] sm:$0xff]
        %v4067 = vld [vmem:[%s3672 + $0x62] sm:$0xff]
        %v4068 = vld [vmem:[%s3672 + $0x6a] sm:$0xff]
        %v4069 = vld [vmem:[%s3672 + $0x7a] sm:$0xff]
        %v4070 = vld [vmem:[%s3672 + $0x82] sm:$0xff]
        %v4071 = vld [vmem:[%s3672 + $0x92] sm:$0xff]
        %v4072 = vld [vmem:[%s3672 + $0x9a] sm:$0xff]
        %v4073 = vld [vmem:[%s3672 + $0xaa] sm:$0xff]
        %v4074 = vld [vmem:[%s3672 + $0xb2] sm:$0xff]
        %v4075 = vld [vmem:[%s3672 + $0xc2] sm:$0xff]
        %v4076 = vld [vmem:[%s3672 + $0xca] sm:$0xff]
        %v4077 = vld [vmem:[%s3672 + $0xda] sm:$0xff]
        %v4078 = vld [vmem:[%s3672 + $0xe2] sm:$0xff]
        %v4079 = vld [vmem:[%s3672 + $0xf2] sm:$0xff]
        %v4080 = vld [vmem:[%s3672 + $0xfa] sm:$0xff]
        %v4081 = vld [vmem:[%s3672 + $0x10a] sm:$0xff]
        %v4082 = vld [vmem:[%s3672 + $0x112] sm:$0xff]
        %v4083 = vld [vmem:[%s3672 + $0x122] sm:$0xff]
        %v4084 = vld [vmem:[%s3672 + $0x12a] sm:$0xff]
        %v4085 = vld [vmem:[%s3672 + $0x13a] sm:$0xff]
        %v4086 = vld [vmem:[%s3672 + $0x142] sm:$0xff]
        %v4087 = vld [vmem:[%s3672 + $0x152] sm:$0xff]
        %v4088 = vld [vmem:[%s3672 + $0x15a] sm:$0xff]
        %v4089 = vld [vmem:[%s3672 + $0x16a] sm:$0xff]
        %v4090 = vld [vmem:[%s3672 + $0x172] sm:$0xff]
        %4091 = vst.msk [vmem:[#allocation5 + $0x8] sm:$0xff] %vm2564, %v4059
        %4092 = vst.msk [vmem:[#allocation5 + $0x18] sm:$0xff] %vm2564, %v4060
        %4093 = vst.msk [vmem:[#allocation5 + $0x28] sm:$0xff] %vm2564, %v4061
        %4094 = vst.msk [vmem:[#allocation5 + $0x38] sm:$0xff] %vm2564, %v4062
        %4095 = vst.msk [vmem:[#allocation5 + $0x48] sm:$0xff] %vm2564, %v4063
        %4096 = vst.msk [vmem:[#allocation5 + $0x58] sm:$0xff] %vm2564, %v4064
        %4097 = vst.msk [vmem:[#allocation5 + $0x68] sm:$0xff] %vm2564, %v4065
        %4098 = vst.msk [vmem:[#allocation5 + $0x78] sm:$0xff] %vm2564, %v4066
        %4099 = vst.msk [vmem:[#allocation5 + $0x88] sm:$0xff] %vm2564, %v4067
        %4100 = vst.msk [vmem:[#allocation5 + $0x98] sm:$0xff] %vm2564, %v4068
        %4101 = vst.msk [vmem:[#allocation5 + $0xa8] sm:$0xff] %vm2564, %v4069
        %4102 = vst.msk [vmem:[#allocation5 + $0xb8] sm:$0xff] %vm2564, %v4070
        %4103 = vst.msk [vmem:[#allocation5 + $0xc8] sm:$0xff] %vm2564, %v4071
        %4104 = vst.msk [vmem:[#allocation5 + $0xd8] sm:$0xff] %vm2564, %v4072
        %4105 = vst.msk [vmem:[#allocation5 + $0xe8] sm:$0xff] %vm2564, %v4073
        %4106 = vst.msk [vmem:[#allocation5 + $0xf8] sm:$0xff] %vm2564, %v4074
        %4107 = vst.msk [vmem:[#allocation5 + $0x108] sm:$0xff] %vm2564, %v4075
        %4108 = vst.msk [vmem:[#allocation5 + $0x118] sm:$0xff] %vm2564, %v4076
        %4109 = vst.msk [vmem:[#allocation5 + $0x128] sm:$0xff] %vm2564, %v4077
        %4110 = vst.msk [vmem:[#allocation5 + $0x138] sm:$0xff] %vm2564, %v4078
        %4111 = vst.msk [vmem:[#allocation5 + $0x148] sm:$0xff] %vm2564, %v4079
        %4112 = vst.msk [vmem:[#allocation5 + $0x158] sm:$0xff] %vm2564, %v4080
        %4113 = vst.msk [vmem:[#allocation5 + $0x168] sm:$0xff] %vm2564, %v4081
        %4114 = vst.msk [vmem:[#allocation5 + $0x178] sm:$0xff] %vm2564, %v4082
        %4115 = vst.msk [vmem:[#allocation5 + $0x188] sm:$0xff] %vm2564, %v4083
        %4116 = vst.msk [vmem:[#allocation5 + $0x198] sm:$0xff] %vm2564, %v4084
        %4117 = vst.msk [vmem:[#allocation5 + $0x1a8] sm:$0xff] %vm2564, %v4085
        %4118 = vst.msk [vmem:[#allocation5 + $0x1b8] sm:$0xff] %vm2564, %v4086
        %4119 = vst.msk [vmem:[#allocation5 + $0x1c8] sm:$0xff] %vm2564, %v4087
        %4120 = vst.msk [vmem:[#allocation5 + $0x1d8] sm:$0xff] %vm2564, %v4088
        %4121 = vst.msk [vmem:[#allocation5 + $0x1e8] sm:$0xff] %vm2564, %v4089
        %4122 = vst.msk [vmem:[#allocation5 + $0x1f8] sm:$0xff] %vm2564, %v4090
        %v4123 = vld [vmem:[#allocation5] sm:$0xff]
        %v4124 = vld [vmem:[#allocation5 + $0x8] sm:$0xff]
        %v4125 = vld [vmem:[#allocation5 + $0x10] sm:$0xff]
        %v4126 = vld [vmem:[#allocation5 + $0x18] sm:$0xff]
        %v4127 = vld [vmem:[#allocation5 + $0x20] sm:$0xff]
        %v4128 = vld [vmem:[#allocation5 + $0x28] sm:$0xff]
        %v4129 = vld [vmem:[#allocation5 + $0x30] sm:$0xff]
        %v4130 = vld [vmem:[#allocation5 + $0x38] sm:$0xff]
        %v4131 = vld [vmem:[#allocation5 + $0x40] sm:$0xff]
        %v4132 = vld [vmem:[#allocation5 + $0x48] sm:$0xff]
        %v4133 = vld [vmem:[#allocation5 + $0x50] sm:$0xff]
        %v4134 = vld [vmem:[#allocation5 + $0x58] sm:$0xff]
        %v4135 = vld [vmem:[#allocation5 + $0x60] sm:$0xff]
        %v4136 = vld [vmem:[#allocation5 + $0x68] sm:$0xff]
        %v4137 = vld [vmem:[#allocation5 + $0x70] sm:$0xff]
        %v4138 = vld [vmem:[#allocation5 + $0x78] sm:$0xff]
        %v4139 = vld [vmem:[#allocation5 + $0x80] sm:$0xff]
        %v4140 = vld [vmem:[#allocation5 + $0x88] sm:$0xff]
        %v4141 = vld [vmem:[#allocation5 + $0x90] sm:$0xff]
        %v4142 = vld [vmem:[#allocation5 + $0x98] sm:$0xff]
        %v4143 = vld [vmem:[#allocation5 + $0xa0] sm:$0xff]
        %v4144 = vld [vmem:[#allocation5 + $0xa8] sm:$0xff]
        %v4145 = vld [vmem:[#allocation5 + $0xb0] sm:$0xff]
        %v4146 = vld [vmem:[#allocation5 + $0xb8] sm:$0xff]
        %v4147 = vld [vmem:[#allocation5 + $0xc0] sm:$0xff]
        %v4148 = vld [vmem:[#allocation5 + $0xc8] sm:$0xff]
        %v4149 = vld [vmem:[#allocation5 + $0xd0] sm:$0xff]
        %v4150 = vld [vmem:[#allocation5 + $0xd8] sm:$0xff]
        %v4151 = vld [vmem:[#allocation5 + $0xe0] sm:$0xff]
        %v4152 = vld [vmem:[#allocation5 + $0xe8] sm:$0xff]
        %v4153 = vld [vmem:[#allocation5 + $0xf0] sm:$0xff]
        %v4154 = vld [vmem:[#allocation5 + $0xf8] sm:$0xff]
        %v4155 = vld [vmem:[#allocation5 + $0x100] sm:$0xff]
        %v4156 = vld [vmem:[#allocation5 + $0x108] sm:$0xff]
        %v4157 = vld [vmem:[#allocation5 + $0x110] sm:$0xff]
        %v4158 = vld [vmem:[#allocation5 + $0x118] sm:$0xff]
        %v4159 = vld [vmem:[#allocation5 + $0x120] sm:$0xff]
        %v4160 = vld [vmem:[#allocation5 + $0x128] sm:$0xff]
        %v4161 = vld [vmem:[#allocation5 + $0x130] sm:$0xff]
        %v4162 = vld [vmem:[#allocation5 + $0x138] sm:$0xff]
        %v4163 = vld [vmem:[#allocation5 + $0x140] sm:$0xff]
        %v4164 = vld [vmem:[#allocation5 + $0x148] sm:$0xff]
        %v4165 = vld [vmem:[#allocation5 + $0x150] sm:$0xff]
        %v4166 = vld [vmem:[#allocation5 + $0x158] sm:$0xff]
        %v4167 = vld [vmem:[#allocation5 + $0x160] sm:$0xff]
        %v4168 = vld [vmem:[#allocation5 + $0x168] sm:$0xff]
        %v4169 = vld [vmem:[#allocation5 + $0x170] sm:$0xff]
        %v4170 = vld [vmem:[#allocation5 + $0x178] sm:$0xff]
        %v4171 = vld [vmem:[#allocation5 + $0x180] sm:$0xff]
        %v4172 = vld [vmem:[#allocation5 + $0x188] sm:$0xff]
        %v4173 = vld [vmem:[#allocation5 + $0x190] sm:$0xff]
        %v4174 = vld [vmem:[#allocation5 + $0x198] sm:$0xff]
        %v4175 = vld [vmem:[#allocation5 + $0x1a0] sm:$0xff]
        %v4176 = vld [vmem:[#allocation5 + $0x1a8] sm:$0xff]
        %v4177 = vld [vmem:[#allocation5 + $0x1b0] sm:$0xff]
        %v4178 = vld [vmem:[#allocation5 + $0x1b8] sm:$0xff]
        %v4179 = vld [vmem:[#allocation5 + $0x1c0] sm:$0xff]
        %v4180 = vld [vmem:[#allocation5 + $0x1c8] sm:$0xff]
        %v4181 = vld [vmem:[#allocation5 + $0x1d0] sm:$0xff]
        %v4182 = vld [vmem:[#allocation5 + $0x1d8] sm:$0xff]
        %v4183 = vld [vmem:[#allocation5 + $0x1e0] sm:$0xff]
        %v4184 = vld [vmem:[#allocation5 + $0x1e8] sm:$0xff]
        %v4185 = vld [vmem:[#allocation5 + $0x1f0] sm:$0xff]
        %v4186 = vld [vmem:[#allocation5 + $0x1f8] sm:$0xff]
        %v4187 = vld [vmem:[%s6] sm:$0xff]
        %v4188 = vld [vmem:[%s6 + $0x8] sm:$0xff]
        %v4189 = vld [vmem:[%s6 + $0x10] sm:$0xff]
        %v4190 = vld [vmem:[%s6 + $0x18] sm:$0xff]
        %v4191 = vld [vmem:[%s6 + $0x20] sm:$0xff]
        %v4192 = vld [vmem:[%s6 + $0x28] sm:$0xff]
        %v4193 = vld [vmem:[%s6 + $0x30] sm:$0xff]
        %v4194 = vld [vmem:[%s6 + $0x38] sm:$0xff]
        %v4195 = vld [vmem:[%s6 + $0x40] sm:$0xff]
        %v4196 = vld [vmem:[%s6 + $0x48] sm:$0xff]
        %v4197 = vld [vmem:[%s6 + $0x50] sm:$0xff]
        %v4198 = vld [vmem:[%s6 + $0x58] sm:$0xff]
        %v4199 = vld [vmem:[%s6 + $0x60] sm:$0xff]
        %v4200 = vld [vmem:[%s6 + $0x68] sm:$0xff]
        %v4201 = vld [vmem:[%s6 + $0x70] sm:$0xff]
        %v4202 = vld [vmem:[%s6 + $0x78] sm:$0xff]
        %v4203 = vld [vmem:[%s6 + $0x80] sm:$0xff]
        %v4204 = vld [vmem:[%s6 + $0x88] sm:$0xff]
        %v4205 = vld [vmem:[%s7] sm:$0xff]
        %v4206 = vld [vmem:[%s8] sm:$0x1]
        %v4208 = vperm.slane %v4206, 0
        %v4211 = vsel %vm521, %v385, 0
        %v4214 = vsel %vm521, %v386, 0
        %v4217 = vsel %vm521, %v387, 0
        %v4220 = vsel %vm521, %v388, 0
        %v4223 = vsel %vm521, %v389, 0
        %v4226 = vsel %vm521, %v390, 0
        %v4229 = vsel %vm521, %v391, 0
        %v4232 = vsel %vm521, %v392, 0
        %v4235 = vsel %vm521, %v393, 0
        %v4238 = vsel %vm521, %v394, 0
        %v4241 = vsel %vm521, %v395, 0
        %v4244 = vsel %vm521, %v396, 0
        %v4247 = vsel %vm521, %v397, 0
        %v4250 = vsel %vm521, %v398, 0
        %v4253 = vsel %vm521, %v399, 0
        %v4256 = vsel %vm521, %v400, 0
        %v4259 = vsel %vm521, %v401, 0
        %v4262 = vsel %vm521, %v402, 0
        %v4265 = vsel %vm521, %v403, 0
        %v4268 = vsel %vm521, %v404, 0
        %v4271 = vsel %vm521, %v405, 0
        %v4274 = vsel %vm521, %v406, 0
        %v4277 = vsel %vm521, %v407, 0
        %v4280 = vsel %vm521, %v408, 0
        %v4283 = vsel %vm521, %v409, 0
        %v4286 = vsel %vm521, %v410, 0
        %v4289 = vsel %vm521, %v411, 0
        %v4292 = vsel %vm521, %v412, 0
        %v4295 = vsel %vm521, %v413, 0
        %v4298 = vsel %vm521, %v414, 0
        %v4301 = vsel %vm521, %v415, 0
        %v4304 = vsel %vm521, %v416, 0
        %4306 = vmatpush.msra.mxu0 0.0
        %4307 = vmatpush.msra.mxu0 0.0
        %4308 = vmatpush.msra.mxu0 0.0
        %4309 = vmatpush.msra.mxu0 0.0
        %4310 = vmatpush.msra.mxu0 0.0
        %4311 = vmatpush.msra.mxu0 0.0
        %4312 = vmatpush.msra.mxu0 0.0
        %4313 = vmatpush.msra.mxu0 0.0
        %4314 = vmatpush.msra.mxu0 0.0
        %4315 = vmatpush.msra.mxu0 0.0
        %4316 = vmatpush.msra.mxu0 0.0
        %4317 = vmatpush.msra.mxu0 0.0
        %4318 = vmatpush.msra.mxu0 0.0
        %4319 = vmatpush.msra.mxu0 0.0
        %4320 = vmatpush.msra.mxu0 0.0
        %4321 = vmatpush.msra.mxu0 %v4205
        %4322 = vmatmul.f32.gmra.mxu0 %v4211
        %v4323 = vpop.f32.mrf.mxu0
        %v4324 = vadd.f32 %v4208, %v4323
        %4325 = vmatmul.f32.gmra.mxu0 %v4214
        %v4326 = vpop.f32.mrf.mxu0
        %v4327 = vadd.f32 %v4208, %v4326
        %4328 = vmatmul.f32.gmra.mxu0 %v4217
        %v4329 = vpop.f32.mrf.mxu0
        %v4330 = vadd.f32 %v4208, %v4329
        %4331 = vmatmul.f32.gmra.mxu0 %v4220
        %v4332 = vpop.f32.mrf.mxu0
        %v4333 = vadd.f32 %v4208, %v4332
        %4334 = vmatmul.f32.gmra.mxu0 %v4223
        %v4335 = vpop.f32.mrf.mxu0
        %v4336 = vadd.f32 %v4208, %v4335
        %4337 = vmatmul.f32.gmra.mxu0 %v4226
        %v4338 = vpop.f32.mrf.mxu0
        %v4339 = vadd.f32 %v4208, %v4338
        %4340 = vmatmul.f32.gmra.mxu0 %v4229
        %v4341 = vpop.f32.mrf.mxu0
        %v4342 = vadd.f32 %v4208, %v4341
        %4343 = vmatmul.f32.gmra.mxu0 %v4232
        %v4344 = vpop.f32.mrf.mxu0
        %v4345 = vadd.f32 %v4208, %v4344
        %4346 = vmatmul.f32.gmra.mxu0 %v4235
        %v4347 = vpop.f32.mrf.mxu0
        %v4348 = vadd.f32 %v4208, %v4347
        %4349 = vmatmul.f32.gmra.mxu0 %v4238
        %v4350 = vpop.f32.mrf.mxu0
        %v4351 = vadd.f32 %v4208, %v4350
        %4352 = vmatmul.f32.gmra.mxu0 %v4241
        %v4353 = vpop.f32.mrf.mxu0
        %v4354 = vadd.f32 %v4208, %v4353
        %4355 = vmatmul.f32.gmra.mxu0 %v4244
        %v4356 = vpop.f32.mrf.mxu0
        %v4357 = vadd.f32 %v4208, %v4356
        %4358 = vmatmul.f32.gmra.mxu0 %v4247
        %v4359 = vpop.f32.mrf.mxu0
        %v4360 = vadd.f32 %v4208, %v4359
        %4361 = vmatmul.f32.gmra.mxu0 %v4250
        %v4362 = vpop.f32.mrf.mxu0
        %v4363 = vadd.f32 %v4208, %v4362
        %4364 = vmatmul.f32.gmra.mxu0 %v4253
        %v4365 = vpop.f32.mrf.mxu0
        %v4366 = vadd.f32 %v4208, %v4365
        %4367 = vmatmul.f32.gmra.mxu0 %v4256
        %v4368 = vpop.f32.mrf.mxu0
        %v4369 = vadd.f32 %v4208, %v4368
        %4370 = vmatmul.f32.gmra.mxu0 %v4259
        %v4371 = vpop.f32.mrf.mxu0
        %v4372 = vadd.f32 %v4208, %v4371
        %4373 = vmatmul.f32.gmra.mxu0 %v4262
        %v4374 = vpop.f32.mrf.mxu0
        %v4375 = vadd.f32 %v4208, %v4374
        %4376 = vmatmul.f32.gmra.mxu0 %v4265
        %v4377 = vpop.f32.mrf.mxu0
        %v4378 = vadd.f32 %v4208, %v4377
        %4379 = vmatmul.f32.gmra.mxu0 %v4268
        %v4380 = vpop.f32.mrf.mxu0
        %v4381 = vadd.f32 %v4208, %v4380
        %4382 = vmatmul.f32.gmra.mxu0 %v4271
        %v4383 = vpop.f32.mrf.mxu0
        %v4384 = vadd.f32 %v4208, %v4383
        %4385 = vmatmul.f32.gmra.mxu0 %v4274
        %v4386 = vpop.f32.mrf.mxu0
        %v4387 = vadd.f32 %v4208, %v4386
        %4388 = vmatmul.f32.gmra.mxu0 %v4277
        %v4389 = vpop.f32.mrf.mxu0
        %v4390 = vadd.f32 %v4208, %v4389
        %4391 = vmatmul.f32.gmra.mxu0 %v4280
        %v4392 = vpop.f32.mrf.mxu0
        %v4393 = vadd.f32 %v4208, %v4392
        %4394 = vmatmul.f32.gmra.mxu0 %v4283
        %v4395 = vpop.f32.mrf.mxu0
        %v4396 = vadd.f32 %v4208, %v4395
        %4397 = vmatmul.f32.gmra.mxu0 %v4286
        %v4398 = vpop.f32.mrf.mxu0
        %v4399 = vadd.f32 %v4208, %v4398
        %4400 = vmatmul.f32.gmra.mxu0 %v4289
        %v4401 = vpop.f32.mrf.mxu0
        %v4402 = vadd.f32 %v4208, %v4401
        %4403 = vmatmul.f32.gmra.mxu0 %v4292
        %v4404 = vpop.f32.mrf.mxu0
        %v4405 = vadd.f32 %v4208, %v4404
        %4406 = vmatmul.f32.gmra.mxu0 %v4295
        %v4407 = vpop.f32.mrf.mxu0
        %v4408 = vadd.f32 %v4208, %v4407
        %4409 = vmatmul.f32.gmra.mxu0 %v4298
        %v4410 = vpop.f32.mrf.mxu0
        %v4411 = vadd.f32 %v4208, %v4410
        %4412 = vmatmul.f32.gmra.mxu0 %v4301
        %v4413 = vpop.f32.mrf.mxu0
        %v4414 = vadd.f32 %v4208, %v4413
        %4415 = vmatmul.f32.gmra.mxu0 %v4304
        %v4416 = vpop.f32.mrf.mxu0
        %v4417 = vadd.f32 %v4208, %v4416
        %4418 = vdwg.mxu0
        %v4420 = vsel %vm2564, %v4124, 0
        %v4423 = vsel %vm2564, %v4126, 0
        %v4426 = vsel %vm2564, %v4128, 0
        %v4429 = vsel %vm2564, %v4130, 0
        %v4432 = vsel %vm2564, %v4132, 0
        %v4435 = vsel %vm2564, %v4134, 0
        %v4438 = vsel %vm2564, %v4136, 0
        %v4441 = vsel %vm2564, %v4138, 0
        %v4444 = vsel %vm2564, %v4140, 0
        %v4447 = vsel %vm2564, %v4142, 0
        %v4450 = vsel %vm2564, %v4144, 0
        %v4453 = vsel %vm2564, %v4146, 0
        %v4456 = vsel %vm2564, %v4148, 0
        %v4459 = vsel %vm2564, %v4150, 0
        %v4462 = vsel %vm2564, %v4152, 0
        %v4465 = vsel %vm2564, %v4154, 0
        %v4468 = vsel %vm2564, %v4156, 0
        %v4471 = vsel %vm2564, %v4158, 0
        %v4474 = vsel %vm2564, %v4160, 0
        %v4477 = vsel %vm2564, %v4162, 0
        %v4480 = vsel %vm2564, %v4164, 0
        %v4483 = vsel %vm2564, %v4166, 0
        %v4486 = vsel %vm2564, %v4168, 0
        %v4489 = vsel %vm2564, %v4170, 0
        %v4492 = vsel %vm2564, %v4172, 0
        %v4495 = vsel %vm2564, %v4174, 0
        %v4498 = vsel %vm2564, %v4176, 0
        %v4501 = vsel %vm2564, %v4178, 0
        %v4504 = vsel %vm2564, %v4180, 0
        %v4507 = vsel %vm2564, %v4182, 0
        %v4510 = vsel %vm2564, %v4184, 0
        %v4513 = vsel %vm2564, %v4186, 0
        %4515 = vmatpush.msra.mxu0 %v4202
        %4516 = vmatpush.msra.mxu0 %v4201
        %4517 = vmatpush.msra.mxu0 %v4200
        %4518 = vmatpush.msra.mxu0 %v4199
        %4519 = vmatpush.msra.mxu0 %v4198
        %4520 = vmatpush.msra.mxu0 %v4197
        %4521 = vmatpush.msra.mxu0 %v4196
        %4522 = vmatpush.msra.mxu0 %v4195
        %4523 = vmatpush.msra.mxu0 %v4194
        %4524 = vmatpush.msra.mxu0 %v4193
        %4525 = vmatpush.msra.mxu0 %v4192
        %4526 = vmatpush.msra.mxu0 %v4191
        %4527 = vmatpush.msra.mxu0 %v4190
        %4528 = vmatpush.msra.mxu0 %v4189
        %4529 = vmatpush.msra.mxu0 %v4188
        %4530 = vmatpush.msra.mxu0 %v4187
        %4531 = vmatmul.f32.gmra.mxu0 %v4123
        %v4532 = vpop.f32.mrf.mxu0
        %v4533 = vadd.f32 %v4324, %v4532
        %4534 = vmatmul.f32.gmra.mxu0 %v4125
        %v4535 = vpop.f32.mrf.mxu0
        %v4536 = vadd.f32 %v4327, %v4535
        %4537 = vmatmul.f32.gmra.mxu0 %v4127
        %v4538 = vpop.f32.mrf.mxu0
        %v4539 = vadd.f32 %v4330, %v4538
        %4540 = vmatmul.f32.gmra.mxu0 %v4129
        %v4541 = vpop.f32.mrf.mxu0
        %v4542 = vadd.f32 %v4333, %v4541
        %4543 = vmatmul.f32.gmra.mxu0 %v4131
        %v4544 = vpop.f32.mrf.mxu0
        %v4545 = vadd.f32 %v4336, %v4544
        %4546 = vmatmul.f32.gmra.mxu0 %v4133
        %v4547 = vpop.f32.mrf.mxu0
        %v4548 = vadd.f32 %v4339, %v4547
        %4549 = vmatmul.f32.gmra.mxu0 %v4135
        %v4550 = vpop.f32.mrf.mxu0
        %v4551 = vadd.f32 %v4342, %v4550
        %4552 = vmatmul.f32.gmra.mxu0 %v4137
        %v4553 = vpop.f32.mrf.mxu0
        %v4554 = vadd.f32 %v4345, %v4553
        %4555 = vmatmul.f32.gmra.mxu0 %v4139
        %v4556 = vpop.f32.mrf.mxu0
        %v4557 = vadd.f32 %v4348, %v4556
        %4558 = vmatmul.f32.gmra.mxu0 %v4141
        %v4559 = vpop.f32.mrf.mxu0
        %v4560 = vadd.f32 %v4351, %v4559
        %4561 = vmatmul.f32.gmra.mxu0 %v4143
        %v4562 = vpop.f32.mrf.mxu0
        %v4563 = vadd.f32 %v4354, %v4562
        %4564 = vmatmul.f32.gmra.mxu0 %v4145
        %v4565 = vpop.f32.mrf.mxu0
        %v4566 = vadd.f32 %v4357, %v4565
        %4567 = vmatmul.f32.gmra.mxu0 %v4147
        %v4568 = vpop.f32.mrf.mxu0
        %v4569 = vadd.f32 %v4360, %v4568
        %4570 = vmatmul.f32.gmra.mxu0 %v4149
        %v4571 = vpop.f32.mrf.mxu0
        %v4572 = vadd.f32 %v4363, %v4571
        %4573 = vmatmul.f32.gmra.mxu0 %v4151
        %v4574 = vpop.f32.mrf.mxu0
        %v4575 = vadd.f32 %v4366, %v4574
        %4576 = vmatmul.f32.gmra.mxu0 %v4153
        %v4577 = vpop.f32.mrf.mxu0
        %v4578 = vadd.f32 %v4369, %v4577
        %4579 = vmatmul.f32.gmra.mxu0 %v4155
        %v4580 = vpop.f32.mrf.mxu0
        %v4581 = vadd.f32 %v4372, %v4580
        %4582 = vmatmul.f32.gmra.mxu0 %v4157
        %v4583 = vpop.f32.mrf.mxu0
        %v4584 = vadd.f32 %v4375, %v4583
        %4585 = vmatmul.f32.gmra.mxu0 %v4159
        %v4586 = vpop.f32.mrf.mxu0
        %v4587 = vadd.f32 %v4378, %v4586
        %4588 = vmatmul.f32.gmra.mxu0 %v4161
        %v4589 = vpop.f32.mrf.mxu0
        %v4590 = vadd.f32 %v4381, %v4589
        %4591 = vmatmul.f32.gmra.mxu0 %v4163
        %v4592 = vpop.f32.mrf.mxu0
        %v4593 = vadd.f32 %v4384, %v4592
        %4594 = vmatmul.f32.gmra.mxu0 %v4165
        %v4595 = vpop.f32.mrf.mxu0
        %v4596 = vadd.f32 %v4387, %v4595
        %4597 = vmatmul.f32.gmra.mxu0 %v4167
        %v4598 = vpop.f32.mrf.mxu0
        %v4599 = vadd.f32 %v4390, %v4598
        %4600 = vmatmul.f32.gmra.mxu0 %v4169
        %v4601 = vpop.f32.mrf.mxu0
        %v4602 = vadd.f32 %v4393, %v4601
        %4603 = vmatmul.f32.gmra.mxu0 %v4171
        %v4604 = vpop.f32.mrf.mxu0
        %v4605 = vadd.f32 %v4396, %v4604
        %4606 = vmatmul.f32.gmra.mxu0 %v4173
        %v4607 = vpop.f32.mrf.mxu0
        %v4608 = vadd.f32 %v4399, %v4607
        %4609 = vmatmul.f32.gmra.mxu0 %v4175
        %v4610 = vpop.f32.mrf.mxu0
        %v4611 = vadd.f32 %v4402, %v4610
        %4612 = vmatmul.f32.gmra.mxu0 %v4177
        %v4613 = vpop.f32.mrf.mxu0
        %v4614 = vadd.f32 %v4405, %v4613
        %4615 = vmatmul.f32.gmra.mxu0 %v4179
        %v4616 = vpop.f32.mrf.mxu0
        %v4617 = vadd.f32 %v4408, %v4616
        %4618 = vmatmul.f32.gmra.mxu0 %v4181
        %v4619 = vpop.f32.mrf.mxu0
        %v4620 = vadd.f32 %v4411, %v4619
        %4621 = vmatmul.f32.gmra.mxu0 %v4183
        %v4622 = vpop.f32.mrf.mxu0
        %v4623 = vadd.f32 %v4414, %v4622
        %4624 = vmatmul.f32.gmra.mxu0 %v4185
        %v4625 = vpop.f32.mrf.mxu0
        %v4626 = vadd.f32 %v4417, %v4625
        %4627 = vdwg.mxu0
        %4628 = vmatpush.msra.mxu0 0.0
        %4629 = vmatpush.msra.mxu0 0.0
        %4630 = vmatpush.msra.mxu0 0.0
        %4631 = vmatpush.msra.mxu0 0.0
        %4632 = vmatpush.msra.mxu0 0.0
        %4633 = vmatpush.msra.mxu0 0.0
        %4634 = vmatpush.msra.mxu0 0.0
        %4635 = vmatpush.msra.mxu0 0.0
        %4636 = vmatpush.msra.mxu0 0.0
        %4637 = vmatpush.msra.mxu0 0.0
        %4638 = vmatpush.msra.mxu0 0.0
        %4639 = vmatpush.msra.mxu0 0.0
        %4640 = vmatpush.msra.mxu0 0.0
        %4641 = vmatpush.msra.mxu0 0.0
        %4642 = vmatpush.msra.mxu0 %v4204
        %4643 = vmatpush.msra.mxu0 %v4203
        %4644 = vmatmul.f32.gmra.mxu0 %v4420
        %v4645 = vpop.f32.mrf.mxu0
        %v4646 = vadd.f32 %v4533, %v4645
        %4647 = vmatmul.f32.gmra.mxu0 %v4423
        %v4648 = vpop.f32.mrf.mxu0
        %v4649 = vadd.f32 %v4536, %v4648
        %4650 = vmatmul.f32.gmra.mxu0 %v4426
        %v4651 = vpop.f32.mrf.mxu0
        %v4652 = vadd.f32 %v4539, %v4651
        %4653 = vmatmul.f32.gmra.mxu0 %v4429
        %v4654 = vpop.f32.mrf.mxu0
        %v4655 = vadd.f32 %v4542, %v4654
        %4656 = vmatmul.f32.gmra.mxu0 %v4432
        %v4657 = vpop.f32.mrf.mxu0
        %v4658 = vadd.f32 %v4545, %v4657
        %4659 = vmatmul.f32.gmra.mxu0 %v4435
        %v4660 = vpop.f32.mrf.mxu0
        %v4661 = vadd.f32 %v4548, %v4660
        %4662 = vmatmul.f32.gmra.mxu0 %v4438
        %v4663 = vpop.f32.mrf.mxu0
        %v4664 = vadd.f32 %v4551, %v4663
        %4665 = vmatmul.f32.gmra.mxu0 %v4441
        %v4666 = vpop.f32.mrf.mxu0
        %v4667 = vadd.f32 %v4554, %v4666
        %4668 = vmatmul.f32.gmra.mxu0 %v4444
        %v4669 = vpop.f32.mrf.mxu0
        %v4670 = vadd.f32 %v4557, %v4669
        %4671 = vmatmul.f32.gmra.mxu0 %v4447
        %v4672 = vpop.f32.mrf.mxu0
        %v4673 = vadd.f32 %v4560, %v4672
        %4674 = vmatmul.f32.gmra.mxu0 %v4450
        %v4675 = vpop.f32.mrf.mxu0
        %v4676 = vadd.f32 %v4563, %v4675
        %4677 = vmatmul.f32.gmra.mxu0 %v4453
        %v4678 = vpop.f32.mrf.mxu0
        %v4679 = vadd.f32 %v4566, %v4678
        %4680 = vmatmul.f32.gmra.mxu0 %v4456
        %v4681 = vpop.f32.mrf.mxu0
        %v4682 = vadd.f32 %v4569, %v4681
        %4683 = vmatmul.f32.gmra.mxu0 %v4459
        %v4684 = vpop.f32.mrf.mxu0
        %v4685 = vadd.f32 %v4572, %v4684
        %4686 = vmatmul.f32.gmra.mxu0 %v4462
        %v4687 = vpop.f32.mrf.mxu0
        %v4688 = vadd.f32 %v4575, %v4687
        %4689 = vmatmul.f32.gmra.mxu0 %v4465
        %v4690 = vpop.f32.mrf.mxu0
        %v4691 = vadd.f32 %v4578, %v4690
        %4692 = vmatmul.f32.gmra.mxu0 %v4468
        %v4693 = vpop.f32.mrf.mxu0
        %v4694 = vadd.f32 %v4581, %v4693
        %4695 = vmatmul.f32.gmra.mxu0 %v4471
        %v4696 = vpop.f32.mrf.mxu0
        %v4697 = vadd.f32 %v4584, %v4696
        %4698 = vmatmul.f32.gmra.mxu0 %v4474
        %v4699 = vpop.f32.mrf.mxu0
        %v4700 = vadd.f32 %v4587, %v4699
        %4701 = vmatmul.f32.gmra.mxu0 %v4477
        %v4702 = vpop.f32.mrf.mxu0
        %v4703 = vadd.f32 %v4590, %v4702
        %4704 = vmatmul.f32.gmra.mxu0 %v4480
        %v4705 = vpop.f32.mrf.mxu0
        %v4706 = vadd.f32 %v4593, %v4705
        %4707 = vmatmul.f32.gmra.mxu0 %v4483
        %v4708 = vpop.f32.mrf.mxu0
        %v4709 = vadd.f32 %v4596, %v4708
        %4710 = vmatmul.f32.gmra.mxu0 %v4486
        %v4711 = vpop.f32.mrf.mxu0
        %v4712 = vadd.f32 %v4599, %v4711
        %4713 = vmatmul.f32.gmra.mxu0 %v4489
        %v4714 = vpop.f32.mrf.mxu0
        %v4715 = vadd.f32 %v4602, %v4714
        %4716 = vmatmul.f32.gmra.mxu0 %v4492
        %v4717 = vpop.f32.mrf.mxu0
        %v4718 = vadd.f32 %v4605, %v4717
        %4719 = vmatmul.f32.gmra.mxu0 %v4495
        %v4720 = vpop.f32.mrf.mxu0
        %v4721 = vadd.f32 %v4608, %v4720
        %4722 = vmatmul.f32.gmra.mxu0 %v4498
        %v4723 = vpop.f32.mrf.mxu0
        %v4724 = vadd.f32 %v4611, %v4723
        %4725 = vmatmul.f32.gmra.mxu0 %v4501
        %v4726 = vpop.f32.mrf.mxu0
        %v4727 = vadd.f32 %v4614, %v4726
        %4728 = vmatmul.f32.gmra.mxu0 %v4504
        %v4729 = vpop.f32.mrf.mxu0
        %v4730 = vadd.f32 %v4617, %v4729
        %4731 = vmatmul.f32.gmra.mxu0 %v4507
        %v4732 = vpop.f32.mrf.mxu0
        %v4733 = vadd.f32 %v4620, %v4732
        %4734 = vmatmul.f32.gmra.mxu0 %v4510
        %v4735 = vpop.f32.mrf.mxu0
        %v4736 = vadd.f32 %v4623, %v4735
        %4737 = vmatmul.f32.gmra.mxu0 %v4513
        %v4738 = vpop.f32.mrf.mxu0
        %v4739 = vadd.f32 %v4626, %v4738
        %4740 = vdwg.mxu0
        %v4741 = vsel %vm2564, %v4646, 0.0
        %v4742 = vsel %vm2564, %v4649, 0.0
        %v4743 = vadd.f32 %v4741, %v4742
        %v4744 = vsel %vm2564, %v4652, 0.0
        %v4745 = vadd.f32 %v4743, %v4744
        %v4746 = vsel %vm2564, %v4655, 0.0
        %v4747 = vadd.f32 %v4745, %v4746
        %v4748 = vsel %vm2564, %v4658, 0.0
        %v4749 = vadd.f32 %v4747, %v4748
        %v4750 = vsel %vm2564, %v4661, 0.0
        %v4751 = vadd.f32 %v4749, %v4750
        %v4752 = vsel %vm2564, %v4664, 0.0
        %v4753 = vadd.f32 %v4751, %v4752
        %v4754 = vsel %vm2564, %v4667, 0.0
        %v4755 = vadd.f32 %v4753, %v4754
        %v4756 = vsel %vm2564, %v4670, 0.0
        %v4757 = vadd.f32 %v4755, %v4756
        %v4758 = vsel %vm2564, %v4673, 0.0
        %v4759 = vadd.f32 %v4757, %v4758
        %v4760 = vsel %vm2564, %v4676, 0.0
        %v4761 = vadd.f32 %v4759, %v4760
        %v4762 = vsel %vm2564, %v4679, 0.0
        %v4763 = vadd.f32 %v4761, %v4762
        %v4764 = vsel %vm2564, %v4682, 0.0
        %v4765 = vadd.f32 %v4763, %v4764
        %v4766 = vsel %vm2564, %v4685, 0.0
        %v4767 = vadd.f32 %v4765, %v4766
        %v4768 = vsel %vm2564, %v4688, 0.0
        %v4769 = vadd.f32 %v4767, %v4768
        %v4770 = vsel %vm2564, %v4691, 0.0
        %v4771 = vadd.f32 %v4769, %v4770
        %v4772 = vsel %vm2564, %v4694, 0.0
        %v4773 = vadd.f32 %v4771, %v4772
        %v4774 = vsel %vm2564, %v4697, 0.0
        %v4775 = vadd.f32 %v4773, %v4774
        %v4776 = vsel %vm2564, %v4700, 0.0
        %v4777 = vadd.f32 %v4775, %v4776
        %v4778 = vsel %vm2564, %v4703, 0.0
        %v4779 = vadd.f32 %v4777, %v4778
        %v4780 = vsel %vm2564, %v4706, 0.0
        %v4781 = vadd.f32 %v4779, %v4780
        %v4782 = vsel %vm2564, %v4709, 0.0
        %v4783 = vadd.f32 %v4781, %v4782
        %v4784 = vsel %vm2564, %v4712, 0.0
        %v4785 = vadd.f32 %v4783, %v4784
        %v4786 = vsel %vm2564, %v4715, 0.0
        %v4787 = vadd.f32 %v4785, %v4786
        %v4788 = vsel %vm2564, %v4718, 0.0
        %v4789 = vadd.f32 %v4787, %v4788
        %v4790 = vsel %vm2564, %v4721, 0.0
        %v4791 = vadd.f32 %v4789, %v4790
        %v4792 = vsel %vm2564, %v4724, 0.0
        %v4793 = vadd.f32 %v4791, %v4792
        %v4794 = vsel %vm2564, %v4727, 0.0
        %v4795 = vadd.f32 %v4793, %v4794
        %v4796 = vsel %vm2564, %v4730, 0.0
        %v4797 = vadd.f32 %v4795, %v4796
        %v4798 = vsel %vm2564, %v4733, 0.0
        %v4799 = vadd.f32 %v4797, %v4798
        %v4800 = vsel %vm2564, %v4736, 0.0
        %v4801 = vadd.f32 %v4799, %v4800
        %v4802 = vsel %vm2564, %v4739, 0.0
        %v4803 = vadd.f32 %v4801, %v4802
        %v4804 = vrot.slane %v4803, 4
        %v4805 = vadd.f32 %v4803, %v4804
        %v4806 = vrot.slane %v4805, 2
        %v4807 = vadd.f32 %v4805, %v4806
        %v4808 = vrot.slane %v4807, 1
        %v4809 = vadd.f32 %v4807, %v4808
        %v4810 = vmul.f32 %v4809, 0.00390625
        %v4811 = vld [vmem:[%s9] sm:$0xff]
        %v4812 = vld [vmem:[%s9 + $0x8] sm:$0xff]
        %v4814 = vsel %vm2564, %v4810, 0
        %4816 = vmatpush.msra.mxu0 0.0
        %4817 = vmatpush.msra.mxu0 0.0
        %4818 = vmatpush.msra.mxu0 0.0
        %4819 = vmatpush.msra.mxu0 0.0
        %4820 = vmatpush.msra.mxu0 0.0
        %4821 = vmatpush.msra.mxu0 0.0
        %4822 = vmatpush.msra.mxu0 0.0
        %4823 = vmatpush.msra.mxu0 0.0
        %4824 = vmatpush.msra.mxu0 0.0
        %4825 = vmatpush.msra.mxu0 0.0
        %4826 = vmatpush.msra.mxu0 0.0
        %4827 = vmatpush.msra.mxu0 0.0
        %4828 = vmatpush.msra.mxu0 0.0
        %4829 = vmatpush.msra.mxu0 0.0
        %4830 = vmatpush.msra.mxu0 %v4812
        %4831 = vmatpush.msra.mxu0 %v4811
        %4832 = vmatmul.f32.gmra.mxu0 %v4814
        %v4833 = vpop.f32.mrf.mxu0
        %v4834 = vadd.f32 0.0, %v4833
        %4835 = vdwg.mxu0
        %v4836 = vmax.f32 %v4834, 0.0
        %v4837 = vld [vmem:[%s10] sm:$0x3]
        %vm4838 = vcmask 15360
        %v4840 = vsel %vm4838, %v4836, 0
        %vm4842 = vcmask 1041408
        %v4844 = vsel %vm4842, %v4837, 0
        %4846 = vmatpush.msra.mxu0 0.0
        %4847 = vmatpush.msra.mxu0 0.0
        %4848 = vmatpush.msra.mxu0 0.0
        %4849 = vmatpush.msra.mxu0 0.0
        %4850 = vmatpush.msra.mxu0 0.0
        %4851 = vmatpush.msra.mxu0 0.0
        %4852 = vmatpush.msra.mxu0 0.0
        %4853 = vmatpush.msra.mxu0 0.0
        %4854 = vmatpush.msra.mxu0 0.0
        %4855 = vmatpush.msra.mxu0 0.0
        %4856 = vmatpush.msra.mxu0 0.0
        %4857 = vmatpush.msra.mxu0 0.0
        %4858 = vmatpush.msra.mxu0 0.0
        %4859 = vmatpush.msra.mxu0 0.0
        %4860 = vmatpush.msra.mxu0 0.0
        %4861 = vmatpush.msra.mxu0 %v4844
        %4862 = vmatmul.f32.gmra.mxu0 %v4840
        %v4863 = vpop.f32.mrf.mxu0
        %v4864 = vadd.f32 0.0, %v4863
        %4865 = vdwg.mxu0
        %v4866 = vmax.f32 %v4864, -30.0
        %v4867 = vmin.f32 %v4866, 30.0
        %v4868 = vsub.f32 0.0, %v4867
        %v4869 = vmul.f32 %v4868, 1.442695
        %v4870 = vpow.pop %v4869
        %v4871 = vadd.f32 %v4870, 1.0
        %v4872 = vrcp.pop %v4871
        %v4873 = vperm.slane %v4872, 0
        %v4874 = vmul.f32 %v4646, %v4873
        %v4875 = vmul.f32 %v4649, %v4873
        %v4876 = vmul.f32 %v4652, %v4873
        %v4877 = vmul.f32 %v4655, %v4873
        %v4878 = vmul.f32 %v4658, %v4873
        %v4879 = vmul.f32 %v4661, %v4873
        %v4880 = vmul.f32 %v4664, %v4873
        %v4881 = vmul.f32 %v4667, %v4873
        %v4882 = vmul.f32 %v4670, %v4873
        %v4883 = vmul.f32 %v4673, %v4873
        %v4884 = vmul.f32 %v4676, %v4873
        %v4885 = vmul.f32 %v4679, %v4873
        %v4886 = vmul.f32 %v4682, %v4873
        %v4887 = vmul.f32 %v4685, %v4873
        %v4888 = vmul.f32 %v4688, %v4873
        %v4889 = vmul.f32 %v4691, %v4873
        %v4890 = vmul.f32 %v4694, %v4873
        %v4891 = vmul.f32 %v4697, %v4873
        %v4892 = vmul.f32 %v4700, %v4873
        %v4893 = vmul.f32 %v4703, %v4873
        %v4894 = vmul.f32 %v4706, %v4873
        %v4895 = vmul.f32 %v4709, %v4873
        %v4896 = vmul.f32 %v4712, %v4873
        %v4897 = vmul.f32 %v4715, %v4873
        %v4898 = vmul.f32 %v4718, %v4873
        %v4899 = vmul.f32 %v4721, %v4873
        %v4900 = vmul.f32 %v4724, %v4873
        %v4901 = vmul.f32 %v4727, %v4873
        %v4902 = vmul.f32 %v4730, %v4873
        %v4903 = vmul.f32 %v4733, %v4873
        %v4904 = vmul.f32 %v4736, %v4873
        %v4905 = vmul.f32 %v4739, %v4873
        %4906 = vst.msk [vmem:[%s379] sm:$0xff] %vm2564, %v4874
        %4907 = vst.msk [vmem:[%s379 + $0x8] sm:$0xff] %vm2564, %v4875
        %4908 = vst.msk [vmem:[%s379 + $0x10] sm:$0xff] %vm2564, %v4876
        %4909 = vst.msk [vmem:[%s379 + $0x18] sm:$0xff] %vm2564, %v4877
        %4910 = vst.msk [vmem:[%s379 + $0x20] sm:$0xff] %vm2564, %v4878
        %4911 = vst.msk [vmem:[%s379 + $0x28] sm:$0xff] %vm2564, %v4879
        %4912 = vst.msk [vmem:[%s379 + $0x30] sm:$0xff] %vm2564, %v4880
        %4913 = vst.msk [vmem:[%s379 + $0x38] sm:$0xff] %vm2564, %v4881
        %4914 = vst.msk [vmem:[%s379 + $0x40] sm:$0xff] %vm2564, %v4882
        %4915 = vst.msk [vmem:[%s379 + $0x48] sm:$0xff] %vm2564, %v4883
        %4916 = vst.msk [vmem:[%s379 + $0x50] sm:$0xff] %vm2564, %v4884
        %4917 = vst.msk [vmem:[%s379 + $0x58] sm:$0xff] %vm2564, %v4885
        %4918 = vst.msk [vmem:[%s379 + $0x60] sm:$0xff] %vm2564, %v4886
        %4919 = vst.msk [vmem:[%s379 + $0x68] sm:$0xff] %vm2564, %v4887
        %4920 = vst.msk [vmem:[%s379 + $0x70] sm:$0xff] %vm2564, %v4888
        %4921 = vst.msk [vmem:[%s379 + $0x78] sm:$0xff] %vm2564, %v4889
        %4922 = vst.msk [vmem:[%s379 + $0x80] sm:$0xff] %vm2564, %v4890
        %4923 = vst.msk [vmem:[%s379 + $0x88] sm:$0xff] %vm2564, %v4891
        %4924 = vst.msk [vmem:[%s379 + $0x90] sm:$0xff] %vm2564, %v4892
        %4925 = vst.msk [vmem:[%s379 + $0x98] sm:$0xff] %vm2564, %v4893
        %4926 = vst.msk [vmem:[%s379 + $0xa0] sm:$0xff] %vm2564, %v4894
        %4927 = vst.msk [vmem:[%s379 + $0xa8] sm:$0xff] %vm2564, %v4895
        %4928 = vst.msk [vmem:[%s379 + $0xb0] sm:$0xff] %vm2564, %v4896
        %4929 = vst.msk [vmem:[%s379 + $0xb8] sm:$0xff] %vm2564, %v4897
        %4930 = vst.msk [vmem:[%s379 + $0xc0] sm:$0xff] %vm2564, %v4898
        %4931 = vst.msk [vmem:[%s379 + $0xc8] sm:$0xff] %vm2564, %v4899
        %4932 = vst.msk [vmem:[%s379 + $0xd0] sm:$0xff] %vm2564, %v4900
        %4933 = vst.msk [vmem:[%s379 + $0xd8] sm:$0xff] %vm2564, %v4901
        %4934 = vst.msk [vmem:[%s379 + $0xe0] sm:$0xff] %vm2564, %v4902
        %4935 = vst.msk [vmem:[%s379 + $0xe8] sm:$0xff] %vm2564, %v4903
        %4936 = vst.msk [vmem:[%s379 + $0xf0] sm:$0xff] %vm2564, %v4904
        %4937 = vst.msk [vmem:[%s379 + $0xf8] sm:$0xff] %vm2564, %v4905
        %s4938 = sand.u32 %s269, 1
        %s4939 = scalar_lea.sflag [#allocation7], %s4938
        %s4940 = sand.u32 %s269, 1
        %s4941 = smul.addr %s4940, 256
        %s4942 = scalar_lea.vmem [#allocation6], %s4941
        // Predicated region
        $region65: #{tpu_custom_call.1} parent=63 // pred_check
          %p4943 = pneg %p279
        $region66: #{tpu_custom_call.1} parent=63 // pred_check_branch
          %4945 = sbr.rel (%p4943) target = $region68
        $region67: #{tpu_custom_call.1} parent=63 // pred_region
          %4947 = vsyncadd %s4939, 0
          %s4948 = smul.addr %s25, 32
          %s4949 = smul.addr %s4948, 8
          %s4950 = scalar_lea.hbm %s11, %s4949
          %s4951 = sshll.u32 %s4942, 4
          %s4952 = int_to_ptr.vmem [resolvable:$true] %s4951
          %s4953 = sshll.u32 %s4950, 4
          %s4954 = int_to_ptr.hbm [resolvable:$true] %s4953
          %4959 = dma.vmem_to_hbm [thread:$0]  %s4952, 4096, %s4954, %s4939, 128, 128, 8
        $region68: #{tpu_custom_call.1} parent=63 // pred_fallthru
          _
      $region64: #{tpu_custom_call.1} parent=5 // pred_fallthru
        _
      %p4960 = scmp.le.s32.totalorder 2, %s20
      // Predicated region
      $region69: #{tpu_custom_call.1} parent=5 // pred_check
        %p4961 = pneg %p4960
      $region70: #{tpu_custom_call.1} parent=5 // pred_check_branch
        %4963 = sbr.rel (%p4961) target = $region72
      $region71: #{tpu_custom_call.1} parent=5 // pred_region
        %s4964 = ssub.s32 %s20, 2
        // Predicated region
        $region73: #{tpu_custom_call.1} parent=71 // pred_check
          %p4965 = pneg %p285
        $region74: #{tpu_custom_call.1} parent=71 // pred_check_branch
          %4967 = sbr.rel (%p4965) target = $region76
        $region75: #{tpu_custom_call.1} parent=71 // pred_region
          %s4968 = sand.u32 %s270, 1
          %s4969 = scalar_lea.sflag [#allocation7], %s4968
          %s4970 = sand.u32 %s270, 1
          %s4971 = smul.addr %s4970, 256
          %s4972 = scalar_lea.vmem [#allocation6], %s4971
          %4974 = dma.done %s4969, 4096
        $region76: #{tpu_custom_call.1} parent=71 // pred_fallthru
          _
      $region72: #{tpu_custom_call.1} parent=5 // pred_fallthru
        _
    $region6: #{tpu_custom_call.1} parent=1 // loop_footer
      %s24 = sadd.s32 1, %s20
    $region7: #{tpu_custom_call.1} parent=1 // loop_footer_branch
      %19 = sbr.rel target = $region3
    $region8: #{tpu_custom_call.1} parent=1 // loop_exit
      _
    %4975 = vsyncpa [#allocation7], 1
    %s4976 = scalar_lea.sflag [#allocation7], 1
    %4977 = vsyncpa %s4976, 1

</llo_original>
